<compile_context>
chip_gen: v7x
topology: tpu7x:2x2x1
jax: 0.10.0
libtpu: 0.0.40
codegen_flags: <defaults>
</compile_context>

<pallas_src>
import functools

import jax
import jax.numpy as jnp
from jax import lax
from jax.experimental import pallas as pl
from jax.experimental.pallas import tpu as pltpu


# ----------------------------------------------------------------------------
# Fused kernel: all LSTM layers + final Linear
# ----------------------------------------------------------------------------
def _fused_lstm_head_kernel(num_layers, T, Bp, Hp, *refs):
    """refs layout:
      refs[0]                : x_ref      (T*Bp, Cp)  bf16, time-major, padded
      refs[1 : 1+3L]         : per layer  [wih (Din_p,4Hp) bf16,
                                           whh (Hp,4Hp)    bf16,
                                           b   (1,4Hp)     f32]
      refs[1+3L], refs[2+3L] : fc_w (Hp, Op) bf16, fc_b (1, Op) f32
      refs[3+3L]             : out_ref (Bp, Op) f32
      refs[4+3L]             : precomp scratch (T*Bp, 4Hp) f32 VMEM
      refs[5+3L]             : hseq scratch    (T*Bp, Hp)  f32 VMEM (L>1 only)
    Gate lane order inside 4Hp is [i | f | o | g].
    """
    x_ref = refs[0]
    layer_refs = refs[1:1 + 3 * num_layers]
    fcw_ref = refs[1 + 3 * num_layers]
    fcb_ref = refs[2 + 3 * num_layers]
    out_ref = refs[3 + 3 * num_layers]
    precomp = refs[4 + 3 * num_layers]
    hseq = refs[5 + 3 * num_layers] if num_layers > 1 else None

    h_last = None
    for layer in range(num_layers):
        wih_ref = layer_refs[3 * layer]        # (D_in_p, 4Hp) bf16
        whh_ref = layer_refs[3 * layer + 1]    # (Hp, 4Hp)     bf16
        b_ref = layer_refs[3 * layer + 2]      # (1, 4Hp)      f32
        last_layer = (layer == num_layers - 1)

        # Hoisted input projection for the whole sequence, bias folded in:
        # one MXU-friendly bf16 matmul with f32 accumulation.
        src_ref = x_ref if layer == 0 else hseq
        precomp[...] = (
            jnp.dot(src_ref[...].astype(jnp.bfloat16), wih_ref[...],
                    preferred_element_type=jnp.float32)
            + b_ref[...]
        )

        def step(t, carry, whh_ref=whh_ref, last_layer=last_layer):
            h, c = carry
            row = pl.multiple_of(t * Bp, Bp)
            gates = precomp[pl.ds(row, Bp), :] + jnp.dot(
                h.astype(jnp.bfloat16), whh_ref[...],
                preferred_element_type=jnp.float32,
            )                                   # (Bp, 4Hp), order [i|f|o|g]
            sig = jax.nn.sigmoid(gates[:, :3 * Hp])   # one EUP slab: i,f,o
            g_g = jnp.tanh(gates[:, 3 * Hp:])         # one EUP slab: g
            i_g = sig[:, 0 * Hp:1 * Hp]
            f_g = sig[:, 1 * Hp:2 * Hp]
            o_g = sig[:, 2 * Hp:3 * Hp]
            c_new = f_g * c + i_g * g_g
            h_new = o_g * jnp.tanh(c_new)
            if not last_layer:
                # Lane-dense (Bp, Hp) store; last layer stores nothing.
                hseq[pl.ds(row, Bp), :] = h_new
            return (h_new, c_new)

        h0 = jnp.zeros((Bp, Hp), jnp.float32)
        c0 = jnp.zeros((Bp, Hp), jnp.float32)
        h_last, _ = lax.fori_loop(0, T, step, (h0, c0), unroll=min(T, 8))

    # Final Linear on the last timestep only (lane-dense output tile).
    out_ref[...] = (
        jnp.dot(h_last.astype(jnp.bfloat16), fcw_ref[...],
                preferred_element_type=jnp.float32)
        + fcb_ref[...]
    )


# ----------------------------------------------------------------------------
# Weight padding helpers (PyTorch [i,f,g,o] layout -> padded [i,f,o,g], T'd)
# ----------------------------------------------------------------------------
_GATE_PERM = (0, 1, 3, 2)   # i,f,g,o -> i,f,o,g


def _pad_gate_weight(w, H, Hp, d_in, d_in_p):
    """w: (4H, d_in) PyTorch stacked gates -> (d_in_p, 4Hp) bf16, gate order
    [i,f,o,g], each gate in its own Hp-wide lane block, zero padded."""
    w4 = w.reshape(4, H, d_in).astype(jnp.float32)
    w4 = w4[jnp.array(_GATE_PERM)]
    w4 = jnp.pad(w4, ((0, 0), (0, Hp - H), (0, d_in_p - d_in)))
    out = jnp.transpose(w4, (2, 0, 1)).reshape(d_in_p, 4 * Hp)
    return out.astype(jnp.bfloat16)


def _pad_gate_bias(b_ih, b_hh, H, Hp):
    b = (b_ih + b_hh).reshape(4, H).astype(jnp.float32)
    b = b[jnp.array(_GATE_PERM)]
    return jnp.pad(b, ((0, 0), (0, Hp - H))).reshape(1, 4 * Hp)


def _round_up(n, m):
    return ((n + m - 1) // m) * m


# ----------------------------------------------------------------------------
# Wrapper
# ----------------------------------------------------------------------------
@jax.jit
def lstm_head_forward(x, lstm_params, fc_w, fc_b):
    """x: (B, T, C) float32 (batch_first like PyTorch).

    lstm_params: tuple of (w_ih, w_hh, b_ih, b_hh) per layer with PyTorch
                 shapes (4H, D_in), (4H, H), (4H,), (4H,).
    fc_w: (O, H), fc_b: (O,)
    """
    B, T, C = x.shape
    num_layers = len(lstm_params)
    H = lstm_params[0][1].shape[1]
    O = fc_w.shape[0]

    Bp = _round_up(B, 8)      # sublane-dense batch
    Cp = _round_up(C, 128)    # lane-dense layer-0 input
    Hp = _round_up(H, 128)    # lane-dense hidden
    Op = _round_up(O, 128)    # lane-dense output

    # Time-major, batch+channel padded, flattened input: (T*Bp, Cp) bf16.
    x_tm = jnp.transpose(x, (1, 0, 2)).astype(jnp.float32)       # (T, B, C)
    x_tm = jnp.pad(x_tm, ((0, 0), (0, Bp - B), (0, Cp - C)))     # (T, Bp, Cp)
    x_flat = x_tm.reshape(T * Bp, Cp).astype(jnp.bfloat16)

    layer_args = []
    for layer, (w_ih, w_hh, b_ih, b_hh) in enumerate(lstm_params):
        d_in = w_ih.shape[1]
        d_in_p = Cp if layer == 0 else Hp
        layer_args.append(_pad_gate_weight(w_ih, H, Hp, d_in, d_in_p))
        layer_args.append(_pad_gate_weight(w_hh, H, Hp, H, Hp))
        layer_args.append(_pad_gate_bias(b_ih, b_hh, H, Hp))

    fc_wt = jnp.pad(jnp.transpose(fc_w).astype(jnp.float32),
                    ((0, Hp - H), (0, Op - O))).astype(jnp.bfloat16)  # (Hp,Op)
    fc_bp = jnp.pad(fc_b.astype(jnp.float32), (0, Op - O)).reshape(1, Op)

    # ---- VMEM footprint -> explicit scoped-VMEM limit (with headroom) ----
    bytes_in = T * Bp * Cp * 2                                  # x (bf16)
    for layer in range(num_layers):
        d_in_p = Cp if layer == 0 else Hp
        bytes_in += (d_in_p * 4 * Hp + Hp * 4 * Hp) * 2         # weights bf16
        bytes_in += 4 * Hp * 4                                  # bias f32
    bytes_in += Hp * Op * 2 + Op * 4                            # fc
    bytes_out = Bp * Op * 4
    bytes_scr = T * Bp * 4 * Hp * 4                             # precomp f32
    if num_layers > 1:
        bytes_scr += T * Bp * Hp * 4                            # hseq f32
    footprint = bytes_in + bytes_out + bytes_scr
    vmem_limit = int(min(64 * 1024 * 1024,
                         max(8 * 1024 * 1024, 2 * footprint)))

    vmem = pl.BlockSpec(memory_space=pltpu.MemorySpace.VMEM)
    kernel = functools.partial(_fused_lstm_head_kernel, num_layers, T, Bp, Hp)

    scratch_shapes = [pltpu.VMEM((T * Bp, 4 * Hp), jnp.float32)]  # precomp
    if num_layers > 1:
        scratch_shapes.append(pltpu.VMEM((T * Bp, Hp), jnp.float32))  # hseq

    out_padded = pl.pallas_call(
        kernel,
        out_shape=jax.ShapeDtypeStruct((Bp, Op), jnp.float32),
        in_specs=[vmem] * (3 + 3 * num_layers),
        out_specs=vmem,
        scratch_shapes=scratch_shapes,
        compiler_params=pltpu.CompilerParams(vmem_limit_bytes=vmem_limit),
    )(x_flat, *layer_args, fc_wt, fc_bp)

    return out_padded[:B, :O]


# ----------------------------------------------------------------------------
# Pure-JAX reference (f32, PyTorch semantics) for sanity check
# ----------------------------------------------------------------------------
def lstm_head_ref(x, lstm_params, fc_w, fc_b):
    B, T, _ = x.shape
    h_seq = x
    for (w_ih, w_hh, b_ih, b_hh) in lstm_params:
        H = w_hh.shape[1]
        h = jnp.zeros((B, H), jnp.float32)
        c = jnp.zeros((B, H), jnp.float32)
        outs = []
        for t in range(T):
            gates = h_seq[:, t, :] @ w_ih.T + h @ w_hh.T + b_ih + b_hh
            i_g, f_g, g_g, o_g = jnp.split(gates, 4, axis=1)
            i_g = jax.nn.sigmoid(i_g)
            f_g = jax.nn.sigmoid(f_g)
            g_g = jnp.tanh(g_g)
            o_g = jax.nn.sigmoid(o_g)
            c = f_g * c + i_g * g_g
            h = o_g * jnp.tanh(c)
            outs.append(h)
        h_seq = jnp.stack(outs, axis=1)
    return h_seq[:, -1, :] @ fc_w.T + fc_b


# ----------------------------------------------------------------------------
# Main
# ----------------------------------------------------------------------------
if __name__ == "__main__":
    # Small shapes consistent with the module's forward: x is (B, T, C).
    B, T = 2, 8
    input_channels = 4
    lstm_hidden_size = 32
    lstm_num_layers = 2
    output_dim = 8

    key = jax.random.PRNGKey(0)
    keys = jax.random.split(key, 4 * lstm_num_layers + 3)
    bound = 1.0 / jnp.sqrt(lstm_hidden_size)

    lstm_params = []
    kidx = 0
    for layer in range(lstm_num_layers):
        d_in = input_channels if layer == 0 else lstm_hidden_size
        w_ih = jax.random.uniform(keys[kidx], (4 * lstm_hidden_size, d_in),
                                  jnp.float32, -bound, bound); kidx += 1
        w_hh = jax.random.uniform(keys[kidx],
                                  (4 * lstm_hidden_size, lstm_hidden_size),
                                  jnp.float32, -bound, bound); kidx += 1
        b_ih = jax.random.uniform(keys[kidx], (4 * lstm_hidden_size,),
                                  jnp.float32, -bound, bound); kidx += 1
        b_hh = jax.random.uniform(keys[kidx], (4 * lstm_hidden_size,),
                                  jnp.float32, -bound, bound); kidx += 1
        lstm_params.append((w_ih, w_hh, b_ih, b_hh))
    lstm_params = tuple(lstm_params)

    fc_w = jax.random.uniform(keys[kidx], (output_dim, lstm_hidden_size),
                              jnp.float32, -bound, bound); kidx += 1
    fc_b = jax.random.uniform(keys[kidx], (output_dim,),
                              jnp.float32, -bound, bound); kidx += 1

    x = jax.random.normal(keys[kidx], (B, T, input_channels), jnp.float32)

    out = lstm_head_forward(x, lstm_params, fc_w, fc_b)
    out = jax.block_until_ready(out)

    ref = jax.block_until_ready(lstm_head_ref(x, lstm_params, fc_w, fc_b))
    assert out.shape == (B, output_dim)
    # Tolerance loosened vs pure-f32 because MXU operands are bf16 (accumulation
    # stays f32); real bugs (e.g. wrong gate order) produce errors >> 3e-2.
    assert jnp.allclose(out, ref, atol=3e-2, rtol=3e-2), "mismatch vs reference"

    print("KERNEL_OK")
</pallas_src>

<mosaic_0001>
module attributes {stable_mosaic.version = 11 : i64} {
  func.func @_fused_lstm_head_kernel(%arg0: memref<64x128xbf16, #tpu.memory_space<vmem>>, %arg1: memref<128x512xbf16, #tpu.memory_space<vmem>>, %arg2: memref<128x512xbf16, #tpu.memory_space<vmem>>, %arg3: memref<1x512xf32, #tpu.memory_space<vmem>>, %arg4: memref<128x512xbf16, #tpu.memory_space<vmem>>, %arg5: memref<128x512xbf16, #tpu.memory_space<vmem>>, %arg6: memref<1x512xf32, #tpu.memory_space<vmem>>, %arg7: memref<128x128xbf16, #tpu.memory_space<vmem>>, %arg8: memref<1x128xf32, #tpu.memory_space<vmem>>, %arg9: memref<8x128xf32, #tpu.memory_space<vmem>>, %arg10: memref<64x512xf32, #tpu.memory_space<vmem>>, %arg11: memref<64x128xf32, #tpu.memory_space<vmem>>) attributes {dimension_semantics = [], scalar_prefetch = 0 : i64, scratch_operands = 2 : i64, tpu.core_type = #tpu.core_type<tc>} {
    %c0 = arith.constant 0 : index
    %c0_0 = arith.constant 0 : index
    %0 = vector.load %arg0[%c0, %c0_0] : memref<64x128xbf16, #tpu.memory_space<vmem>>, vector<64x128xbf16>
    %c0_1 = arith.constant 0 : index
    %c0_2 = arith.constant 0 : index
    %1 = vector.load %arg1[%c0_1, %c0_2] : memref<128x512xbf16, #tpu.memory_space<vmem>>, vector<128x512xbf16>
    %cst = arith.constant dense<0.000000e+00> : vector<64x512xf32>
    %2 = tpu.matmul %0, %1, %cst {dimension_numbers = #tpu.dot_dimension_numbers<[1], [0], [0], [1], [0, 0, 1, 1], [], []>} : vector<64x128xbf16>, vector<128x512xbf16>, vector<64x512xf32> -> vector<64x512xf32>
    %c0_3 = arith.constant 0 : index
    %c0_4 = arith.constant 0 : index
    %3 = vector.load %arg3[%c0_3, %c0_4] : memref<1x512xf32, #tpu.memory_space<vmem>>, vector<1x512xf32>
    %4 = vector.broadcast %3 : vector<1x512xf32> to vector<64x512xf32>
    %5 = arith.addf %2, %4 : vector<64x512xf32>
    %c0_5 = arith.constant 0 : index
    %c0_6 = arith.constant 0 : index
    %6 = vector.load %arg10[%c0_5, %c0_6] : memref<64x512xf32, #tpu.memory_space<vmem>>, vector<64x512xf32>
    tpu.vector_store %arg10[%c0_5, %c0_6], %5 {strides = array<i32>} : memref<64x512xf32, #tpu.memory_space<vmem>>, vector<64x512xf32>,
    %cst_7 = arith.constant 0.000000e+00 : f32
    %7 = vector.broadcast %cst_7 : f32 to vector<8x128xf32>
    %cst_8 = arith.constant 0.000000e+00 : f32
    %8 = vector.broadcast %cst_8 : f32 to vector<8x128xf32>
    %c0_i32 = arith.constant 0 : i32
    %c8_i32 = arith.constant 8 : i32
    %9 = arith.muli %c0_i32, %c8_i32 : i32
    %10 = tpu.assume_multiple %9, 8 : i32
    %11 = arith.index_cast %10 : i32 to index
    %c0_9 = arith.constant 0 : index
    %12 = vector.load %arg10[%11, %c0_9] : memref<64x512xf32, #tpu.memory_space<vmem>>, vector<8x512xf32>
    %13 = arith.truncf %7 : vector<8x128xf32> to vector<8x128xbf16>
    %c0_10 = arith.constant 0 : index
    %c0_11 = arith.constant 0 : index
    %14 = vector.load %arg2[%c0_10, %c0_11] : memref<128x512xbf16, #tpu.memory_space<vmem>>, vector<128x512xbf16>
    %cst_12 = arith.constant dense<0.000000e+00> : vector<8x512xf32>
    %15 = tpu.matmul %13, %14, %cst_12 {dimension_numbers = #tpu.dot_dimension_numbers<[1], [0], [0], [1], [0, 0, 1, 1], [], []>} : vector<8x128xbf16>, vector<128x512xbf16>, vector<8x512xf32> -> vector<8x512xf32>
    %16 = arith.addf %12, %15 : vector<8x512xf32>
    %17 = vector.extract_strided_slice %16 {offsets = [0, 0], sizes = [8, 384], strides = [1, 1]} : vector<8x512xf32> to vector<8x384xf32>
    %18 = arith.negf %17 : vector<8x384xf32>
    %19 = math.exp %18 : vector<8x384xf32>
    %cst_13 = arith.constant 1.000000e+00 : f32
    %20 = vector.broadcast %cst_13 : f32 to vector<8x384xf32>
    %21 = arith.addf %20, %19 : vector<8x384xf32>
    %22 = arith.divf %20, %21 : vector<8x384xf32>
    %23 = vector.extract_strided_slice %16 {offsets = [0, 384], sizes = [8, 128], strides = [1, 1]} : vector<8x512xf32> to vector<8x128xf32>
    %24 = math.tanh %23 : vector<8x128xf32>
    %25 = vector.extract_strided_slice %22 {offsets = [0, 0], sizes = [8, 128], strides = [1, 1]} : vector<8x384xf32> to vector<8x128xf32>
    %26 = vector.extract_strided_slice %22 {offsets = [0, 128], sizes = [8, 128], strides = [1, 1]} : vector<8x384xf32> to vector<8x128xf32>
    %27 = vector.extract_strided_slice %22 {offsets = [0, 256], sizes = [8, 128], strides = [1, 1]} : vector<8x384xf32> to vector<8x128xf32>
    %28 = arith.mulf %26, %8 : vector<8x128xf32>
    %29 = arith.mulf %25, %24 : vector<8x128xf32>
    %30 = arith.addf %28, %29 : vector<8x128xf32>
    %31 = math.tanh %30 : vector<8x128xf32>
    %32 = arith.mulf %27, %31 : vector<8x128xf32>
    %33 = arith.index_cast %10 : i32 to index
    %c0_14 = arith.constant 0 : index
    %34 = vector.load %arg11[%33, %c0_14] : memref<64x128xf32, #tpu.memory_space<vmem>>, vector<8x128xf32>
    tpu.vector_store %arg11[%33, %c0_14], %32 {strides = array<i32>} : memref<64x128xf32, #tpu.memory_space<vmem>>, vector<8x128xf32>,
    %c1_i32 = arith.constant 1 : i32
    %c8_i32_15 = arith.constant 8 : i32
    %35 = arith.muli %c1_i32, %c8_i32_15 : i32
    %36 = tpu.assume_multiple %35, 8 : i32
    %37 = arith.index_cast %36 : i32 to index
    %c0_16 = arith.constant 0 : index
    %38 = vector.load %arg10[%37, %c0_16] : memref<64x512xf32, #tpu.memory_space<vmem>>, vector<8x512xf32>
    %39 = arith.truncf %32 : vector<8x128xf32> to vector<8x128xbf16>
    %c0_17 = arith.constant 0 : index
    %c0_18 = arith.constant 0 : index
    %40 = vector.load %arg2[%c0_17, %c0_18] : memref<128x512xbf16, #tpu.memory_space<vmem>>, vector<128x512xbf16>
    %cst_19 = arith.constant dense<0.000000e+00> : vector<8x512xf32>
    %41 = tpu.matmul %39, %40, %cst_19 {dimension_numbers = #tpu.dot_dimension_numbers<[1], [0], [0], [1], [0, 0, 1, 1], [], []>} : vector<8x128xbf16>, vector<128x512xbf16>, vector<8x512xf32> -> vector<8x512xf32>
    %42 = arith.addf %38, %41 : vector<8x512xf32>
    %43 = vector.extract_strided_slice %42 {offsets = [0, 0], sizes = [8, 384], strides = [1, 1]} : vector<8x512xf32> to vector<8x384xf32>
    %44 = arith.negf %43 : vector<8x384xf32>
    %45 = math.exp %44 : vector<8x384xf32>
    %cst_20 = arith.constant 1.000000e+00 : f32
    %46 = vector.broadcast %cst_20 : f32 to vector<8x384xf32>
    %47 = arith.addf %46, %45 : vector<8x384xf32>
    %48 = arith.divf %46, %47 : vector<8x384xf32>
    %49 = vector.extract_strided_slice %42 {offsets = [0, 384], sizes = [8, 128], strides = [1, 1]} : vector<8x512xf32> to vector<8x128xf32>
    %50 = math.tanh %49 : vector<8x128xf32>
    %51 = vector.extract_strided_slice %48 {offsets = [0, 0], sizes = [8, 128], strides = [1, 1]} : vector<8x384xf32> to vector<8x128xf32>
    %52 = vector.extract_strided_slice %48 {offsets = [0, 128], sizes = [8, 128], strides = [1, 1]} : vector<8x384xf32> to vector<8x128xf32>
    %53 = vector.extract_strided_slice %48 {offsets = [0, 256], sizes = [8, 128], strides = [1, 1]} : vector<8x384xf32> to vector<8x128xf32>
    %54 = arith.mulf %52, %30 : vector<8x128xf32>
    %55 = arith.mulf %51, %50 : vector<8x128xf32>
    %56 = arith.addf %54, %55 : vector<8x128xf32>
    %57 = math.tanh %56 : vector<8x128xf32>
    %58 = arith.mulf %53, %57 : vector<8x128xf32>
    %59 = arith.index_cast %36 : i32 to index
    %c0_21 = arith.constant 0 : index
    %60 = vector.load %arg11[%59, %c0_21] : memref<64x128xf32, #tpu.memory_space<vmem>>, vector<8x128xf32>
    tpu.vector_store %arg11[%59, %c0_21], %58 {strides = array<i32>} : memref<64x128xf32, #tpu.memory_space<vmem>>, vector<8x128xf32>,
    %c2_i32 = arith.constant 2 : i32
    %c8_i32_22 = arith.constant 8 : i32
    %61 = arith.muli %c2_i32, %c8_i32_22 : i32
    %62 = tpu.assume_multiple %61, 8 : i32
    %63 = arith.index_cast %62 : i32 to index
    %c0_23 = arith.constant 0 : index
    %64 = vector.load %arg10[%63, %c0_23] : memref<64x512xf32, #tpu.memory_space<vmem>>, vector<8x512xf32>
    %65 = arith.truncf %58 : vector<8x128xf32> to vector<8x128xbf16>
    %c0_24 = arith.constant 0 : index
    %c0_25 = arith.constant 0 : index
    %66 = vector.load %arg2[%c0_24, %c0_25] : memref<128x512xbf16, #tpu.memory_space<vmem>>, vector<128x512xbf16>
    %cst_26 = arith.constant dense<0.000000e+00> : vector<8x512xf32>
    %67 = tpu.matmul %65, %66, %cst_26 {dimension_numbers = #tpu.dot_dimension_numbers<[1], [0], [0], [1], [0, 0, 1, 1], [], []>} : vector<8x128xbf16>, vector<128x512xbf16>, vector<8x512xf32> -> vector<8x512xf32>
    %68 = arith.addf %64, %67 : vector<8x512xf32>
    %69 = vector.extract_strided_slice %68 {offsets = [0, 0], sizes = [8, 384], strides = [1, 1]} : vector<8x512xf32> to vector<8x384xf32>
    %70 = arith.negf %69 : vector<8x384xf32>
    %71 = math.exp %70 : vector<8x384xf32>
    %cst_27 = arith.constant 1.000000e+00 : f32
    %72 = vector.broadcast %cst_27 : f32 to vector<8x384xf32>
    %73 = arith.addf %72, %71 : vector<8x384xf32>
    %74 = arith.divf %72, %73 : vector<8x384xf32>
    %75 = vector.extract_strided_slice %68 {offsets = [0, 384], sizes = [8, 128], strides = [1, 1]} : vector<8x512xf32> to vector<8x128xf32>
    %76 = math.tanh %75 : vector<8x128xf32>
    %77 = vector.extract_strided_slice %74 {offsets = [0, 0], sizes = [8, 128], strides = [1, 1]} : vector<8x384xf32> to vector<8x128xf32>
    %78 = vector.extract_strided_slice %74 {offsets = [0, 128], sizes = [8, 128], strides = [1, 1]} : vector<8x384xf32> to vector<8x128xf32>
    %79 = vector.extract_strided_slice %74 {offsets = [0, 256], sizes = [8, 128], strides = [1, 1]} : vector<8x384xf32> to vector<8x128xf32>
    %80 = arith.mulf %78, %56 : vector<8x128xf32>
    %81 = arith.mulf %77, %76 : vector<8x128xf32>
    %82 = arith.addf %80, %81 : vector<8x128xf32>
    %83 = math.tanh %82 : vector<8x128xf32>
    %84 = arith.mulf %79, %83 : vector<8x128xf32>
    %85 = arith.index_cast %62 : i32 to index
    %c0_28 = arith.constant 0 : index
    %86 = vector.load %arg11[%85, %c0_28] : memref<64x128xf32, #tpu.memory_space<vmem>>, vector<8x128xf32>
    tpu.vector_store %arg11[%85, %c0_28], %84 {strides = array<i32>} : memref<64x128xf32, #tpu.memory_space<vmem>>, vector<8x128xf32>,
    %c3_i32 = arith.constant 3 : i32
    %c8_i32_29 = arith.constant 8 : i32
    %87 = arith.muli %c3_i32, %c8_i32_29 : i32
    %88 = tpu.assume_multiple %87, 8 : i32
    %89 = arith.index_cast %88 : i32 to index
    %c0_30 = arith.constant 0 : index
    %90 = vector.load %arg10[%89, %c0_30] : memref<64x512xf32, #tpu.memory_space<vmem>>, vector<8x512xf32>
    %91 = arith.truncf %84 : vector<8x128xf32> to vector<8x128xbf16>
    %c0_31 = arith.constant 0 : index
    %c0_32 = arith.constant 0 : index
    %92 = vector.load %arg2[%c0_31, %c0_32] : memref<128x512xbf16, #tpu.memory_space<vmem>>, vector<128x512xbf16>
    %cst_33 = arith.constant dense<0.000000e+00> : vector<8x512xf32>
    %93 = tpu.matmul %91, %92, %cst_33 {dimension_numbers = #tpu.dot_dimension_numbers<[1], [0], [0], [1], [0, 0, 1, 1], [], []>} : vector<8x128xbf16>, vector<128x512xbf16>, vector<8x512xf32> -> vector<8x512xf32>
    %94 = arith.addf %90, %93 : vector<8x512xf32>
    %95 = vector.extract_strided_slice %94 {offsets = [0, 0], sizes = [8, 384], strides = [1, 1]} : vector<8x512xf32> to vector<8x384xf32>
    %96 = arith.negf %95 : vector<8x384xf32>
    %97 = math.exp %96 : vector<8x384xf32>
    %cst_34 = arith.constant 1.000000e+00 : f32
    %98 = vector.broadcast %cst_34 : f32 to vector<8x384xf32>
    %99 = arith.addf %98, %97 : vector<8x384xf32>
    %100 = arith.divf %98, %99 : vector<8x384xf32>
    %101 = vector.extract_strided_slice %94 {offsets = [0, 384], sizes = [8, 128], strides = [1, 1]} : vector<8x512xf32> to vector<8x128xf32>
    %102 = math.tanh %101 : vector<8x128xf32>
    %103 = vector.extract_strided_slice %100 {offsets = [0, 0], sizes = [8, 128], strides = [1, 1]} : vector<8x384xf32> to vector<8x128xf32>
    %104 = vector.extract_strided_slice %100 {offsets = [0, 128], sizes = [8, 128], strides = [1, 1]} : vector<8x384xf32> to vector<8x128xf32>
    %105 = vector.extract_strided_slice %100 {offsets = [0, 256], sizes = [8, 128], strides = [1, 1]} : vector<8x384xf32> to vector<8x128xf32>
    %106 = arith.mulf %104, %82 : vector<8x128xf32>
    %107 = arith.mulf %103, %102 : vector<8x128xf32>
    %108 = arith.addf %106, %107 : vector<8x128xf32>
    %109 = math.tanh %108 : vector<8x128xf32>
    %110 = arith.mulf %105, %109 : vector<8x128xf32>
    %111 = arith.index_cast %88 : i32 to index
    %c0_35 = arith.constant 0 : index
    %112 = vector.load %arg11[%111, %c0_35] : memref<64x128xf32, #tpu.memory_space<vmem>>, vector<8x128xf32>
    tpu.vector_store %arg11[%111, %c0_35], %110 {strides = array<i32>} : memref<64x128xf32, #tpu.memory_space<vmem>>, vector<8x128xf32>,
    %c4_i32 = arith.constant 4 : i32
    %c8_i32_36 = arith.constant 8 : i32
    %113 = arith.muli %c4_i32, %c8_i32_36 : i32
    %114 = tpu.assume_multiple %113, 8 : i32
    %115 = arith.index_cast %114 : i32 to index
    %c0_37 = arith.constant 0 : index
    %116 = vector.load %arg10[%115, %c0_37] : memref<64x512xf32, #tpu.memory_space<vmem>>, vector<8x512xf32>
    %117 = arith.truncf %110 : vector<8x128xf32> to vector<8x128xbf16>
    %c0_38 = arith.constant 0 : index
    %c0_39 = arith.constant 0 : index
    %118 = vector.load %arg2[%c0_38, %c0_39] : memref<128x512xbf16, #tpu.memory_space<vmem>>, vector<128x512xbf16>
    %cst_40 = arith.constant dense<0.000000e+00> : vector<8x512xf32>
    %119 = tpu.matmul %117, %118, %cst_40 {dimension_numbers = #tpu.dot_dimension_numbers<[1], [0], [0], [1], [0, 0, 1, 1], [], []>} : vector<8x128xbf16>, vector<128x512xbf16>, vector<8x512xf32> -> vector<8x512xf32>
    %120 = arith.addf %116, %119 : vector<8x512xf32>
    %121 = vector.extract_strided_slice %120 {offsets = [0, 0], sizes = [8, 384], strides = [1, 1]} : vector<8x512xf32> to vector<8x384xf32>
    %122 = arith.negf %121 : vector<8x384xf32>
    %123 = math.exp %122 : vector<8x384xf32>
    %cst_41 = arith.constant 1.000000e+00 : f32
    %124 = vector.broadcast %cst_41 : f32 to vector<8x384xf32>
    %125 = arith.addf %124, %123 : vector<8x384xf32>
    %126 = arith.divf %124, %125 : vector<8x384xf32>
    %127 = vector.extract_strided_slice %120 {offsets = [0, 384], sizes = [8, 128], strides = [1, 1]} : vector<8x512xf32> to vector<8x128xf32>
    %128 = math.tanh %127 : vector<8x128xf32>
    %129 = vector.extract_strided_slice %126 {offsets = [0, 0], sizes = [8, 128], strides = [1, 1]} : vector<8x384xf32> to vector<8x128xf32>
    %130 = vector.extract_strided_slice %126 {offsets = [0, 128], sizes = [8, 128], strides = [1, 1]} : vector<8x384xf32> to vector<8x128xf32>
    %131 = vector.extract_strided_slice %126 {offsets = [0, 256], sizes = [8, 128], strides = [1, 1]} : vector<8x384xf32> to vector<8x128xf32>
    %132 = arith.mulf %130, %108 : vector<8x128xf32>
    %133 = arith.mulf %129, %128 : vector<8x128xf32>
    %134 = arith.addf %132, %133 : vector<8x128xf32>
    %135 = math.tanh %134 : vector<8x128xf32>
    %136 = arith.mulf %131, %135 : vector<8x128xf32>
    %137 = arith.index_cast %114 : i32 to index
    %c0_42 = arith.constant 0 : index
    %138 = vector.load %arg11[%137, %c0_42] : memref<64x128xf32, #tpu.memory_space<vmem>>, vector<8x128xf32>
    tpu.vector_store %arg11[%137, %c0_42], %136 {strides = array<i32>} : memref<64x128xf32, #tpu.memory_space<vmem>>, vector<8x128xf32>,
    %c5_i32 = arith.constant 5 : i32
    %c8_i32_43 = arith.constant 8 : i32
    %139 = arith.muli %c5_i32, %c8_i32_43 : i32
    %140 = tpu.assume_multiple %139, 8 : i32
    %141 = arith.index_cast %140 : i32 to index
    %c0_44 = arith.constant 0 : index
    %142 = vector.load %arg10[%141, %c0_44] : memref<64x512xf32, #tpu.memory_space<vmem>>, vector<8x512xf32>
    %143 = arith.truncf %136 : vector<8x128xf32> to vector<8x128xbf16>
    %c0_45 = arith.constant 0 : index
    %c0_46 = arith.constant 0 : index
    %144 = vector.load %arg2[%c0_45, %c0_46] : memref<128x512xbf16, #tpu.memory_space<vmem>>, vector<128x512xbf16>
    %cst_47 = arith.constant dense<0.000000e+00> : vector<8x512xf32>
    %145 = tpu.matmul %143, %144, %cst_47 {dimension_numbers = #tpu.dot_dimension_numbers<[1], [0], [0], [1], [0, 0, 1, 1], [], []>} : vector<8x128xbf16>, vector<128x512xbf16>, vector<8x512xf32> -> vector<8x512xf32>
    %146 = arith.addf %142, %145 : vector<8x512xf32>
    %147 = vector.extract_strided_slice %146 {offsets = [0, 0], sizes = [8, 384], strides = [1, 1]} : vector<8x512xf32> to vector<8x384xf32>
    %148 = arith.negf %147 : vector<8x384xf32>
    %149 = math.exp %148 : vector<8x384xf32>
    %cst_48 = arith.constant 1.000000e+00 : f32
    %150 = vector.broadcast %cst_48 : f32 to vector<8x384xf32>
    %151 = arith.addf %150, %149 : vector<8x384xf32>
    %152 = arith.divf %150, %151 : vector<8x384xf32>
    %153 = vector.extract_strided_slice %146 {offsets = [0, 384], sizes = [8, 128], strides = [1, 1]} : vector<8x512xf32> to vector<8x128xf32>
    %154 = math.tanh %153 : vector<8x128xf32>
    %155 = vector.extract_strided_slice %152 {offsets = [0, 0], sizes = [8, 128], strides = [1, 1]} : vector<8x384xf32> to vector<8x128xf32>
    %156 = vector.extract_strided_slice %152 {offsets = [0, 128], sizes = [8, 128], strides = [1, 1]} : vector<8x384xf32> to vector<8x128xf32>
    %157 = vector.extract_strided_slice %152 {offsets = [0, 256], sizes = [8, 128], strides = [1, 1]} : vector<8x384xf32> to vector<8x128xf32>
    %158 = arith.mulf %156, %134 : vector<8x128xf32>
    %159 = arith.mulf %155, %154 : vector<8x128xf32>
    %160 = arith.addf %158, %159 : vector<8x128xf32>
    %161 = math.tanh %160 : vector<8x128xf32>
    %162 = arith.mulf %157, %161 : vector<8x128xf32>
    %163 = arith.index_cast %140 : i32 to index
    %c0_49 = arith.constant 0 : index
    %164 = vector.load %arg11[%163, %c0_49] : memref<64x128xf32, #tpu.memory_space<vmem>>, vector<8x128xf32>
    tpu.vector_store %arg11[%163, %c0_49], %162 {strides = array<i32>} : memref<64x128xf32, #tpu.memory_space<vmem>>, vector<8x128xf32>,
    %c6_i32 = arith.constant 6 : i32
    %c8_i32_50 = arith.constant 8 : i32
    %165 = arith.muli %c6_i32, %c8_i32_50 : i32
    %166 = tpu.assume_multiple %165, 8 : i32
    %167 = arith.index_cast %166 : i32 to index
    %c0_51 = arith.constant 0 : index
    %168 = vector.load %arg10[%167, %c0_51] : memref<64x512xf32, #tpu.memory_space<vmem>>, vector<8x512xf32>
    %169 = arith.truncf %162 : vector<8x128xf32> to vector<8x128xbf16>
    %c0_52 = arith.constant 0 : index
    %c0_53 = arith.constant 0 : index
    %170 = vector.load %arg2[%c0_52, %c0_53] : memref<128x512xbf16, #tpu.memory_space<vmem>>, vector<128x512xbf16>
    %cst_54 = arith.constant dense<0.000000e+00> : vector<8x512xf32>
    %171 = tpu.matmul %169, %170, %cst_54 {dimension_numbers = #tpu.dot_dimension_numbers<[1], [0], [0], [1], [0, 0, 1, 1], [], []>} : vector<8x128xbf16>, vector<128x512xbf16>, vector<8x512xf32> -> vector<8x512xf32>
    %172 = arith.addf %168, %171 : vector<8x512xf32>
    %173 = vector.extract_strided_slice %172 {offsets = [0, 0], sizes = [8, 384], strides = [1, 1]} : vector<8x512xf32> to vector<8x384xf32>
    %174 = arith.negf %173 : vector<8x384xf32>
    %175 = math.exp %174 : vector<8x384xf32>
    %cst_55 = arith.constant 1.000000e+00 : f32
    %176 = vector.broadcast %cst_55 : f32 to vector<8x384xf32>
    %177 = arith.addf %176, %175 : vector<8x384xf32>
    %178 = arith.divf %176, %177 : vector<8x384xf32>
    %179 = vector.extract_strided_slice %172 {offsets = [0, 384], sizes = [8, 128], strides = [1, 1]} : vector<8x512xf32> to vector<8x128xf32>
    %180 = math.tanh %179 : vector<8x128xf32>
    %181 = vector.extract_strided_slice %178 {offsets = [0, 0], sizes = [8, 128], strides = [1, 1]} : vector<8x384xf32> to vector<8x128xf32>
    %182 = vector.extract_strided_slice %178 {offsets = [0, 128], sizes = [8, 128], strides = [1, 1]} : vector<8x384xf32> to vector<8x128xf32>
    %183 = vector.extract_strided_slice %178 {offsets = [0, 256], sizes = [8, 128], strides = [1, 1]} : vector<8x384xf32> to vector<8x128xf32>
    %184 = arith.mulf %182, %160 : vector<8x128xf32>
    %185 = arith.mulf %181, %180 : vector<8x128xf32>
    %186 = arith.addf %184, %185 : vector<8x128xf32>
    %187 = math.tanh %186 : vector<8x128xf32>
    %188 = arith.mulf %183, %187 : vector<8x128xf32>
    %189 = arith.index_cast %166 : i32 to index
    %c0_56 = arith.constant 0 : index
    %190 = vector.load %arg11[%189, %c0_56] : memref<64x128xf32, #tpu.memory_space<vmem>>, vector<8x128xf32>
    tpu.vector_store %arg11[%189, %c0_56], %188 {strides = array<i32>} : memref<64x128xf32, #tpu.memory_space<vmem>>, vector<8x128xf32>,
    %c7_i32 = arith.constant 7 : i32
    %c8_i32_57 = arith.constant 8 : i32
    %191 = arith.muli %c7_i32, %c8_i32_57 : i32
    %192 = tpu.assume_multiple %191, 8 : i32
    %193 = arith.index_cast %192 : i32 to index
    %c0_58 = arith.constant 0 : index
    %194 = vector.load %arg10[%193, %c0_58] : memref<64x512xf32, #tpu.memory_space<vmem>>, vector<8x512xf32>
    %195 = arith.truncf %188 : vector<8x128xf32> to vector<8x128xbf16>
    %c0_59 = arith.constant 0 : index
    %c0_60 = arith.constant 0 : index
    %196 = vector.load %arg2[%c0_59, %c0_60] : memref<128x512xbf16, #tpu.memory_space<vmem>>, vector<128x512xbf16>
    %cst_61 = arith.constant dense<0.000000e+00> : vector<8x512xf32>
    %197 = tpu.matmul %195, %196, %cst_61 {dimension_numbers = #tpu.dot_dimension_numbers<[1], [0], [0], [1], [0, 0, 1, 1], [], []>} : vector<8x128xbf16>, vector<128x512xbf16>, vector<8x512xf32> -> vector<8x512xf32>
    %198 = arith.addf %194, %197 : vector<8x512xf32>
    %199 = vector.extract_strided_slice %198 {offsets = [0, 0], sizes = [8, 384], strides = [1, 1]} : vector<8x512xf32> to vector<8x384xf32>
    %200 = arith.negf %199 : vector<8x384xf32>
    %201 = math.exp %200 : vector<8x384xf32>
    %cst_62 = arith.constant 1.000000e+00 : f32
    %202 = vector.broadcast %cst_62 : f32 to vector<8x384xf32>
    %203 = arith.addf %202, %201 : vector<8x384xf32>
    %204 = arith.divf %202, %203 : vector<8x384xf32>
    %205 = vector.extract_strided_slice %198 {offsets = [0, 384], sizes = [8, 128], strides = [1, 1]} : vector<8x512xf32> to vector<8x128xf32>
    %206 = math.tanh %205 : vector<8x128xf32>
    %207 = vector.extract_strided_slice %204 {offsets = [0, 0], sizes = [8, 128], strides = [1, 1]} : vector<8x384xf32> to vector<8x128xf32>
    %208 = vector.extract_strided_slice %204 {offsets = [0, 128], sizes = [8, 128], strides = [1, 1]} : vector<8x384xf32> to vector<8x128xf32>
    %209 = vector.extract_strided_slice %204 {offsets = [0, 256], sizes = [8, 128], strides = [1, 1]} : vector<8x384xf32> to vector<8x128xf32>
    %210 = arith.mulf %208, %186 : vector<8x128xf32>
    %211 = arith.mulf %207, %206 : vector<8x128xf32>
    %212 = arith.addf %210, %211 : vector<8x128xf32>
    %213 = math.tanh %212 : vector<8x128xf32>
    %214 = arith.mulf %209, %213 : vector<8x128xf32>
    %215 = arith.index_cast %192 : i32 to index
    %c0_63 = arith.constant 0 : index
    %216 = vector.load %arg11[%215, %c0_63] : memref<64x128xf32, #tpu.memory_space<vmem>>, vector<8x128xf32>
    tpu.vector_store %arg11[%215, %c0_63], %214 {strides = array<i32>} : memref<64x128xf32, #tpu.memory_space<vmem>>, vector<8x128xf32>,
    %c8_i32_64 = arith.constant 8 : i32
    %c0_65 = arith.constant 0 : index
    %c0_66 = arith.constant 0 : index
    %217 = vector.load %arg11[%c0_65, %c0_66] : memref<64x128xf32, #tpu.memory_space<vmem>>, vector<64x128xf32>
    %218 = arith.truncf %217 : vector<64x128xf32> to vector<64x128xbf16>
    %c0_67 = arith.constant 0 : index
    %c0_68 = arith.constant 0 : index
    %219 = vector.load %arg4[%c0_67, %c0_68] : memref<128x512xbf16, #tpu.memory_space<vmem>>, vector<128x512xbf16>
    %cst_69 = arith.constant dense<0.000000e+00> : vector<64x512xf32>
    %220 = tpu.matmul %218, %219, %cst_69 {dimension_numbers = #tpu.dot_dimension_numbers<[1], [0], [0], [1], [0, 0, 1, 1], [], []>} : vector<64x128xbf16>, vector<128x512xbf16>, vector<64x512xf32> -> vector<64x512xf32>
    %c0_70 = arith.constant 0 : index
    %c0_71 = arith.constant 0 : index
    %221 = vector.load %arg6[%c0_70, %c0_71] : memref<1x512xf32, #tpu.memory_space<vmem>>, vector<1x512xf32>
    %222 = vector.broadcast %221 : vector<1x512xf32> to vector<64x512xf32>
    %223 = arith.addf %220, %222 : vector<64x512xf32>
    %c0_72 = arith.constant 0 : index
    %c0_73 = arith.constant 0 : index
    %224 = vector.load %arg10[%c0_72, %c0_73] : memref<64x512xf32, #tpu.memory_space<vmem>>, vector<64x512xf32>
    tpu.vector_store %arg10[%c0_72, %c0_73], %223 {strides = array<i32>} : memref<64x512xf32, #tpu.memory_space<vmem>>, vector<64x512xf32>,
    %cst_74 = arith.constant 0.000000e+00 : f32
    %225 = vector.broadcast %cst_74 : f32 to vector<8x128xf32>
    %cst_75 = arith.constant 0.000000e+00 : f32
    %226 = vector.broadcast %cst_75 : f32 to vector<8x128xf32>
    %c0_i32_76 = arith.constant 0 : i32
    %c8_i32_77 = arith.constant 8 : i32
    %227 = arith.muli %c0_i32_76, %c8_i32_77 : i32
    %228 = tpu.assume_multiple %227, 8 : i32
    %229 = arith.index_cast %228 : i32 to index
    %c0_78 = arith.constant 0 : index
    %230 = vector.load %arg10[%229, %c0_78] : memref<64x512xf32, #tpu.memory_space<vmem>>, vector<8x512xf32>
    %231 = arith.truncf %225 : vector<8x128xf32> to vector<8x128xbf16>
    %c0_79 = arith.constant 0 : index
    %c0_80 = arith.constant 0 : index
    %232 = vector.load %arg5[%c0_79, %c0_80] : memref<128x512xbf16, #tpu.memory_space<vmem>>, vector<128x512xbf16>
    %cst_81 = arith.constant dense<0.000000e+00> : vector<8x512xf32>
    %233 = tpu.matmul %231, %232, %cst_81 {dimension_numbers = #tpu.dot_dimension_numbers<[1], [0], [0], [1], [0, 0, 1, 1], [], []>} : vector<8x128xbf16>, vector<128x512xbf16>, vector<8x512xf32> -> vector<8x512xf32>
    %234 = arith.addf %230, %233 : vector<8x512xf32>
    %235 = vector.extract_strided_slice %234 {offsets = [0, 0], sizes = [8, 384], strides = [1, 1]} : vector<8x512xf32> to vector<8x384xf32>
    %236 = arith.negf %235 : vector<8x384xf32>
    %237 = math.exp %236 : vector<8x384xf32>
    %cst_82 = arith.constant 1.000000e+00 : f32
    %238 = vector.broadcast %cst_82 : f32 to vector<8x384xf32>
    %239 = arith.addf %238, %237 : vector<8x384xf32>
    %240 = arith.divf %238, %239 : vector<8x384xf32>
    %241 = vector.extract_strided_slice %234 {offsets = [0, 384], sizes = [8, 128], strides = [1, 1]} : vector<8x512xf32> to vector<8x128xf32>
    %242 = math.tanh %241 : vector<8x128xf32>
    %243 = vector.extract_strided_slice %240 {offsets = [0, 0], sizes = [8, 128], strides = [1, 1]} : vector<8x384xf32> to vector<8x128xf32>
    %244 = vector.extract_strided_slice %240 {offsets = [0, 128], sizes = [8, 128], strides = [1, 1]} : vector<8x384xf32> to vector<8x128xf32>
    %245 = vector.extract_strided_slice %240 {offsets = [0, 256], sizes = [8, 128], strides = [1, 1]} : vector<8x384xf32> to vector<8x128xf32>
    %246 = arith.mulf %244, %226 : vector<8x128xf32>
    %247 = arith.mulf %243, %242 : vector<8x128xf32>
    %248 = arith.addf %246, %247 : vector<8x128xf32>
    %249 = math.tanh %248 : vector<8x128xf32>
    %250 = arith.mulf %245, %249 : vector<8x128xf32>
    %c1_i32_83 = arith.constant 1 : i32
    %c8_i32_84 = arith.constant 8 : i32
    %251 = arith.muli %c1_i32_83, %c8_i32_84 : i32
    %252 = tpu.assume_multiple %251, 8 : i32
    %253 = arith.index_cast %252 : i32 to index
    %c0_85 = arith.constant 0 : index
    %254 = vector.load %arg10[%253, %c0_85] : memref<64x512xf32, #tpu.memory_space<vmem>>, vector<8x512xf32>
    %255 = arith.truncf %250 : vector<8x128xf32> to vector<8x128xbf16>
    %c0_86 = arith.constant 0 : index
    %c0_87 = arith.constant 0 : index
    %256 = vector.load %arg5[%c0_86, %c0_87] : memref<128x512xbf16, #tpu.memory_space<vmem>>, vector<128x512xbf16>
    %cst_88 = arith.constant dense<0.000000e+00> : vector<8x512xf32>
    %257 = tpu.matmul %255, %256, %cst_88 {dimension_numbers = #tpu.dot_dimension_numbers<[1], [0], [0], [1], [0, 0, 1, 1], [], []>} : vector<8x128xbf16>, vector<128x512xbf16>, vector<8x512xf32> -> vector<8x512xf32>
    %258 = arith.addf %254, %257 : vector<8x512xf32>
    %259 = vector.extract_strided_slice %258 {offsets = [0, 0], sizes = [8, 384], strides = [1, 1]} : vector<8x512xf32> to vector<8x384xf32>
    %260 = arith.negf %259 : vector<8x384xf32>
    %261 = math.exp %260 : vector<8x384xf32>
    %cst_89 = arith.constant 1.000000e+00 : f32
    %262 = vector.broadcast %cst_89 : f32 to vector<8x384xf32>
    %263 = arith.addf %262, %261 : vector<8x384xf32>
    %264 = arith.divf %262, %263 : vector<8x384xf32>
    %265 = vector.extract_strided_slice %258 {offsets = [0, 384], sizes = [8, 128], strides = [1, 1]} : vector<8x512xf32> to vector<8x128xf32>
    %266 = math.tanh %265 : vector<8x128xf32>
    %267 = vector.extract_strided_slice %264 {offsets = [0, 0], sizes = [8, 128], strides = [1, 1]} : vector<8x384xf32> to vector<8x128xf32>
    %268 = vector.extract_strided_slice %264 {offsets = [0, 128], sizes = [8, 128], strides = [1, 1]} : vector<8x384xf32> to vector<8x128xf32>
    %269 = vector.extract_strided_slice %264 {offsets = [0, 256], sizes = [8, 128], strides = [1, 1]} : vector<8x384xf32> to vector<8x128xf32>
    %270 = arith.mulf %268, %248 : vector<8x128xf32>
    %271 = arith.mulf %267, %266 : vector<8x128xf32>
    %272 = arith.addf %270, %271 : vector<8x128xf32>
    %273 = math.tanh %272 : vector<8x128xf32>
    %274 = arith.mulf %269, %273 : vector<8x128xf32>
    %c2_i32_90 = arith.constant 2 : i32
    %c8_i32_91 = arith.constant 8 : i32
    %275 = arith.muli %c2_i32_90, %c8_i32_91 : i32
    %276 = tpu.assume_multiple %275, 8 : i32
    %277 = arith.index_cast %276 : i32 to index
    %c0_92 = arith.constant 0 : index
    %278 = vector.load %arg10[%277, %c0_92] : memref<64x512xf32, #tpu.memory_space<vmem>>, vector<8x512xf32>
    %279 = arith.truncf %274 : vector<8x128xf32> to vector<8x128xbf16>
    %c0_93 = arith.constant 0 : index
    %c0_94 = arith.constant 0 : index
    %280 = vector.load %arg5[%c0_93, %c0_94] : memref<128x512xbf16, #tpu.memory_space<vmem>>, vector<128x512xbf16>
    %cst_95 = arith.constant dense<0.000000e+00> : vector<8x512xf32>
    %281 = tpu.matmul %279, %280, %cst_95 {dimension_numbers = #tpu.dot_dimension_numbers<[1], [0], [0], [1], [0, 0, 1, 1], [], []>} : vector<8x128xbf16>, vector<128x512xbf16>, vector<8x512xf32> -> vector<8x512xf32>
    %282 = arith.addf %278, %281 : vector<8x512xf32>
    %283 = vector.extract_strided_slice %282 {offsets = [0, 0], sizes = [8, 384], strides = [1, 1]} : vector<8x512xf32> to vector<8x384xf32>
    %284 = arith.negf %283 : vector<8x384xf32>
    %285 = math.exp %284 : vector<8x384xf32>
    %cst_96 = arith.constant 1.000000e+00 : f32
    %286 = vector.broadcast %cst_96 : f32 to vector<8x384xf32>
    %287 = arith.addf %286, %285 : vector<8x384xf32>
    %288 = arith.divf %286, %287 : vector<8x384xf32>
    %289 = vector.extract_strided_slice %282 {offsets = [0, 384], sizes = [8, 128], strides = [1, 1]} : vector<8x512xf32> to vector<8x128xf32>
    %290 = math.tanh %289 : vector<8x128xf32>
    %291 = vector.extract_strided_slice %288 {offsets = [0, 0], sizes = [8, 128], strides = [1, 1]} : vector<8x384xf32> to vector<8x128xf32>
    %292 = vector.extract_strided_slice %288 {offsets = [0, 128], sizes = [8, 128], strides = [1, 1]} : vector<8x384xf32> to vector<8x128xf32>
    %293 = vector.extract_strided_slice %288 {offsets = [0, 256], sizes = [8, 128], strides = [1, 1]} : vector<8x384xf32> to vector<8x128xf32>
    %294 = arith.mulf %292, %272 : vector<8x128xf32>
    %295 = arith.mulf %291, %290 : vector<8x128xf32>
    %296 = arith.addf %294, %295 : vector<8x128xf32>
    %297 = math.tanh %296 : vector<8x128xf32>
    %298 = arith.mulf %293, %297 : vector<8x128xf32>
    %c3_i32_97 = arith.constant 3 : i32
    %c8_i32_98 = arith.constant 8 : i32
    %299 = arith.muli %c3_i32_97, %c8_i32_98 : i32
    %300 = tpu.assume_multiple %299, 8 : i32
    %301 = arith.index_cast %300 : i32 to index
    %c0_99 = arith.constant 0 : index
    %302 = vector.load %arg10[%301, %c0_99] : memref<64x512xf32, #tpu.memory_space<vmem>>, vector<8x512xf32>
    %303 = arith.truncf %298 : vector<8x128xf32> to vector<8x128xbf16>
    %c0_100 = arith.constant 0 : index
    %c0_101 = arith.constant 0 : index
    %304 = vector.load %arg5[%c0_100, %c0_101] : memref<128x512xbf16, #tpu.memory_space<vmem>>, vector<128x512xbf16>
    %cst_102 = arith.constant dense<0.000000e+00> : vector<8x512xf32>
    %305 = tpu.matmul %303, %304, %cst_102 {dimension_numbers = #tpu.dot_dimension_numbers<[1], [0], [0], [1], [0, 0, 1, 1], [], []>} : vector<8x128xbf16>, vector<128x512xbf16>, vector<8x512xf32> -> vector<8x512xf32>
    %306 = arith.addf %302, %305 : vector<8x512xf32>
    %307 = vector.extract_strided_slice %306 {offsets = [0, 0], sizes = [8, 384], strides = [1, 1]} : vector<8x512xf32> to vector<8x384xf32>
    %308 = arith.negf %307 : vector<8x384xf32>
    %309 = math.exp %308 : vector<8x384xf32>
    %cst_103 = arith.constant 1.000000e+00 : f32
    %310 = vector.broadcast %cst_103 : f32 to vector<8x384xf32>
    %311 = arith.addf %310, %309 : vector<8x384xf32>
    %312 = arith.divf %310, %311 : vector<8x384xf32>
    %313 = vector.extract_strided_slice %306 {offsets = [0, 384], sizes = [8, 128], strides = [1, 1]} : vector<8x512xf32> to vector<8x128xf32>
    %314 = math.tanh %313 : vector<8x128xf32>
    %315 = vector.extract_strided_slice %312 {offsets = [0, 0], sizes = [8, 128], strides = [1, 1]} : vector<8x384xf32> to vector<8x128xf32>
    %316 = vector.extract_strided_slice %312 {offsets = [0, 128], sizes = [8, 128], strides = [1, 1]} : vector<8x384xf32> to vector<8x128xf32>
    %317 = vector.extract_strided_slice %312 {offsets = [0, 256], sizes = [8, 128], strides = [1, 1]} : vector<8x384xf32> to vector<8x128xf32>
    %318 = arith.mulf %316, %296 : vector<8x128xf32>
    %319 = arith.mulf %315, %314 : vector<8x128xf32>
    %320 = arith.addf %318, %319 : vector<8x128xf32>
    %321 = math.tanh %320 : vector<8x128xf32>
    %322 = arith.mulf %317, %321 : vector<8x128xf32>
    %c4_i32_104 = arith.constant 4 : i32
    %c8_i32_105 = arith.constant 8 : i32
    %323 = arith.muli %c4_i32_104, %c8_i32_105 : i32
    %324 = tpu.assume_multiple %323, 8 : i32
    %325 = arith.index_cast %324 : i32 to index
    %c0_106 = arith.constant 0 : index
    %326 = vector.load %arg10[%325, %c0_106] : memref<64x512xf32, #tpu.memory_space<vmem>>, vector<8x512xf32>
    %327 = arith.truncf %322 : vector<8x128xf32> to vector<8x128xbf16>
    %c0_107 = arith.constant 0 : index
    %c0_108 = arith.constant 0 : index
    %328 = vector.load %arg5[%c0_107, %c0_108] : memref<128x512xbf16, #tpu.memory_space<vmem>>, vector<128x512xbf16>
    %cst_109 = arith.constant dense<0.000000e+00> : vector<8x512xf32>
    %329 = tpu.matmul %327, %328, %cst_109 {dimension_numbers = #tpu.dot_dimension_numbers<[1], [0], [0], [1], [0, 0, 1, 1], [], []>} : vector<8x128xbf16>, vector<128x512xbf16>, vector<8x512xf32> -> vector<8x512xf32>
    %330 = arith.addf %326, %329 : vector<8x512xf32>
    %331 = vector.extract_strided_slice %330 {offsets = [0, 0], sizes = [8, 384], strides = [1, 1]} : vector<8x512xf32> to vector<8x384xf32>
    %332 = arith.negf %331 : vector<8x384xf32>
    %333 = math.exp %332 : vector<8x384xf32>
    %cst_110 = arith.constant 1.000000e+00 : f32
    %334 = vector.broadcast %cst_110 : f32 to vector<8x384xf32>
    %335 = arith.addf %334, %333 : vector<8x384xf32>
    %336 = arith.divf %334, %335 : vector<8x384xf32>
    %337 = vector.extract_strided_slice %330 {offsets = [0, 384], sizes = [8, 128], strides = [1, 1]} : vector<8x512xf32> to vector<8x128xf32>
    %338 = math.tanh %337 : vector<8x128xf32>
    %339 = vector.extract_strided_slice %336 {offsets = [0, 0], sizes = [8, 128], strides = [1, 1]} : vector<8x384xf32> to vector<8x128xf32>
    %340 = vector.extract_strided_slice %336 {offsets = [0, 128], sizes = [8, 128], strides = [1, 1]} : vector<8x384xf32> to vector<8x128xf32>
    %341 = vector.extract_strided_slice %336 {offsets = [0, 256], sizes = [8, 128], strides = [1, 1]} : vector<8x384xf32> to vector<8x128xf32>
    %342 = arith.mulf %340, %320 : vector<8x128xf32>
    %343 = arith.mulf %339, %338 : vector<8x128xf32>
    %344 = arith.addf %342, %343 : vector<8x128xf32>
    %345 = math.tanh %344 : vector<8x128xf32>
    %346 = arith.mulf %341, %345 : vector<8x128xf32>
    %c5_i32_111 = arith.constant 5 : i32
    %c8_i32_112 = arith.constant 8 : i32
    %347 = arith.muli %c5_i32_111, %c8_i32_112 : i32
    %348 = tpu.assume_multiple %347, 8 : i32
    %349 = arith.index_cast %348 : i32 to index
    %c0_113 = arith.constant 0 : index
    %350 = vector.load %arg10[%349, %c0_113] : memref<64x512xf32, #tpu.memory_space<vmem>>, vector<8x512xf32>
    %351 = arith.truncf %346 : vector<8x128xf32> to vector<8x128xbf16>
    %c0_114 = arith.constant 0 : index
    %c0_115 = arith.constant 0 : index
    %352 = vector.load %arg5[%c0_114, %c0_115] : memref<128x512xbf16, #tpu.memory_space<vmem>>, vector<128x512xbf16>
    %cst_116 = arith.constant dense<0.000000e+00> : vector<8x512xf32>
    %353 = tpu.matmul %351, %352, %cst_116 {dimension_numbers = #tpu.dot_dimension_numbers<[1], [0], [0], [1], [0, 0, 1, 1], [], []>} : vector<8x128xbf16>, vector<128x512xbf16>, vector<8x512xf32> -> vector<8x512xf32>
    %354 = arith.addf %350, %353 : vector<8x512xf32>
    %355 = vector.extract_strided_slice %354 {offsets = [0, 0], sizes = [8, 384], strides = [1, 1]} : vector<8x512xf32> to vector<8x384xf32>
    %356 = arith.negf %355 : vector<8x384xf32>
    %357 = math.exp %356 : vector<8x384xf32>
    %cst_117 = arith.constant 1.000000e+00 : f32
    %358 = vector.broadcast %cst_117 : f32 to vector<8x384xf32>
    %359 = arith.addf %358, %357 : vector<8x384xf32>
    %360 = arith.divf %358, %359 : vector<8x384xf32>
    %361 = vector.extract_strided_slice %354 {offsets = [0, 384], sizes = [8, 128], strides = [1, 1]} : vector<8x512xf32> to vector<8x128xf32>
    %362 = math.tanh %361 : vector<8x128xf32>
    %363 = vector.extract_strided_slice %360 {offsets = [0, 0], sizes = [8, 128], strides = [1, 1]} : vector<8x384xf32> to vector<8x128xf32>
    %364 = vector.extract_strided_slice %360 {offsets = [0, 128], sizes = [8, 128], strides = [1, 1]} : vector<8x384xf32> to vector<8x128xf32>
    %365 = vector.extract_strided_slice %360 {offsets = [0, 256], sizes = [8, 128], strides = [1, 1]} : vector<8x384xf32> to vector<8x128xf32>
    %366 = arith.mulf %364, %344 : vector<8x128xf32>
    %367 = arith.mulf %363, %362 : vector<8x128xf32>
    %368 = arith.addf %366, %367 : vector<8x128xf32>
    %369 = math.tanh %368 : vector<8x128xf32>
    %370 = arith.mulf %365, %369 : vector<8x128xf32>
    %c6_i32_118 = arith.constant 6 : i32
    %c8_i32_119 = arith.constant 8 : i32
    %371 = arith.muli %c6_i32_118, %c8_i32_119 : i32
    %372 = tpu.assume_multiple %371, 8 : i32
    %373 = arith.index_cast %372 : i32 to index
    %c0_120 = arith.constant 0 : index
    %374 = vector.load %arg10[%373, %c0_120] : memref<64x512xf32, #tpu.memory_space<vmem>>, vector<8x512xf32>
    %375 = arith.truncf %370 : vector<8x128xf32> to vector<8x128xbf16>
    %c0_121 = arith.constant 0 : index
    %c0_122 = arith.constant 0 : index
    %376 = vector.load %arg5[%c0_121, %c0_122] : memref<128x512xbf16, #tpu.memory_space<vmem>>, vector<128x512xbf16>
    %cst_123 = arith.constant dense<0.000000e+00> : vector<8x512xf32>
    %377 = tpu.matmul %375, %376, %cst_123 {dimension_numbers = #tpu.dot_dimension_numbers<[1], [0], [0], [1], [0, 0, 1, 1], [], []>} : vector<8x128xbf16>, vector<128x512xbf16>, vector<8x512xf32> -> vector<8x512xf32>
    %378 = arith.addf %374, %377 : vector<8x512xf32>
    %379 = vector.extract_strided_slice %378 {offsets = [0, 0], sizes = [8, 384], strides = [1, 1]} : vector<8x512xf32> to vector<8x384xf32>
    %380 = arith.negf %379 : vector<8x384xf32>
    %381 = math.exp %380 : vector<8x384xf32>
    %cst_124 = arith.constant 1.000000e+00 : f32
    %382 = vector.broadcast %cst_124 : f32 to vector<8x384xf32>
    %383 = arith.addf %382, %381 : vector<8x384xf32>
    %384 = arith.divf %382, %383 : vector<8x384xf32>
    %385 = vector.extract_strided_slice %378 {offsets = [0, 384], sizes = [8, 128], strides = [1, 1]} : vector<8x512xf32> to vector<8x128xf32>
    %386 = math.tanh %385 : vector<8x128xf32>
    %387 = vector.extract_strided_slice %384 {offsets = [0, 0], sizes = [8, 128], strides = [1, 1]} : vector<8x384xf32> to vector<8x128xf32>
    %388 = vector.extract_strided_slice %384 {offsets = [0, 128], sizes = [8, 128], strides = [1, 1]} : vector<8x384xf32> to vector<8x128xf32>
    %389 = vector.extract_strided_slice %384 {offsets = [0, 256], sizes = [8, 128], strides = [1, 1]} : vector<8x384xf32> to vector<8x128xf32>
    %390 = arith.mulf %388, %368 : vector<8x128xf32>
    %391 = arith.mulf %387, %386 : vector<8x128xf32>
    %392 = arith.addf %390, %391 : vector<8x128xf32>
    %393 = math.tanh %392 : vector<8x128xf32>
    %394 = arith.mulf %389, %393 : vector<8x128xf32>
    %c7_i32_125 = arith.constant 7 : i32
    %c8_i32_126 = arith.constant 8 : i32
    %395 = arith.muli %c7_i32_125, %c8_i32_126 : i32
    %396 = tpu.assume_multiple %395, 8 : i32
    %397 = arith.index_cast %396 : i32 to index
    %c0_127 = arith.constant 0 : index
    %398 = vector.load %arg10[%397, %c0_127] : memref<64x512xf32, #tpu.memory_space<vmem>>, vector<8x512xf32>
    %399 = arith.truncf %394 : vector<8x128xf32> to vector<8x128xbf16>
    %c0_128 = arith.constant 0 : index
    %c0_129 = arith.constant 0 : index
    %400 = vector.load %arg5[%c0_128, %c0_129] : memref<128x512xbf16, #tpu.memory_space<vmem>>, vector<128x512xbf16>
    %cst_130 = arith.constant dense<0.000000e+00> : vector<8x512xf32>
    %401 = tpu.matmul %399, %400, %cst_130 {dimension_numbers = #tpu.dot_dimension_numbers<[1], [0], [0], [1], [0, 0, 1, 1], [], []>} : vector<8x128xbf16>, vector<128x512xbf16>, vector<8x512xf32> -> vector<8x512xf32>
    %402 = arith.addf %398, %401 : vector<8x512xf32>
    %403 = vector.extract_strided_slice %402 {offsets = [0, 0], sizes = [8, 384], strides = [1, 1]} : vector<8x512xf32> to vector<8x384xf32>
    %404 = arith.negf %403 : vector<8x384xf32>
    %405 = math.exp %404 : vector<8x384xf32>
    %cst_131 = arith.constant 1.000000e+00 : f32
    %406 = vector.broadcast %cst_131 : f32 to vector<8x384xf32>
    %407 = arith.addf %406, %405 : vector<8x384xf32>
    %408 = arith.divf %406, %407 : vector<8x384xf32>
    %409 = vector.extract_strided_slice %402 {offsets = [0, 384], sizes = [8, 128], strides = [1, 1]} : vector<8x512xf32> to vector<8x128xf32>
    %410 = math.tanh %409 : vector<8x128xf32>
    %411 = vector.extract_strided_slice %408 {offsets = [0, 0], sizes = [8, 128], strides = [1, 1]} : vector<8x384xf32> to vector<8x128xf32>
    %412 = vector.extract_strided_slice %408 {offsets = [0, 128], sizes = [8, 128], strides = [1, 1]} : vector<8x384xf32> to vector<8x128xf32>
    %413 = vector.extract_strided_slice %408 {offsets = [0, 256], sizes = [8, 128], strides = [1, 1]} : vector<8x384xf32> to vector<8x128xf32>
    %414 = arith.mulf %412, %392 : vector<8x128xf32>
    %415 = arith.mulf %411, %410 : vector<8x128xf32>
    %416 = arith.addf %414, %415 : vector<8x128xf32>
    %417 = math.tanh %416 : vector<8x128xf32>
    %418 = arith.mulf %413, %417 : vector<8x128xf32>
    %c8_i32_132 = arith.constant 8 : i32
    %419 = arith.truncf %418 : vector<8x128xf32> to vector<8x128xbf16>
    %c0_133 = arith.constant 0 : index
    %c0_134 = arith.constant 0 : index
    %420 = vector.load %arg7[%c0_133, %c0_134] : memref<128x128xbf16, #tpu.memory_space<vmem>>, vector<128x128xbf16>
    %cst_135 = arith.constant dense<0.000000e+00> : vector<8x128xf32>
    %421 = tpu.matmul %419, %420, %cst_135 {dimension_numbers = #tpu.dot_dimension_numbers<[1], [0], [0], [1], [0, 0, 1, 1], [], []>} : vector<8x128xbf16>, vector<128x128xbf16>, vector<8x128xf32> -> vector<8x128xf32>
    %c0_136 = arith.constant 0 : index
    %c0_137 = arith.constant 0 : index
    %422 = vector.load %arg8[%c0_136, %c0_137] : memref<1x128xf32, #tpu.memory_space<vmem>>, vector<1x128xf32>
    %423 = vector.broadcast %422 : vector<1x128xf32> to vector<8x128xf32>
    %424 = arith.addf %421, %423 : vector<8x128xf32>
    %c0_138 = arith.constant 0 : index
    %c0_139 = arith.constant 0 : index
    %425 = vector.load %arg9[%c0_138, %c0_139] : memref<8x128xf32, #tpu.memory_space<vmem>>, vector<8x128xf32>
    tpu.vector_store %arg9[%c0_138, %c0_139], %424 {strides = array<i32>} : memref<8x128xf32, #tpu.memory_space<vmem>>, vector<8x128xf32>,
    return
  }
}

</mosaic_0001>

<llo_original>
// kernel: lstm_head_forward.1
$region0: #{lstm_head_forward.1}
  #allocation0 [shape = 'u32[]', space=smem, size = 0x4, offset = 0x4, fixed_abs, tag = 'smem constant byte address 0x4 - core index']
  #allocation1 [shape = 'u32[144,128]{1,0:T(1,128)}', space=vmem, size = 0x12000, scoped, tag = 'internal scratch']
  #allocation2 [shape = 'f32[64,512]{1,0:T(8,128)}', space=vmem, size = 0x20000, scoped, tag = 'scratch operand']
  #allocation3 [shape = 'f32[64,128]{1,0:T(8,128)}', space=vmem, size = 0x8000, scoped, tag = 'scratch operand']
  %s0 = inlined_call_operand.vmem [shape: bf16[64,128], index: 0, kind: input, shape index: {}]
  %s1 = inlined_call_operand.vmem [shape: bf16[128,512], index: 1, kind: input, shape index: {}]
  %s2 = inlined_call_operand.vmem [shape: bf16[128,512], index: 2, kind: input, shape index: {}]
  %s3 = inlined_call_operand.vmem [shape: f32[1,512], index: 3, kind: input, shape index: {}]
  %s4 = inlined_call_operand.vmem [shape: bf16[128,512], index: 4, kind: input, shape index: {}]
  %s5 = inlined_call_operand.vmem [shape: bf16[128,512], index: 5, kind: input, shape index: {}]
  %s6 = inlined_call_operand.vmem [shape: f32[1,512], index: 6, kind: input, shape index: {}]
  %s7 = inlined_call_operand.vmem [shape: bf16[128,128], index: 7, kind: input, shape index: {}]
  %s8 = inlined_call_operand.vmem [shape: f32[1,128], index: 8, kind: input, shape index: {}]
  %s9 = inlined_call_operand.vmem [shape: f32[8,128], index: 9, kind: output, shape index: {}]
  %s10 = sld [smem:[#allocation0]]
  $region46: #{lstm_head_forward.1} parent=0
    _
  %s12 = ssub.s32 1, %s10
  %s13 = scalar_select 0, %s12, %s10
  // Predicated region
  $region2: #{lstm_head_forward.1} parent=0 // pred_check
    _
  $region3: #{lstm_head_forward.1} parent=0 // pred_check_branch
    %15 = sbr.rel (0) target = $region5
  $region4: #{lstm_head_forward.1} parent=0 // pred_region
    _
  $region5: #{lstm_head_forward.1} parent=0 // pred_fallthru
    _
  // Predicated region
  $region6: #{lstm_head_forward.1} parent=0 // pred_check
    _
  $region7: #{lstm_head_forward.1} parent=0 // pred_check_branch
    %17 = sbr.rel (0) target = $region9
  $region8: #{lstm_head_forward.1} parent=0 // pred_region
    _
  $region9: #{lstm_head_forward.1} parent=0 // pred_fallthru
    _
  // Predicated region
  $region10: #{lstm_head_forward.1} parent=0 // pred_check
    _
  $region11: #{lstm_head_forward.1} parent=0 // pred_check_branch
    %19 = sbr.rel (0) target = $region13
  $region12: #{lstm_head_forward.1} parent=0 // pred_region
    _
  $region13: #{lstm_head_forward.1} parent=0 // pred_fallthru
    _
  // Predicated region
  $region14: #{lstm_head_forward.1} parent=0 // pred_check
    _
  $region15: #{lstm_head_forward.1} parent=0 // pred_check_branch
    %21 = sbr.rel (0) target = $region17
  $region16: #{lstm_head_forward.1} parent=0 // pred_region
    _
  $region17: #{lstm_head_forward.1} parent=0 // pred_fallthru
    _
  // Predicated region
  $region18: #{lstm_head_forward.1} parent=0 // pred_check
    _
  $region19: #{lstm_head_forward.1} parent=0 // pred_check_branch
    %23 = sbr.rel (0) target = $region21
  $region20: #{lstm_head_forward.1} parent=0 // pred_region
    _
  $region21: #{lstm_head_forward.1} parent=0 // pred_fallthru
    _
  // Predicated region
  $region22: #{lstm_head_forward.1} parent=0 // pred_check
    _
  $region23: #{lstm_head_forward.1} parent=0 // pred_check_branch
    %25 = sbr.rel (0) target = $region25
  $region24: #{lstm_head_forward.1} parent=0 // pred_region
    _
  $region25: #{lstm_head_forward.1} parent=0 // pred_fallthru
    _
  // Predicated region
  $region26: #{lstm_head_forward.1} parent=0 // pred_check
    _
  $region27: #{lstm_head_forward.1} parent=0 // pred_check_branch
    %27 = sbr.rel (0) target = $region29
  $region28: #{lstm_head_forward.1} parent=0 // pred_region
    _
  $region29: #{lstm_head_forward.1} parent=0 // pred_fallthru
    _
  // Predicated region
  $region30: #{lstm_head_forward.1} parent=0 // pred_check
    _
  $region31: #{lstm_head_forward.1} parent=0 // pred_check_branch
    %29 = sbr.rel (0) target = $region33
  $region32: #{lstm_head_forward.1} parent=0 // pred_region
    _
  $region33: #{lstm_head_forward.1} parent=0 // pred_fallthru
    _
  // Predicated region
  $region34: #{lstm_head_forward.1} parent=0 // pred_check
    _
  $region35: #{lstm_head_forward.1} parent=0 // pred_check_branch
    %31 = sbr.rel (0) target = $region37
  $region36: #{lstm_head_forward.1} parent=0 // pred_region
    _
  $region37: #{lstm_head_forward.1} parent=0 // pred_fallthru
    _
  %v33 = vld [vmem:[%s0] sm:$0xf]
  %v34 = vld [vmem:[%s0 + $0x4] sm:$0xf]
  %v35 = vld [vmem:[%s0 + $0x8] sm:$0xf]
  %v36 = vld [vmem:[%s0 + $0xc] sm:$0xf]
  %v37 = vld [vmem:[%s0 + $0x10] sm:$0xf]
  %v38 = vld [vmem:[%s0 + $0x14] sm:$0xf]
  %v39 = vld [vmem:[%s0 + $0x18] sm:$0xf]
  %v40 = vld [vmem:[%s0 + $0x1c] sm:$0xf]
  %v41 = vld [vmem:[%s1] sm:$0xff]
  %v42 = vld [vmem:[%s1 + $0x8] sm:$0xff]
  %v43 = vld [vmem:[%s1 + $0x10] sm:$0xff]
  %v44 = vld [vmem:[%s1 + $0x18] sm:$0xff]
  %v45 = vld [vmem:[%s1 + $0x20] sm:$0xff]
  %v46 = vld [vmem:[%s1 + $0x28] sm:$0xff]
  %v47 = vld [vmem:[%s1 + $0x30] sm:$0xff]
  %v48 = vld [vmem:[%s1 + $0x38] sm:$0xff]
  %v49 = vld [vmem:[%s1 + $0x40] sm:$0xff]
  %v50 = vld [vmem:[%s1 + $0x48] sm:$0xff]
  %v51 = vld [vmem:[%s1 + $0x50] sm:$0xff]
  %v52 = vld [vmem:[%s1 + $0x58] sm:$0xff]
  %v53 = vld [vmem:[%s1 + $0x60] sm:$0xff]
  %v54 = vld [vmem:[%s1 + $0x68] sm:$0xff]
  %v55 = vld [vmem:[%s1 + $0x70] sm:$0xff]
  %v56 = vld [vmem:[%s1 + $0x78] sm:$0xff]
  %v57 = vld [vmem:[%s1 + $0x80] sm:$0xff]
  %v58 = vld [vmem:[%s1 + $0x88] sm:$0xff]
  %v59 = vld [vmem:[%s1 + $0x90] sm:$0xff]
  %v60 = vld [vmem:[%s1 + $0x98] sm:$0xff]
  %v61 = vld [vmem:[%s1 + $0xa0] sm:$0xff]
  %v62 = vld [vmem:[%s1 + $0xa8] sm:$0xff]
  %v63 = vld [vmem:[%s1 + $0xb0] sm:$0xff]
  %v64 = vld [vmem:[%s1 + $0xb8] sm:$0xff]
  %v65 = vld [vmem:[%s1 + $0xc0] sm:$0xff]
  %v66 = vld [vmem:[%s1 + $0xc8] sm:$0xff]
  %v67 = vld [vmem:[%s1 + $0xd0] sm:$0xff]
  %v68 = vld [vmem:[%s1 + $0xd8] sm:$0xff]
  %v69 = vld [vmem:[%s1 + $0xe0] sm:$0xff]
  %v70 = vld [vmem:[%s1 + $0xe8] sm:$0xff]
  %v71 = vld [vmem:[%s1 + $0xf0] sm:$0xff]
  %v72 = vld [vmem:[%s1 + $0xf8] sm:$0xff]
  %v73 = vld [vmem:[%s3] sm:$0xf]
  %v75 = vlaneseq
  %v76 = vshrl.u32 %v75, 7
  %v77 = vsub.s32 0, %v76
  %v78 = vrot.slane %v73, %v77
  %v79 = vlaneseq
  %v80 = vshrl.u32 %v79, 7
  %v81 = vsub.s32 1, %v80
  %v82 = vrot.slane %v73, %v81
  %v83 = vlaneseq
  %v84 = vshrl.u32 %v83, 7
  %v85 = vsub.s32 2, %v84
  %v86 = vrot.slane %v73, %v85
  %v87 = vlaneseq
  %v88 = vshrl.u32 %v87, 7
  %v89 = vsub.s32 3, %v88
  %v90 = vrot.slane %v73, %v89
  %v103 = vunpack.c.l.b16 %v33
  %v104 = vunpack.c.l.b16 %v34
  %v105 = vunpack.c.l.b16 %v35
  %v106 = vunpack.c.l.b16 %v36
  %v107 = vunpack.c.l.b16 %v37
  %v108 = vunpack.c.l.b16 %v38
  %v109 = vunpack.c.l.b16 %v39
  %v110 = vunpack.c.l.b16 %v40
  %v111 = vpack.c.b16 %v104, %v103
  %v112 = vpack.c.b16 %v106, %v105
  %v113 = vpack.c.b16 %v108, %v107
  %v114 = vpack.c.b16 %v110, %v109
  %v151 = vunpack.c.l.b16 %v41
  %v152 = vunpack.c.h.b16 %v41
  %v153 = vunpack.c.l.b16 %v42
  %v154 = vunpack.c.h.b16 %v42
  %v155 = vunpack.c.l.b16 %v43
  %v156 = vunpack.c.h.b16 %v43
  %v157 = vunpack.c.l.b16 %v44
  %v158 = vunpack.c.h.b16 %v44
  %v159 = vunpack.c.l.b16 %v45
  %v160 = vunpack.c.h.b16 %v45
  %v161 = vunpack.c.l.b16 %v46
  %v162 = vunpack.c.h.b16 %v46
  %v163 = vunpack.c.l.b16 %v47
  %v164 = vunpack.c.h.b16 %v47
  %v165 = vunpack.c.l.b16 %v48
  %v166 = vunpack.c.h.b16 %v48
  %v167 = vunpack.c.l.b16 %v49
  %v168 = vunpack.c.h.b16 %v49
  %v169 = vunpack.c.l.b16 %v50
  %v170 = vunpack.c.h.b16 %v50
  %v171 = vunpack.c.l.b16 %v51
  %v172 = vunpack.c.h.b16 %v51
  %v173 = vunpack.c.l.b16 %v52
  %v174 = vunpack.c.h.b16 %v52
  %v175 = vunpack.c.l.b16 %v53
  %v176 = vunpack.c.h.b16 %v53
  %v177 = vunpack.c.l.b16 %v54
  %v178 = vunpack.c.h.b16 %v54
  %v179 = vunpack.c.l.b16 %v55
  %v180 = vunpack.c.h.b16 %v55
  %v181 = vunpack.c.l.b16 %v56
  %v182 = vunpack.c.h.b16 %v56
  %v183 = vunpack.c.l.b16 %v57
  %v184 = vunpack.c.h.b16 %v57
  %v185 = vunpack.c.l.b16 %v58
  %v186 = vunpack.c.h.b16 %v58
  %v187 = vunpack.c.l.b16 %v59
  %v188 = vunpack.c.h.b16 %v59
  %v189 = vunpack.c.l.b16 %v60
  %v190 = vunpack.c.h.b16 %v60
  %v191 = vunpack.c.l.b16 %v61
  %v192 = vunpack.c.h.b16 %v61
  %v193 = vunpack.c.l.b16 %v62
  %v194 = vunpack.c.h.b16 %v62
  %v195 = vunpack.c.l.b16 %v63
  %v196 = vunpack.c.h.b16 %v63
  %v197 = vunpack.c.l.b16 %v64
  %v198 = vunpack.c.h.b16 %v64
  %v199 = vunpack.c.l.b16 %v65
  %v200 = vunpack.c.h.b16 %v65
  %v201 = vunpack.c.l.b16 %v66
  %v202 = vunpack.c.h.b16 %v66
  %v203 = vunpack.c.l.b16 %v67
  %v204 = vunpack.c.h.b16 %v67
  %v205 = vunpack.c.l.b16 %v68
  %v206 = vunpack.c.h.b16 %v68
  %v207 = vunpack.c.l.b16 %v69
  %v208 = vunpack.c.h.b16 %v69
  %v209 = vunpack.c.l.b16 %v70
  %v210 = vunpack.c.h.b16 %v70
  %v211 = vunpack.c.l.b16 %v71
  %v212 = vunpack.c.h.b16 %v71
  %v213 = vunpack.c.l.b16 %v72
  %v214 = vunpack.c.h.b16 %v72
  %v215 = vpack.c.b16 %v155, %v151
  %v216 = vpack.c.b16 %v156, %v152
  %v217 = vpack.c.b16 %v157, %v153
  %v218 = vpack.c.b16 %v158, %v154
  %v219 = vpack.c.b16 %v163, %v159
  %v220 = vpack.c.b16 %v164, %v160
  %v221 = vpack.c.b16 %v165, %v161
  %v222 = vpack.c.b16 %v166, %v162
  %v223 = vpack.c.b16 %v171, %v167
  %v224 = vpack.c.b16 %v172, %v168
  %v225 = vpack.c.b16 %v173, %v169
  %v226 = vpack.c.b16 %v174, %v170
  %v227 = vpack.c.b16 %v179, %v175
  %v228 = vpack.c.b16 %v180, %v176
  %v229 = vpack.c.b16 %v181, %v177
  %v230 = vpack.c.b16 %v182, %v178
  %v231 = vpack.c.b16 %v187, %v183
  %v232 = vpack.c.b16 %v188, %v184
  %v233 = vpack.c.b16 %v189, %v185
  %v234 = vpack.c.b16 %v190, %v186
  %v235 = vpack.c.b16 %v195, %v191
  %v236 = vpack.c.b16 %v196, %v192
  %v237 = vpack.c.b16 %v197, %v193
  %v238 = vpack.c.b16 %v198, %v194
  %v239 = vpack.c.b16 %v203, %v199
  %v240 = vpack.c.b16 %v204, %v200
  %v241 = vpack.c.b16 %v205, %v201
  %v242 = vpack.c.b16 %v206, %v202
  %v243 = vpack.c.b16 %v211, %v207
  %v244 = vpack.c.b16 %v212, %v208
  %v245 = vpack.c.b16 %v213, %v209
  %v246 = vpack.c.b16 %v214, %v210
  %279 = vmatprep.subr.bf16.mxu0 %v216
  %280 = vmatpush1.bf16.msra.mxu0 %v215
  %281 = vmatprep.subr.bf16.mxu0 %v220
  %282 = vmatpush1.bf16.msra.mxu0 %v219
  %283 = vmatprep.subr.bf16.mxu0 %v224
  %284 = vmatpush1.bf16.msra.mxu0 %v223
  %285 = vmatprep.subr.bf16.mxu0 %v228
  %286 = vmatpush1.bf16.msra.mxu0 %v227
  %287 = vmatprep.subr.bf16.mxu0 %v232
  %288 = vmatpush1.bf16.msra.mxu0 %v231
  %289 = vmatprep.subr.bf16.mxu0 %v236
  %290 = vmatpush1.bf16.msra.mxu0 %v235
  %291 = vmatprep.subr.bf16.mxu0 %v240
  %292 = vmatpush1.bf16.msra.mxu0 %v239
  %293 = vmatprep.subr.bf16.mxu0 %v244
  %294 = vmatpush1.bf16.msra.mxu0 %v243
  %295 = vmatprep.subr.bf16.mxu0 0
  %296 = vmatpush1.bf16.msra.mxu0 0
  %297 = vmatprep.subr.bf16.mxu0 0
  %298 = vmatpush1.bf16.msra.mxu0 0
  %299 = vmatprep.subr.bf16.mxu0 0
  %300 = vmatpush1.bf16.msra.mxu0 0
  %301 = vmatprep.subr.bf16.mxu0 0
  %302 = vmatpush1.bf16.msra.mxu0 0
  %303 = vmatprep.subr.bf16.mxu0 0
  %304 = vmatpush1.bf16.msra.mxu0 0
  %305 = vmatprep.subr.bf16.mxu0 0
  %306 = vmatpush1.bf16.msra.mxu0 0
  %307 = vmatprep.subr.bf16.mxu0 0
  %308 = vmatpush1.bf16.msra.mxu0 0
  %309 = vmatprep.subr.bf16.mxu0 0
  %310 = vmatpush1.bf16.msra.mxu0 0
  %311 = vmatprep.mubr.bf16.mxu0 0
  %312 = vmatmul.mubr.bf16.gmra.mrb[0].mxu0 %v111
  %v313 = vpop.f32.mrb[0].mxu0
  %v314 = vadd.f32 %v78, %v313
  %v315 = vpop.f32.mrb[0].mxu0
  %v316 = vadd.f32 %v82, %v315
  %v317 = vpop.f32.mrb[0].mxu0
  %v318 = vadd.f32 %v78, %v317
  %v319 = vpop.f32.mrb[0].mxu0
  %v320 = vadd.f32 %v82, %v319
  %321 = vmatprep.mubr.bf16.mxu0 0
  %322 = vmatmul.mubr.bf16.gmra.mrb[0].mxu0 %v112
  %v323 = vpop.f32.mrb[0].mxu0
  %v324 = vadd.f32 %v78, %v323
  %v325 = vpop.f32.mrb[0].mxu0
  %v326 = vadd.f32 %v82, %v325
  %v327 = vpop.f32.mrb[0].mxu0
  %v328 = vadd.f32 %v78, %v327
  %v329 = vpop.f32.mrb[0].mxu0
  %v330 = vadd.f32 %v82, %v329
  %331 = vmatprep.mubr.bf16.mxu0 0
  %332 = vmatmul.mubr.bf16.gmra.mrb[0].mxu0 %v113
  %v333 = vpop.f32.mrb[0].mxu0
  %v334 = vadd.f32 %v78, %v333
  %v335 = vpop.f32.mrb[0].mxu0
  %v336 = vadd.f32 %v82, %v335
  %v337 = vpop.f32.mrb[0].mxu0
  %v338 = vadd.f32 %v78, %v337
  %v339 = vpop.f32.mrb[0].mxu0
  %v340 = vadd.f32 %v82, %v339
  %341 = vmatprep.mubr.bf16.mxu0 0
  %342 = vmatmul.mubr.bf16.gmra.mrb[0].mxu0 %v114
  %v343 = vpop.f32.mrb[0].mxu0
  %v344 = vadd.f32 %v78, %v343
  %v345 = vpop.f32.mrb[0].mxu0
  %v346 = vadd.f32 %v82, %v345
  %v347 = vpop.f32.mrb[0].mxu0
  %v348 = vadd.f32 %v78, %v347
  %v349 = vpop.f32.mrb[0].mxu0
  %v350 = vadd.f32 %v82, %v349
  %351 = vdwg.mxu0
  %352 = vmatprep.subr.bf16.mxu0 %v218
  %353 = vmatpush1.bf16.msra.mxu0 %v217
  %354 = vmatprep.subr.bf16.mxu0 %v222
  %355 = vmatpush1.bf16.msra.mxu0 %v221
  %356 = vmatprep.subr.bf16.mxu0 %v226
  %357 = vmatpush1.bf16.msra.mxu0 %v225
  %358 = vmatprep.subr.bf16.mxu0 %v230
  %359 = vmatpush1.bf16.msra.mxu0 %v229
  %360 = vmatprep.subr.bf16.mxu0 %v234
  %361 = vmatpush1.bf16.msra.mxu0 %v233
  %362 = vmatprep.subr.bf16.mxu0 %v238
  %363 = vmatpush1.bf16.msra.mxu0 %v237
  %364 = vmatprep.subr.bf16.mxu0 %v242
  %365 = vmatpush1.bf16.msra.mxu0 %v241
  %366 = vmatprep.subr.bf16.mxu0 %v246
  %367 = vmatpush1.bf16.msra.mxu0 %v245
  %368 = vmatprep.subr.bf16.mxu0 0
  %369 = vmatpush1.bf16.msra.mxu0 0
  %370 = vmatprep.subr.bf16.mxu0 0
  %371 = vmatpush1.bf16.msra.mxu0 0
  %372 = vmatprep.subr.bf16.mxu0 0
  %373 = vmatpush1.bf16.msra.mxu0 0
  %374 = vmatprep.subr.bf16.mxu0 0
  %375 = vmatpush1.bf16.msra.mxu0 0
  %376 = vmatprep.subr.bf16.mxu0 0
  %377 = vmatpush1.bf16.msra.mxu0 0
  %378 = vmatprep.subr.bf16.mxu0 0
  %379 = vmatpush1.bf16.msra.mxu0 0
  %380 = vmatprep.subr.bf16.mxu0 0
  %381 = vmatpush1.bf16.msra.mxu0 0
  %382 = vmatprep.subr.bf16.mxu0 0
  %383 = vmatpush1.bf16.msra.mxu0 0
  %384 = vmatprep.mubr.bf16.mxu0 0
  %385 = vmatmul.mubr.bf16.gmra.mrb[0].mxu0 %v111
  %v386 = vpop.f32.mrb[0].mxu0
  %v387 = vadd.f32 %v86, %v386
  %v388 = vpop.f32.mrb[0].mxu0
  %v389 = vadd.f32 %v90, %v388
  %v390 = vpop.f32.mrb[0].mxu0
  %v391 = vadd.f32 %v86, %v390
  %v392 = vpop.f32.mrb[0].mxu0
  %v393 = vadd.f32 %v90, %v392
  %394 = vmatprep.mubr.bf16.mxu0 0
  %395 = vmatmul.mubr.bf16.gmra.mrb[0].mxu0 %v112
  %v396 = vpop.f32.mrb[0].mxu0
  %v397 = vadd.f32 %v86, %v396
  %v398 = vpop.f32.mrb[0].mxu0
  %v399 = vadd.f32 %v90, %v398
  %v400 = vpop.f32.mrb[0].mxu0
  %v401 = vadd.f32 %v86, %v400
  %v402 = vpop.f32.mrb[0].mxu0
  %v403 = vadd.f32 %v90, %v402
  %404 = vmatprep.mubr.bf16.mxu0 0
  %405 = vmatmul.mubr.bf16.gmra.mrb[0].mxu0 %v113
  %v406 = vpop.f32.mrb[0].mxu0
  %v407 = vadd.f32 %v86, %v406
  %v408 = vpop.f32.mrb[0].mxu0
  %v409 = vadd.f32 %v90, %v408
  %v410 = vpop.f32.mrb[0].mxu0
  %v411 = vadd.f32 %v86, %v410
  %v412 = vpop.f32.mrb[0].mxu0
  %v413 = vadd.f32 %v90, %v412
  %414 = vmatprep.mubr.bf16.mxu0 0
  %415 = vmatmul.mubr.bf16.gmra.mrb[0].mxu0 %v114
  %v416 = vpop.f32.mrb[0].mxu0
  %v417 = vadd.f32 %v86, %v416
  %v418 = vpop.f32.mrb[0].mxu0
  %v419 = vadd.f32 %v90, %v418
  %v420 = vpop.f32.mrb[0].mxu0
  %v421 = vadd.f32 %v86, %v420
  %v422 = vpop.f32.mrb[0].mxu0
  %v423 = vadd.f32 %v90, %v422
  %424 = vdwg.mxu0
  %425 = vst [vmem:[#allocation2] sm:$0xff] %v314
  %426 = vst [vmem:[#allocation2 + $0x8] sm:$0xff] %v316
  %427 = vst [vmem:[#allocation2 + $0x10] sm:$0xff] %v387
  %428 = vst [vmem:[#allocation2 + $0x18] sm:$0xff] %v389
  %429 = vst [vmem:[#allocation2 + $0x20] sm:$0xff] %v318
  %430 = vst [vmem:[#allocation2 + $0x28] sm:$0xff] %v320
  %431 = vst [vmem:[#allocation2 + $0x30] sm:$0xff] %v391
  %432 = vst [vmem:[#allocation2 + $0x38] sm:$0xff] %v393
  %433 = vst [vmem:[#allocation2 + $0x40] sm:$0xff] %v324
  %434 = vst [vmem:[#allocation2 + $0x48] sm:$0xff] %v326
  %435 = vst [vmem:[#allocation2 + $0x50] sm:$0xff] %v397
  %436 = vst [vmem:[#allocation2 + $0x58] sm:$0xff] %v399
  %437 = vst [vmem:[#allocation2 + $0x60] sm:$0xff] %v328
  %438 = vst [vmem:[#allocation2 + $0x68] sm:$0xff] %v330
  %439 = vst [vmem:[#allocation2 + $0x70] sm:$0xff] %v401
  %440 = vst [vmem:[#allocation2 + $0x78] sm:$0xff] %v403
  %441 = vst [vmem:[#allocation2 + $0x80] sm:$0xff] %v334
  %442 = vst [vmem:[#allocation2 + $0x88] sm:$0xff] %v336
  %443 = vst [vmem:[#allocation2 + $0x90] sm:$0xff] %v407
  %444 = vst [vmem:[#allocation2 + $0x98] sm:$0xff] %v409
  %445 = vst [vmem:[#allocation2 + $0xa0] sm:$0xff] %v338
  %446 = vst [vmem:[#allocation2 + $0xa8] sm:$0xff] %v340
  %447 = vst [vmem:[#allocation2 + $0xb0] sm:$0xff] %v411
  %448 = vst [vmem:[#allocation2 + $0xb8] sm:$0xff] %v413
  %449 = vst [vmem:[#allocation2 + $0xc0] sm:$0xff] %v344
  %450 = vst [vmem:[#allocation2 + $0xc8] sm:$0xff] %v346
  %451 = vst [vmem:[#allocation2 + $0xd0] sm:$0xff] %v417
  %452 = vst [vmem:[#allocation2 + $0xd8] sm:$0xff] %v419
  %453 = vst [vmem:[#allocation2 + $0xe0] sm:$0xff] %v348
  %454 = vst [vmem:[#allocation2 + $0xe8] sm:$0xff] %v350
  %455 = vst [vmem:[#allocation2 + $0xf0] sm:$0xff] %v421
  %456 = vst [vmem:[#allocation2 + $0xf8] sm:$0xff] %v423
  %s457 = smul.u32 0, 4
  %s458 = smul.addr %s457, 8
  %s459 = scalar_lea.vmem [#allocation2], %s458
  %v460 = vld [vmem:[%s459] sm:$0xff]
  %v461 = vld [vmem:[%s459 + $0x8] sm:$0xff]
  %v462 = vld [vmem:[%s459 + $0x10] sm:$0xff]
  %v463 = vld [vmem:[%s459 + $0x18] sm:$0xff]
  %v464 = vld [vmem:[%s2] sm:$0xff]
  %v465 = vld [vmem:[%s2 + $0x8] sm:$0xff]
  %v466 = vld [vmem:[%s2 + $0x10] sm:$0xff]
  %v467 = vld [vmem:[%s2 + $0x18] sm:$0xff]
  %v468 = vld [vmem:[%s2 + $0x20] sm:$0xff]
  %v469 = vld [vmem:[%s2 + $0x28] sm:$0xff]
  %v470 = vld [vmem:[%s2 + $0x30] sm:$0xff]
  %v471 = vld [vmem:[%s2 + $0x38] sm:$0xff]
  %v472 = vld [vmem:[%s2 + $0x40] sm:$0xff]
  %v473 = vld [vmem:[%s2 + $0x48] sm:$0xff]
  %v474 = vld [vmem:[%s2 + $0x50] sm:$0xff]
  %v475 = vld [vmem:[%s2 + $0x58] sm:$0xff]
  %v476 = vld [vmem:[%s2 + $0x60] sm:$0xff]
  %v477 = vld [vmem:[%s2 + $0x68] sm:$0xff]
  %v478 = vld [vmem:[%s2 + $0x70] sm:$0xff]
  %v479 = vld [vmem:[%s2 + $0x78] sm:$0xff]
  %v480 = vld [vmem:[%s2 + $0x80] sm:$0xff]
  %v481 = vld [vmem:[%s2 + $0x88] sm:$0xff]
  %v482 = vld [vmem:[%s2 + $0x90] sm:$0xff]
  %v483 = vld [vmem:[%s2 + $0x98] sm:$0xff]
  %v484 = vld [vmem:[%s2 + $0xa0] sm:$0xff]
  %v485 = vld [vmem:[%s2 + $0xa8] sm:$0xff]
  %v486 = vld [vmem:[%s2 + $0xb0] sm:$0xff]
  %v487 = vld [vmem:[%s2 + $0xb8] sm:$0xff]
  %v488 = vld [vmem:[%s2 + $0xc0] sm:$0xff]
  %v489 = vld [vmem:[%s2 + $0xc8] sm:$0xff]
  %v490 = vld [vmem:[%s2 + $0xd0] sm:$0xff]
  %v491 = vld [vmem:[%s2 + $0xd8] sm:$0xff]
  %v492 = vld [vmem:[%s2 + $0xe0] sm:$0xff]
  %v493 = vld [vmem:[%s2 + $0xe8] sm:$0xff]
  %v494 = vld [vmem:[%s2 + $0xf0] sm:$0xff]
  %v495 = vld [vmem:[%s2 + $0xf8] sm:$0xff]
  %v528 = vunpack.c.l.b16 %v464
  %v529 = vunpack.c.h.b16 %v464
  %v530 = vunpack.c.l.b16 %v465
  %v531 = vunpack.c.h.b16 %v465
  %v532 = vunpack.c.l.b16 %v466
  %v533 = vunpack.c.h.b16 %v466
  %v534 = vunpack.c.l.b16 %v467
  %v535 = vunpack.c.h.b16 %v467
  %v536 = vunpack.c.l.b16 %v468
  %v537 = vunpack.c.h.b16 %v468
  %v538 = vunpack.c.l.b16 %v469
  %v539 = vunpack.c.h.b16 %v469
  %v540 = vunpack.c.l.b16 %v470
  %v541 = vunpack.c.h.b16 %v470
  %v542 = vunpack.c.l.b16 %v471
  %v543 = vunpack.c.h.b16 %v471
  %v544 = vunpack.c.l.b16 %v472
  %v545 = vunpack.c.h.b16 %v472
  %v546 = vunpack.c.l.b16 %v473
  %v547 = vunpack.c.h.b16 %v473
  %v548 = vunpack.c.l.b16 %v474
  %v549 = vunpack.c.h.b16 %v474
  %v550 = vunpack.c.l.b16 %v475
  %v551 = vunpack.c.h.b16 %v475
  %v552 = vunpack.c.l.b16 %v476
  %v553 = vunpack.c.h.b16 %v476
  %v554 = vunpack.c.l.b16 %v477
  %v555 = vunpack.c.h.b16 %v477
  %v556 = vunpack.c.l.b16 %v478
  %v557 = vunpack.c.h.b16 %v478
  %v558 = vunpack.c.l.b16 %v479
  %v559 = vunpack.c.h.b16 %v479
  %v560 = vunpack.c.l.b16 %v480
  %v561 = vunpack.c.h.b16 %v480
  %v562 = vunpack.c.l.b16 %v481
  %v563 = vunpack.c.h.b16 %v481
  %v564 = vunpack.c.l.b16 %v482
  %v565 = vunpack.c.h.b16 %v482
  %v566 = vunpack.c.l.b16 %v483
  %v567 = vunpack.c.h.b16 %v483
  %v568 = vunpack.c.l.b16 %v484
  %v569 = vunpack.c.h.b16 %v484
  %v570 = vunpack.c.l.b16 %v485
  %v571 = vunpack.c.h.b16 %v485
  %v572 = vunpack.c.l.b16 %v486
  %v573 = vunpack.c.h.b16 %v486
  %v574 = vunpack.c.l.b16 %v487
  %v575 = vunpack.c.h.b16 %v487
  %v576 = vunpack.c.l.b16 %v488
  %v577 = vunpack.c.h.b16 %v488
  %v578 = vunpack.c.l.b16 %v489
  %v579 = vunpack.c.h.b16 %v489
  %v580 = vunpack.c.l.b16 %v490
  %v581 = vunpack.c.h.b16 %v490
  %v582 = vunpack.c.l.b16 %v491
  %v583 = vunpack.c.h.b16 %v491
  %v584 = vunpack.c.l.b16 %v492
  %v585 = vunpack.c.h.b16 %v492
  %v586 = vunpack.c.l.b16 %v493
  %v587 = vunpack.c.h.b16 %v493
  %v588 = vunpack.c.l.b16 %v494
  %v589 = vunpack.c.h.b16 %v494
  %v590 = vunpack.c.l.b16 %v495
  %v591 = vunpack.c.h.b16 %v495
  %v592 = vpack.c.b16 %v532, %v528
  %v593 = vpack.c.b16 %v533, %v529
  %v594 = vpack.c.b16 %v534, %v530
  %v595 = vpack.c.b16 %v535, %v531
  %v596 = vpack.c.b16 %v540, %v536
  %v597 = vpack.c.b16 %v541, %v537
  %v598 = vpack.c.b16 %v542, %v538
  %v599 = vpack.c.b16 %v543, %v539
  %v600 = vpack.c.b16 %v548, %v544
  %v601 = vpack.c.b16 %v549, %v545
  %v602 = vpack.c.b16 %v550, %v546
  %v603 = vpack.c.b16 %v551, %v547
  %v604 = vpack.c.b16 %v556, %v552
  %v605 = vpack.c.b16 %v557, %v553
  %v606 = vpack.c.b16 %v558, %v554
  %v607 = vpack.c.b16 %v559, %v555
  %v608 = vpack.c.b16 %v564, %v560
  %v609 = vpack.c.b16 %v565, %v561
  %v610 = vpack.c.b16 %v566, %v562
  %v611 = vpack.c.b16 %v567, %v563
  %v612 = vpack.c.b16 %v572, %v568
  %v613 = vpack.c.b16 %v573, %v569
  %v614 = vpack.c.b16 %v574, %v570
  %v615 = vpack.c.b16 %v575, %v571
  %v616 = vpack.c.b16 %v580, %v576
  %v617 = vpack.c.b16 %v581, %v577
  %v618 = vpack.c.b16 %v582, %v578
  %v619 = vpack.c.b16 %v583, %v579
  %v620 = vpack.c.b16 %v588, %v584
  %v621 = vpack.c.b16 %v589, %v585
  %v622 = vpack.c.b16 %v590, %v586
  %v623 = vpack.c.b16 %v591, %v587
  %656 = vmatprep.subr.bf16.mxu0 %v593
  %657 = vmatpush1.bf16.msra.mxu0 %v592
  %658 = vmatprep.subr.bf16.mxu0 %v597
  %659 = vmatpush1.bf16.msra.mxu0 %v596
  %660 = vmatprep.subr.bf16.mxu0 %v601
  %661 = vmatpush1.bf16.msra.mxu0 %v600
  %662 = vmatprep.subr.bf16.mxu0 %v605
  %663 = vmatpush1.bf16.msra.mxu0 %v604
  %664 = vmatprep.subr.bf16.mxu0 %v609
  %665 = vmatpush1.bf16.msra.mxu0 %v608
  %666 = vmatprep.subr.bf16.mxu0 %v613
  %667 = vmatpush1.bf16.msra.mxu0 %v612
  %668 = vmatprep.subr.bf16.mxu0 %v617
  %669 = vmatpush1.bf16.msra.mxu0 %v616
  %670 = vmatprep.subr.bf16.mxu0 %v621
  %671 = vmatpush1.bf16.msra.mxu0 %v620
  %672 = vmatprep.subr.bf16.mxu0 0
  %673 = vmatpush1.bf16.msra.mxu0 0
  %674 = vmatprep.subr.bf16.mxu0 0
  %675 = vmatpush1.bf16.msra.mxu0 0
  %676 = vmatprep.subr.bf16.mxu0 0
  %677 = vmatpush1.bf16.msra.mxu0 0
  %678 = vmatprep.subr.bf16.mxu0 0
  %679 = vmatpush1.bf16.msra.mxu0 0
  %680 = vmatprep.subr.bf16.mxu0 0
  %681 = vmatpush1.bf16.msra.mxu0 0
  %682 = vmatprep.subr.bf16.mxu0 0
  %683 = vmatpush1.bf16.msra.mxu0 0
  %684 = vmatprep.subr.bf16.mxu0 0
  %685 = vmatpush1.bf16.msra.mxu0 0
  %686 = vmatprep.subr.bf16.mxu0 0
  %687 = vmatpush1.bf16.msra.mxu0 0
  %688 = vmatprep.mubr.bf16.mxu0 0
  %689 = vmatmul.mubr.bf16.gmra.mrb[0].mxu0 0
  %v690 = vpop.f32.mrb[0].mxu0
  %v691 = vadd.f32 0.0, %v690
  %v692 = vpop.f32.mrb[0].mxu0
  %v693 = vadd.f32 0.0, %v692
  %v694 = vpop.f32.mrb[0].mxu0
  %v695 = vpop.f32.mrb[0].mxu0
  %696 = vdwg.mxu0
  %697 = vmatprep.subr.bf16.mxu0 %v595
  %698 = vmatpush1.bf16.msra.mxu0 %v594
  %699 = vmatprep.subr.bf16.mxu0 %v599
  %700 = vmatpush1.bf16.msra.mxu0 %v598
  %701 = vmatprep.subr.bf16.mxu0 %v603
  %702 = vmatpush1.bf16.msra.mxu0 %v602
  %703 = vmatprep.subr.bf16.mxu0 %v607
  %704 = vmatpush1.bf16.msra.mxu0 %v606
  %705 = vmatprep.subr.bf16.mxu0 %v611
  %706 = vmatpush1.bf16.msra.mxu0 %v610
  %707 = vmatprep.subr.bf16.mxu0 %v615
  %708 = vmatpush1.bf16.msra.mxu0 %v614
  %709 = vmatprep.subr.bf16.mxu0 %v619
  %710 = vmatpush1.bf16.msra.mxu0 %v618
  %711 = vmatprep.subr.bf16.mxu0 %v623
  %712 = vmatpush1.bf16.msra.mxu0 %v622
  %713 = vmatprep.subr.bf16.mxu0 0
  %714 = vmatpush1.bf16.msra.mxu0 0
  %715 = vmatprep.subr.bf16.mxu0 0
  %716 = vmatpush1.bf16.msra.mxu0 0
  %717 = vmatprep.subr.bf16.mxu0 0
  %718 = vmatpush1.bf16.msra.mxu0 0
  %719 = vmatprep.subr.bf16.mxu0 0
  %720 = vmatpush1.bf16.msra.mxu0 0
  %721 = vmatprep.subr.bf16.mxu0 0
  %722 = vmatpush1.bf16.msra.mxu0 0
  %723 = vmatprep.subr.bf16.mxu0 0
  %724 = vmatpush1.bf16.msra.mxu0 0
  %725 = vmatprep.subr.bf16.mxu0 0
  %726 = vmatpush1.bf16.msra.mxu0 0
  %727 = vmatprep.subr.bf16.mxu0 0
  %728 = vmatpush1.bf16.msra.mxu0 0
  %729 = vmatprep.mubr.bf16.mxu0 0
  %730 = vmatmul.mubr.bf16.gmra.mrb[0].mxu0 0
  %v731 = vpop.f32.mrb[0].mxu0
  %v732 = vadd.f32 0.0, %v731
  %v733 = vpop.f32.mrb[0].mxu0
  %v734 = vadd.f32 0.0, %v733
  %v735 = vpop.f32.mrb[0].mxu0
  %v736 = vpop.f32.mrb[0].mxu0
  %737 = vdwg.mxu0
  %v738 = vadd.f32 %v460, %v691
  %v739 = vadd.f32 %v461, %v693
  %v740 = vadd.f32 %v462, %v732
  %v741 = vadd.f32 %v463, %v734
  %v742 = vxor.u32 %v738, 2147483648
  %v743 = vxor.u32 %v739, 2147483648
  %v744 = vxor.u32 %v740, 2147483648
  %v745 = vmul.f32 %v742, 1.442695
  %v746 = vpow.pop %v745
  %v747 = vmul.f32 %v743, 1.442695
  %v748 = vpow.pop %v747
  %v749 = vmul.f32 %v744, 1.442695
  %v750 = vpow.pop %v749
  %v751 = vadd.f32 %v746, 1.0
  %v752 = vadd.f32 %v748, 1.0
  %v753 = vadd.f32 %v750, 1.0
  %v754 = vrcp.pop %v751
  %v755 = vmul.f32 1.0, %v754
  %v756 = vrcp.pop %v752
  %v757 = vmul.f32 1.0, %v756
  %v758 = vrcp.pop %v753
  %v759 = vmul.f32 1.0, %v758
  %v760 = vtanh.pop %v741
  %v761 = vmul.f32 %v757, 0.0
  %v762 = vmul.f32 %v755, %v760
  %v763 = vadd.f32 %v761, %v762
  %v764 = vtanh.pop %v763
  %v765 = vmul.f32 %v759, %v764
  %766 = vst [vmem:[#allocation3] sm:$0xff] %v765
  %s767 = smul.u32 1, 4
  %s768 = smul.addr %s767, 8
  %s769 = scalar_lea.vmem [#allocation2], %s768
  %v770 = vld [vmem:[%s769] sm:$0xff]
  %v771 = vld [vmem:[%s769 + $0x8] sm:$0xff]
  %v772 = vld [vmem:[%s769 + $0x10] sm:$0xff]
  %v773 = vld [vmem:[%s769 + $0x18] sm:$0xff]
  %v774 = vpack.c.bf16 %v765, %v765
  %v775 = vld [vmem:[%s2] sm:$0xff]
  %v776 = vld [vmem:[%s2 + $0x8] sm:$0xff]
  %v777 = vld [vmem:[%s2 + $0x10] sm:$0xff]
  %v778 = vld [vmem:[%s2 + $0x18] sm:$0xff]
  %v779 = vld [vmem:[%s2 + $0x20] sm:$0xff]
  %v780 = vld [vmem:[%s2 + $0x28] sm:$0xff]
  %v781 = vld [vmem:[%s2 + $0x30] sm:$0xff]
  %v782 = vld [vmem:[%s2 + $0x38] sm:$0xff]
  %v783 = vld [vmem:[%s2 + $0x40] sm:$0xff]
  %v784 = vld [vmem:[%s2 + $0x48] sm:$0xff]
  %v785 = vld [vmem:[%s2 + $0x50] sm:$0xff]
  %v786 = vld [vmem:[%s2 + $0x58] sm:$0xff]
  %v787 = vld [vmem:[%s2 + $0x60] sm:$0xff]
  %v788 = vld [vmem:[%s2 + $0x68] sm:$0xff]
  %v789 = vld [vmem:[%s2 + $0x70] sm:$0xff]
  %v790 = vld [vmem:[%s2 + $0x78] sm:$0xff]
  %v791 = vld [vmem:[%s2 + $0x80] sm:$0xff]
  %v792 = vld [vmem:[%s2 + $0x88] sm:$0xff]
  %v793 = vld [vmem:[%s2 + $0x90] sm:$0xff]
  %v794 = vld [vmem:[%s2 + $0x98] sm:$0xff]
  %v795 = vld [vmem:[%s2 + $0xa0] sm:$0xff]
  %v796 = vld [vmem:[%s2 + $0xa8] sm:$0xff]
  %v797 = vld [vmem:[%s2 + $0xb0] sm:$0xff]
  %v798 = vld [vmem:[%s2 + $0xb8] sm:$0xff]
  %v799 = vld [vmem:[%s2 + $0xc0] sm:$0xff]
  %v800 = vld [vmem:[%s2 + $0xc8] sm:$0xff]
  %v801 = vld [vmem:[%s2 + $0xd0] sm:$0xff]
  %v802 = vld [vmem:[%s2 + $0xd8] sm:$0xff]
  %v803 = vld [vmem:[%s2 + $0xe0] sm:$0xff]
  %v804 = vld [vmem:[%s2 + $0xe8] sm:$0xff]
  %v805 = vld [vmem:[%s2 + $0xf0] sm:$0xff]
  %v806 = vld [vmem:[%s2 + $0xf8] sm:$0xff]
  %v839 = vunpack.c.l.b16 %v775
  %v840 = vunpack.c.h.b16 %v775
  %v841 = vunpack.c.l.b16 %v776
  %v842 = vunpack.c.h.b16 %v776
  %v843 = vunpack.c.l.b16 %v777
  %v844 = vunpack.c.h.b16 %v777
  %v845 = vunpack.c.l.b16 %v778
  %v846 = vunpack.c.h.b16 %v778
  %v847 = vunpack.c.l.b16 %v779
  %v848 = vunpack.c.h.b16 %v779
  %v849 = vunpack.c.l.b16 %v780
  %v850 = vunpack.c.h.b16 %v780
  %v851 = vunpack.c.l.b16 %v781
  %v852 = vunpack.c.h.b16 %v781
  %v853 = vunpack.c.l.b16 %v782
  %v854 = vunpack.c.h.b16 %v782
  %v855 = vunpack.c.l.b16 %v783
  %v856 = vunpack.c.h.b16 %v783
  %v857 = vunpack.c.l.b16 %v784
  %v858 = vunpack.c.h.b16 %v784
  %v859 = vunpack.c.l.b16 %v785
  %v860 = vunpack.c.h.b16 %v785
  %v861 = vunpack.c.l.b16 %v786
  %v862 = vunpack.c.h.b16 %v786
  %v863 = vunpack.c.l.b16 %v787
  %v864 = vunpack.c.h.b16 %v787
  %v865 = vunpack.c.l.b16 %v788
  %v866 = vunpack.c.h.b16 %v788
  %v867 = vunpack.c.l.b16 %v789
  %v868 = vunpack.c.h.b16 %v789
  %v869 = vunpack.c.l.b16 %v790
  %v870 = vunpack.c.h.b16 %v790
  %v871 = vunpack.c.l.b16 %v791
  %v872 = vunpack.c.h.b16 %v791
  %v873 = vunpack.c.l.b16 %v792
  %v874 = vunpack.c.h.b16 %v792
  %v875 = vunpack.c.l.b16 %v793
  %v876 = vunpack.c.h.b16 %v793
  %v877 = vunpack.c.l.b16 %v794
  %v878 = vunpack.c.h.b16 %v794
  %v879 = vunpack.c.l.b16 %v795
  %v880 = vunpack.c.h.b16 %v795
  %v881 = vunpack.c.l.b16 %v796
  %v882 = vunpack.c.h.b16 %v796
  %v883 = vunpack.c.l.b16 %v797
  %v884 = vunpack.c.h.b16 %v797
  %v885 = vunpack.c.l.b16 %v798
  %v886 = vunpack.c.h.b16 %v798
  %v887 = vunpack.c.l.b16 %v799
  %v888 = vunpack.c.h.b16 %v799
  %v889 = vunpack.c.l.b16 %v800
  %v890 = vunpack.c.h.b16 %v800
  %v891 = vunpack.c.l.b16 %v801
  %v892 = vunpack.c.h.b16 %v801
  %v893 = vunpack.c.l.b16 %v802
  %v894 = vunpack.c.h.b16 %v802
  %v895 = vunpack.c.l.b16 %v803
  %v896 = vunpack.c.h.b16 %v803
  %v897 = vunpack.c.l.b16 %v804
  %v898 = vunpack.c.h.b16 %v804
  %v899 = vunpack.c.l.b16 %v805
  %v900 = vunpack.c.h.b16 %v805
  %v901 = vunpack.c.l.b16 %v806
  %v902 = vunpack.c.h.b16 %v806
  %v903 = vpack.c.b16 %v843, %v839
  %v904 = vpack.c.b16 %v844, %v840
  %v905 = vpack.c.b16 %v845, %v841
  %v906 = vpack.c.b16 %v846, %v842
  %v907 = vpack.c.b16 %v851, %v847
  %v908 = vpack.c.b16 %v852, %v848
  %v909 = vpack.c.b16 %v853, %v849
  %v910 = vpack.c.b16 %v854, %v850
  %v911 = vpack.c.b16 %v859, %v855
  %v912 = vpack.c.b16 %v860, %v856
  %v913 = vpack.c.b16 %v861, %v857
  %v914 = vpack.c.b16 %v862, %v858
  %v915 = vpack.c.b16 %v867, %v863
  %v916 = vpack.c.b16 %v868, %v864
  %v917 = vpack.c.b16 %v869, %v865
  %v918 = vpack.c.b16 %v870, %v866
  %v919 = vpack.c.b16 %v875, %v871
  %v920 = vpack.c.b16 %v876, %v872
  %v921 = vpack.c.b16 %v877, %v873
  %v922 = vpack.c.b16 %v878, %v874
  %v923 = vpack.c.b16 %v883, %v879
  %v924 = vpack.c.b16 %v884, %v880
  %v925 = vpack.c.b16 %v885, %v881
  %v926 = vpack.c.b16 %v886, %v882
  %v927 = vpack.c.b16 %v891, %v887
  %v928 = vpack.c.b16 %v892, %v888
  %v929 = vpack.c.b16 %v893, %v889
  %v930 = vpack.c.b16 %v894, %v890
  %v931 = vpack.c.b16 %v899, %v895
  %v932 = vpack.c.b16 %v900, %v896
  %v933 = vpack.c.b16 %v901, %v897
  %v934 = vpack.c.b16 %v902, %v898
  %967 = vmatprep.subr.bf16.mxu0 %v904
  %968 = vmatpush1.bf16.msra.mxu0 %v903
  %969 = vmatprep.subr.bf16.mxu0 %v908
  %970 = vmatpush1.bf16.msra.mxu0 %v907
  %971 = vmatprep.subr.bf16.mxu0 %v912
  %972 = vmatpush1.bf16.msra.mxu0 %v911
  %973 = vmatprep.subr.bf16.mxu0 %v916
  %974 = vmatpush1.bf16.msra.mxu0 %v915
  %975 = vmatprep.subr.bf16.mxu0 %v920
  %976 = vmatpush1.bf16.msra.mxu0 %v919
  %977 = vmatprep.subr.bf16.mxu0 %v924
  %978 = vmatpush1.bf16.msra.mxu0 %v923
  %979 = vmatprep.subr.bf16.mxu0 %v928
  %980 = vmatpush1.bf16.msra.mxu0 %v927
  %981 = vmatprep.subr.bf16.mxu0 %v932
  %982 = vmatpush1.bf16.msra.mxu0 %v931
  %983 = vmatprep.subr.bf16.mxu0 0
  %984 = vmatpush1.bf16.msra.mxu0 0
  %985 = vmatprep.subr.bf16.mxu0 0
  %986 = vmatpush1.bf16.msra.mxu0 0
  %987 = vmatprep.subr.bf16.mxu0 0
  %988 = vmatpush1.bf16.msra.mxu0 0
  %989 = vmatprep.subr.bf16.mxu0 0
  %990 = vmatpush1.bf16.msra.mxu0 0
  %991 = vmatprep.subr.bf16.mxu0 0
  %992 = vmatpush1.bf16.msra.mxu0 0
  %993 = vmatprep.subr.bf16.mxu0 0
  %994 = vmatpush1.bf16.msra.mxu0 0
  %995 = vmatprep.subr.bf16.mxu0 0
  %996 = vmatpush1.bf16.msra.mxu0 0
  %997 = vmatprep.subr.bf16.mxu0 0
  %998 = vmatpush1.bf16.msra.mxu0 0
  %999 = vmatprep.mubr.bf16.mxu0 0
  %1000 = vmatmul.mubr.bf16.gmra.mrb[0].mxu0 %v774
  %v1001 = vpop.f32.mrb[0].mxu0
  %v1002 = vadd.f32 0.0, %v1001
  %v1003 = vpop.f32.mrb[0].mxu0
  %v1004 = vadd.f32 0.0, %v1003
  %v1005 = vpop.f32.mrb[0].mxu0
  %v1006 = vpop.f32.mrb[0].mxu0
  %1007 = vdwg.mxu0
  %1008 = vmatprep.subr.bf16.mxu0 %v906
  %1009 = vmatpush1.bf16.msra.mxu0 %v905
  %1010 = vmatprep.subr.bf16.mxu0 %v910
  %1011 = vmatpush1.bf16.msra.mxu0 %v909
  %1012 = vmatprep.subr.bf16.mxu0 %v914
  %1013 = vmatpush1.bf16.msra.mxu0 %v913
  %1014 = vmatprep.subr.bf16.mxu0 %v918
  %1015 = vmatpush1.bf16.msra.mxu0 %v917
  %1016 = vmatprep.subr.bf16.mxu0 %v922
  %1017 = vmatpush1.bf16.msra.mxu0 %v921
  %1018 = vmatprep.subr.bf16.mxu0 %v926
  %1019 = vmatpush1.bf16.msra.mxu0 %v925
  %1020 = vmatprep.subr.bf16.mxu0 %v930
  %1021 = vmatpush1.bf16.msra.mxu0 %v929
  %1022 = vmatprep.subr.bf16.mxu0 %v934
  %1023 = vmatpush1.bf16.msra.mxu0 %v933
  %1024 = vmatprep.subr.bf16.mxu0 0
  %1025 = vmatpush1.bf16.msra.mxu0 0
  %1026 = vmatprep.subr.bf16.mxu0 0
  %1027 = vmatpush1.bf16.msra.mxu0 0
  %1028 = vmatprep.subr.bf16.mxu0 0
  %1029 = vmatpush1.bf16.msra.mxu0 0
  %1030 = vmatprep.subr.bf16.mxu0 0
  %1031 = vmatpush1.bf16.msra.mxu0 0
  %1032 = vmatprep.subr.bf16.mxu0 0
  %1033 = vmatpush1.bf16.msra.mxu0 0
  %1034 = vmatprep.subr.bf16.mxu0 0
  %1035 = vmatpush1.bf16.msra.mxu0 0
  %1036 = vmatprep.subr.bf16.mxu0 0
  %1037 = vmatpush1.bf16.msra.mxu0 0
  %1038 = vmatprep.subr.bf16.mxu0 0
  %1039 = vmatpush1.bf16.msra.mxu0 0
  %1040 = vmatprep.mubr.bf16.mxu0 0
  %1041 = vmatmul.mubr.bf16.gmra.mrb[0].mxu0 %v774
  %v1042 = vpop.f32.mrb[0].mxu0
  %v1043 = vadd.f32 0.0, %v1042
  %v1044 = vpop.f32.mrb[0].mxu0
  %v1045 = vadd.f32 0.0, %v1044
  %v1046 = vpop.f32.mrb[0].mxu0
  %v1047 = vpop.f32.mrb[0].mxu0
  %1048 = vdwg.mxu0
  %v1049 = vadd.f32 %v770, %v1002
  %v1050 = vadd.f32 %v771, %v1004
  %v1051 = vadd.f32 %v772, %v1043
  %v1052 = vadd.f32 %v773, %v1045
  %v1053 = vxor.u32 %v1049, 2147483648
  %v1054 = vxor.u32 %v1050, 2147483648
  %v1055 = vxor.u32 %v1051, 2147483648
  %v1056 = vmul.f32 %v1053, 1.442695
  %v1057 = vpow.pop %v1056
  %v1058 = vmul.f32 %v1054, 1.442695
  %v1059 = vpow.pop %v1058
  %v1060 = vmul.f32 %v1055, 1.442695
  %v1061 = vpow.pop %v1060
  %v1062 = vadd.f32 %v1057, 1.0
  %v1063 = vadd.f32 %v1059, 1.0
  %v1064 = vadd.f32 %v1061, 1.0
  %v1065 = vrcp.pop %v1062
  %v1066 = vmul.f32 1.0, %v1065
  %v1067 = vrcp.pop %v1063
  %v1068 = vmul.f32 1.0, %v1067
  %v1069 = vrcp.pop %v1064
  %v1070 = vmul.f32 1.0, %v1069
  %v1071 = vtanh.pop %v1052
  %v1072 = vmul.f32 %v1068, %v763
  %v1073 = vmul.f32 %v1066, %v1071
  %v1074 = vadd.f32 %v1072, %v1073
  %v1075 = vtanh.pop %v1074
  %v1076 = vmul.f32 %v1070, %v1075
  %s1077 = scalar_lea.vmem [#allocation3], 8
  %1078 = vst [vmem:[%s1077] sm:$0xff] %v1076
  %s1079 = smul.u32 2, 4
  %s1080 = smul.addr %s1079, 8
  %s1081 = scalar_lea.vmem [#allocation2], %s1080
  %v1082 = vld [vmem:[%s1081] sm:$0xff]
  %v1083 = vld [vmem:[%s1081 + $0x8] sm:$0xff]
  %v1084 = vld [vmem:[%s1081 + $0x10] sm:$0xff]
  %v1085 = vld [vmem:[%s1081 + $0x18] sm:$0xff]
  %v1086 = vpack.c.bf16 %v1076, %v1076
  %v1087 = vld [vmem:[%s2] sm:$0xff]
  %v1088 = vld [vmem:[%s2 + $0x8] sm:$0xff]
  %v1089 = vld [vmem:[%s2 + $0x10] sm:$0xff]
  %v1090 = vld [vmem:[%s2 + $0x18] sm:$0xff]
  %v1091 = vld [vmem:[%s2 + $0x20] sm:$0xff]
  %v1092 = vld [vmem:[%s2 + $0x28] sm:$0xff]
  %v1093 = vld [vmem:[%s2 + $0x30] sm:$0xff]
  %v1094 = vld [vmem:[%s2 + $0x38] sm:$0xff]
  %v1095 = vld [vmem:[%s2 + $0x40] sm:$0xff]
  %v1096 = vld [vmem:[%s2 + $0x48] sm:$0xff]
  %v1097 = vld [vmem:[%s2 + $0x50] sm:$0xff]
  %v1098 = vld [vmem:[%s2 + $0x58] sm:$0xff]
  %v1099 = vld [vmem:[%s2 + $0x60] sm:$0xff]
  %v1100 = vld [vmem:[%s2 + $0x68] sm:$0xff]
  %v1101 = vld [vmem:[%s2 + $0x70] sm:$0xff]
  %v1102 = vld [vmem:[%s2 + $0x78] sm:$0xff]
  %v1103 = vld [vmem:[%s2 + $0x80] sm:$0xff]
  %v1104 = vld [vmem:[%s2 + $0x88] sm:$0xff]
  %v1105 = vld [vmem:[%s2 + $0x90] sm:$0xff]
  %v1106 = vld [vmem:[%s2 + $0x98] sm:$0xff]
  %v1107 = vld [vmem:[%s2 + $0xa0] sm:$0xff]
  %v1108 = vld [vmem:[%s2 + $0xa8] sm:$0xff]
  %v1109 = vld [vmem:[%s2 + $0xb0] sm:$0xff]
  %v1110 = vld [vmem:[%s2 + $0xb8] sm:$0xff]
  %v1111 = vld [vmem:[%s2 + $0xc0] sm:$0xff]
  %v1112 = vld [vmem:[%s2 + $0xc8] sm:$0xff]
  %v1113 = vld [vmem:[%s2 + $0xd0] sm:$0xff]
  %v1114 = vld [vmem:[%s2 + $0xd8] sm:$0xff]
  %v1115 = vld [vmem:[%s2 + $0xe0] sm:$0xff]
  %v1116 = vld [vmem:[%s2 + $0xe8] sm:$0xff]
  %v1117 = vld [vmem:[%s2 + $0xf0] sm:$0xff]
  %v1118 = vld [vmem:[%s2 + $0xf8] sm:$0xff]
  %v1151 = vunpack.c.l.b16 %v1087
  %v1152 = vunpack.c.h.b16 %v1087
  %v1153 = vunpack.c.l.b16 %v1088
  %v1154 = vunpack.c.h.b16 %v1088
  %v1155 = vunpack.c.l.b16 %v1089
  %v1156 = vunpack.c.h.b16 %v1089
  %v1157 = vunpack.c.l.b16 %v1090
  %v1158 = vunpack.c.h.b16 %v1090
  %v1159 = vunpack.c.l.b16 %v1091
  %v1160 = vunpack.c.h.b16 %v1091
  %v1161 = vunpack.c.l.b16 %v1092
  %v1162 = vunpack.c.h.b16 %v1092
  %v1163 = vunpack.c.l.b16 %v1093
  %v1164 = vunpack.c.h.b16 %v1093
  %v1165 = vunpack.c.l.b16 %v1094
  %v1166 = vunpack.c.h.b16 %v1094
  %v1167 = vunpack.c.l.b16 %v1095
  %v1168 = vunpack.c.h.b16 %v1095
  %v1169 = vunpack.c.l.b16 %v1096
  %v1170 = vunpack.c.h.b16 %v1096
  %v1171 = vunpack.c.l.b16 %v1097
  %v1172 = vunpack.c.h.b16 %v1097
  %v1173 = vunpack.c.l.b16 %v1098
  %v1174 = vunpack.c.h.b16 %v1098
  %v1175 = vunpack.c.l.b16 %v1099
  %v1176 = vunpack.c.h.b16 %v1099
  %v1177 = vunpack.c.l.b16 %v1100
  %v1178 = vunpack.c.h.b16 %v1100
  %v1179 = vunpack.c.l.b16 %v1101
  %v1180 = vunpack.c.h.b16 %v1101
  %v1181 = vunpack.c.l.b16 %v1102
  %v1182 = vunpack.c.h.b16 %v1102
  %v1183 = vunpack.c.l.b16 %v1103
  %v1184 = vunpack.c.h.b16 %v1103
  %v1185 = vunpack.c.l.b16 %v1104
  %v1186 = vunpack.c.h.b16 %v1104
  %v1187 = vunpack.c.l.b16 %v1105
  %v1188 = vunpack.c.h.b16 %v1105
  %v1189 = vunpack.c.l.b16 %v1106
  %v1190 = vunpack.c.h.b16 %v1106
  %v1191 = vunpack.c.l.b16 %v1107
  %v1192 = vunpack.c.h.b16 %v1107
  %v1193 = vunpack.c.l.b16 %v1108
  %v1194 = vunpack.c.h.b16 %v1108
  %v1195 = vunpack.c.l.b16 %v1109
  %v1196 = vunpack.c.h.b16 %v1109
  %v1197 = vunpack.c.l.b16 %v1110
  %v1198 = vunpack.c.h.b16 %v1110
  %v1199 = vunpack.c.l.b16 %v1111
  %v1200 = vunpack.c.h.b16 %v1111
  %v1201 = vunpack.c.l.b16 %v1112
  %v1202 = vunpack.c.h.b16 %v1112
  %v1203 = vunpack.c.l.b16 %v1113
  %v1204 = vunpack.c.h.b16 %v1113
  %v1205 = vunpack.c.l.b16 %v1114
  %v1206 = vunpack.c.h.b16 %v1114
  %v1207 = vunpack.c.l.b16 %v1115
  %v1208 = vunpack.c.h.b16 %v1115
  %v1209 = vunpack.c.l.b16 %v1116
  %v1210 = vunpack.c.h.b16 %v1116
  %v1211 = vunpack.c.l.b16 %v1117
  %v1212 = vunpack.c.h.b16 %v1117
  %v1213 = vunpack.c.l.b16 %v1118
  %v1214 = vunpack.c.h.b16 %v1118
  %v1215 = vpack.c.b16 %v1155, %v1151
  %v1216 = vpack.c.b16 %v1156, %v1152
  %v1217 = vpack.c.b16 %v1157, %v1153
  %v1218 = vpack.c.b16 %v1158, %v1154
  %v1219 = vpack.c.b16 %v1163, %v1159
  %v1220 = vpack.c.b16 %v1164, %v1160
  %v1221 = vpack.c.b16 %v1165, %v1161
  %v1222 = vpack.c.b16 %v1166, %v1162
  %v1223 = vpack.c.b16 %v1171, %v1167
  %v1224 = vpack.c.b16 %v1172, %v1168
  %v1225 = vpack.c.b16 %v1173, %v1169
  %v1226 = vpack.c.b16 %v1174, %v1170
  %v1227 = vpack.c.b16 %v1179, %v1175
  %v1228 = vpack.c.b16 %v1180, %v1176
  %v1229 = vpack.c.b16 %v1181, %v1177
  %v1230 = vpack.c.b16 %v1182, %v1178
  %v1231 = vpack.c.b16 %v1187, %v1183
  %v1232 = vpack.c.b16 %v1188, %v1184
  %v1233 = vpack.c.b16 %v1189, %v1185
  %v1234 = vpack.c.b16 %v1190, %v1186
  %v1235 = vpack.c.b16 %v1195, %v1191
  %v1236 = vpack.c.b16 %v1196, %v1192
  %v1237 = vpack.c.b16 %v1197, %v1193
  %v1238 = vpack.c.b16 %v1198, %v1194
  %v1239 = vpack.c.b16 %v1203, %v1199
  %v1240 = vpack.c.b16 %v1204, %v1200
  %v1241 = vpack.c.b16 %v1205, %v1201
  %v1242 = vpack.c.b16 %v1206, %v1202
  %v1243 = vpack.c.b16 %v1211, %v1207
  %v1244 = vpack.c.b16 %v1212, %v1208
  %v1245 = vpack.c.b16 %v1213, %v1209
  %v1246 = vpack.c.b16 %v1214, %v1210
  %1279 = vmatprep.subr.bf16.mxu0 %v1216
  %1280 = vmatpush1.bf16.msra.mxu0 %v1215
  %1281 = vmatprep.subr.bf16.mxu0 %v1220
  %1282 = vmatpush1.bf16.msra.mxu0 %v1219
  %1283 = vmatprep.subr.bf16.mxu0 %v1224
  %1284 = vmatpush1.bf16.msra.mxu0 %v1223
  %1285 = vmatprep.subr.bf16.mxu0 %v1228
  %1286 = vmatpush1.bf16.msra.mxu0 %v1227
  %1287 = vmatprep.subr.bf16.mxu0 %v1232
  %1288 = vmatpush1.bf16.msra.mxu0 %v1231
  %1289 = vmatprep.subr.bf16.mxu0 %v1236
  %1290 = vmatpush1.bf16.msra.mxu0 %v1235
  %1291 = vmatprep.subr.bf16.mxu0 %v1240
  %1292 = vmatpush1.bf16.msra.mxu0 %v1239
  %1293 = vmatprep.subr.bf16.mxu0 %v1244
  %1294 = vmatpush1.bf16.msra.mxu0 %v1243
  %1295 = vmatprep.subr.bf16.mxu0 0
  %1296 = vmatpush1.bf16.msra.mxu0 0
  %1297 = vmatprep.subr.bf16.mxu0 0
  %1298 = vmatpush1.bf16.msra.mxu0 0
  %1299 = vmatprep.subr.bf16.mxu0 0
  %1300 = vmatpush1.bf16.msra.mxu0 0
  %1301 = vmatprep.subr.bf16.mxu0 0
  %1302 = vmatpush1.bf16.msra.mxu0 0
  %1303 = vmatprep.subr.bf16.mxu0 0
  %1304 = vmatpush1.bf16.msra.mxu0 0
  %1305 = vmatprep.subr.bf16.mxu0 0
  %1306 = vmatpush1.bf16.msra.mxu0 0
  %1307 = vmatprep.subr.bf16.mxu0 0
  %1308 = vmatpush1.bf16.msra.mxu0 0
  %1309 = vmatprep.subr.bf16.mxu0 0
  %1310 = vmatpush1.bf16.msra.mxu0 0
  %1311 = vmatprep.mubr.bf16.mxu0 0
  %1312 = vmatmul.mubr.bf16.gmra.mrb[0].mxu0 %v1086
  %v1313 = vpop.f32.mrb[0].mxu0
  %v1314 = vadd.f32 0.0, %v1313
  %v1315 = vpop.f32.mrb[0].mxu0
  %v1316 = vadd.f32 0.0, %v1315
  %v1317 = vpop.f32.mrb[0].mxu0
  %v1318 = vpop.f32.mrb[0].mxu0
  %1319 = vdwg.mxu0
  %1320 = vmatprep.subr.bf16.mxu0 %v1218
  %1321 = vmatpush1.bf16.msra.mxu0 %v1217
  %1322 = vmatprep.subr.bf16.mxu0 %v1222
  %1323 = vmatpush1.bf16.msra.mxu0 %v1221
  %1324 = vmatprep.subr.bf16.mxu0 %v1226
  %1325 = vmatpush1.bf16.msra.mxu0 %v1225
  %1326 = vmatprep.subr.bf16.mxu0 %v1230
  %1327 = vmatpush1.bf16.msra.mxu0 %v1229
  %1328 = vmatprep.subr.bf16.mxu0 %v1234
  %1329 = vmatpush1.bf16.msra.mxu0 %v1233
  %1330 = vmatprep.subr.bf16.mxu0 %v1238
  %1331 = vmatpush1.bf16.msra.mxu0 %v1237
  %1332 = vmatprep.subr.bf16.mxu0 %v1242
  %1333 = vmatpush1.bf16.msra.mxu0 %v1241
  %1334 = vmatprep.subr.bf16.mxu0 %v1246
  %1335 = vmatpush1.bf16.msra.mxu0 %v1245
  %1336 = vmatprep.subr.bf16.mxu0 0
  %1337 = vmatpush1.bf16.msra.mxu0 0
  %1338 = vmatprep.subr.bf16.mxu0 0
  %1339 = vmatpush1.bf16.msra.mxu0 0
  %1340 = vmatprep.subr.bf16.mxu0 0
  %1341 = vmatpush1.bf16.msra.mxu0 0
  %1342 = vmatprep.subr.bf16.mxu0 0
  %1343 = vmatpush1.bf16.msra.mxu0 0
  %1344 = vmatprep.subr.bf16.mxu0 0
  %1345 = vmatpush1.bf16.msra.mxu0 0
  %1346 = vmatprep.subr.bf16.mxu0 0
  %1347 = vmatpush1.bf16.msra.mxu0 0
  %1348 = vmatprep.subr.bf16.mxu0 0
  %1349 = vmatpush1.bf16.msra.mxu0 0
  %1350 = vmatprep.subr.bf16.mxu0 0
  %1351 = vmatpush1.bf16.msra.mxu0 0
  %1352 = vmatprep.mubr.bf16.mxu0 0
  %1353 = vmatmul.mubr.bf16.gmra.mrb[0].mxu0 %v1086
  %v1354 = vpop.f32.mrb[0].mxu0
  %v1355 = vadd.f32 0.0, %v1354
  %v1356 = vpop.f32.mrb[0].mxu0
  %v1357 = vadd.f32 0.0, %v1356
  %v1358 = vpop.f32.mrb[0].mxu0
  %v1359 = vpop.f32.mrb[0].mxu0
  %1360 = vdwg.mxu0
  %v1361 = vadd.f32 %v1082, %v1314
  %v1362 = vadd.f32 %v1083, %v1316
  %v1363 = vadd.f32 %v1084, %v1355
  %v1364 = vadd.f32 %v1085, %v1357
  %v1365 = vxor.u32 %v1361, 2147483648
  %v1366 = vxor.u32 %v1362, 2147483648
  %v1367 = vxor.u32 %v1363, 2147483648
  %v1368 = vmul.f32 %v1365, 1.442695
  %v1369 = vpow.pop %v1368
  %v1370 = vmul.f32 %v1366, 1.442695
  %v1371 = vpow.pop %v1370
  %v1372 = vmul.f32 %v1367, 1.442695
  %v1373 = vpow.pop %v1372
  %v1374 = vadd.f32 %v1369, 1.0
  %v1375 = vadd.f32 %v1371, 1.0
  %v1376 = vadd.f32 %v1373, 1.0
  %v1377 = vrcp.pop %v1374
  %v1378 = vmul.f32 1.0, %v1377
  %v1379 = vrcp.pop %v1375
  %v1380 = vmul.f32 1.0, %v1379
  %v1381 = vrcp.pop %v1376
  %v1382 = vmul.f32 1.0, %v1381
  %v1383 = vtanh.pop %v1364
  %v1384 = vmul.f32 %v1380, %v1074
  %v1385 = vmul.f32 %v1378, %v1383
  %v1386 = vadd.f32 %v1384, %v1385
  %v1387 = vtanh.pop %v1386
  %v1388 = vmul.f32 %v1382, %v1387
  %s1389 = scalar_lea.vmem [#allocation3], 16
  %1390 = vst [vmem:[%s1389] sm:$0xff] %v1388
  %s1391 = smul.u32 3, 4
  %s1392 = smul.addr %s1391, 8
  %s1393 = scalar_lea.vmem [#allocation2], %s1392
  %v1394 = vld [vmem:[%s1393] sm:$0xff]
  %v1395 = vld [vmem:[%s1393 + $0x8] sm:$0xff]
  %v1396 = vld [vmem:[%s1393 + $0x10] sm:$0xff]
  %v1397 = vld [vmem:[%s1393 + $0x18] sm:$0xff]
  %v1398 = vpack.c.bf16 %v1388, %v1388
  %v1399 = vld [vmem:[%s2] sm:$0xff]
  %v1400 = vld [vmem:[%s2 + $0x8] sm:$0xff]
  %v1401 = vld [vmem:[%s2 + $0x10] sm:$0xff]
  %v1402 = vld [vmem:[%s2 + $0x18] sm:$0xff]
  %v1403 = vld [vmem:[%s2 + $0x20] sm:$0xff]
  %v1404 = vld [vmem:[%s2 + $0x28] sm:$0xff]
  %v1405 = vld [vmem:[%s2 + $0x30] sm:$0xff]
  %v1406 = vld [vmem:[%s2 + $0x38] sm:$0xff]
  %v1407 = vld [vmem:[%s2 + $0x40] sm:$0xff]
  %v1408 = vld [vmem:[%s2 + $0x48] sm:$0xff]
  %v1409 = vld [vmem:[%s2 + $0x50] sm:$0xff]
  %v1410 = vld [vmem:[%s2 + $0x58] sm:$0xff]
  %v1411 = vld [vmem:[%s2 + $0x60] sm:$0xff]
  %v1412 = vld [vmem:[%s2 + $0x68] sm:$0xff]
  %v1413 = vld [vmem:[%s2 + $0x70] sm:$0xff]
  %v1414 = vld [vmem:[%s2 + $0x78] sm:$0xff]
  %v1415 = vld [vmem:[%s2 + $0x80] sm:$0xff]
  %v1416 = vld [vmem:[%s2 + $0x88] sm:$0xff]
  %v1417 = vld [vmem:[%s2 + $0x90] sm:$0xff]
  %v1418 = vld [vmem:[%s2 + $0x98] sm:$0xff]
  %v1419 = vld [vmem:[%s2 + $0xa0] sm:$0xff]
  %v1420 = vld [vmem:[%s2 + $0xa8] sm:$0xff]
  %v1421 = vld [vmem:[%s2 + $0xb0] sm:$0xff]
  %v1422 = vld [vmem:[%s2 + $0xb8] sm:$0xff]
  %v1423 = vld [vmem:[%s2 + $0xc0] sm:$0xff]
  %v1424 = vld [vmem:[%s2 + $0xc8] sm:$0xff]
  %v1425 = vld [vmem:[%s2 + $0xd0] sm:$0xff]
  %v1426 = vld [vmem:[%s2 + $0xd8] sm:$0xff]
  %v1427 = vld [vmem:[%s2 + $0xe0] sm:$0xff]
  %v1428 = vld [vmem:[%s2 + $0xe8] sm:$0xff]
  %v1429 = vld [vmem:[%s2 + $0xf0] sm:$0xff]
  %v1430 = vld [vmem:[%s2 + $0xf8] sm:$0xff]
  %v1463 = vunpack.c.l.b16 %v1399
  %v1464 = vunpack.c.h.b16 %v1399
  %v1465 = vunpack.c.l.b16 %v1400
  %v1466 = vunpack.c.h.b16 %v1400
  %v1467 = vunpack.c.l.b16 %v1401
  %v1468 = vunpack.c.h.b16 %v1401
  %v1469 = vunpack.c.l.b16 %v1402
  %v1470 = vunpack.c.h.b16 %v1402
  %v1471 = vunpack.c.l.b16 %v1403
  %v1472 = vunpack.c.h.b16 %v1403
  %v1473 = vunpack.c.l.b16 %v1404
  %v1474 = vunpack.c.h.b16 %v1404
  %v1475 = vunpack.c.l.b16 %v1405
  %v1476 = vunpack.c.h.b16 %v1405
  %v1477 = vunpack.c.l.b16 %v1406
  %v1478 = vunpack.c.h.b16 %v1406
  %v1479 = vunpack.c.l.b16 %v1407
  %v1480 = vunpack.c.h.b16 %v1407
  %v1481 = vunpack.c.l.b16 %v1408
  %v1482 = vunpack.c.h.b16 %v1408
  %v1483 = vunpack.c.l.b16 %v1409
  %v1484 = vunpack.c.h.b16 %v1409
  %v1485 = vunpack.c.l.b16 %v1410
  %v1486 = vunpack.c.h.b16 %v1410
  %v1487 = vunpack.c.l.b16 %v1411
  %v1488 = vunpack.c.h.b16 %v1411
  %v1489 = vunpack.c.l.b16 %v1412
  %v1490 = vunpack.c.h.b16 %v1412
  %v1491 = vunpack.c.l.b16 %v1413
  %v1492 = vunpack.c.h.b16 %v1413
  %v1493 = vunpack.c.l.b16 %v1414
  %v1494 = vunpack.c.h.b16 %v1414
  %v1495 = vunpack.c.l.b16 %v1415
  %v1496 = vunpack.c.h.b16 %v1415
  %v1497 = vunpack.c.l.b16 %v1416
  %v1498 = vunpack.c.h.b16 %v1416
  %v1499 = vunpack.c.l.b16 %v1417
  %v1500 = vunpack.c.h.b16 %v1417
  %v1501 = vunpack.c.l.b16 %v1418
  %v1502 = vunpack.c.h.b16 %v1418
  %v1503 = vunpack.c.l.b16 %v1419
  %v1504 = vunpack.c.h.b16 %v1419
  %v1505 = vunpack.c.l.b16 %v1420
  %v1506 = vunpack.c.h.b16 %v1420
  %v1507 = vunpack.c.l.b16 %v1421
  %v1508 = vunpack.c.h.b16 %v1421
  %v1509 = vunpack.c.l.b16 %v1422
  %v1510 = vunpack.c.h.b16 %v1422
  %v1511 = vunpack.c.l.b16 %v1423
  %v1512 = vunpack.c.h.b16 %v1423
  %v1513 = vunpack.c.l.b16 %v1424
  %v1514 = vunpack.c.h.b16 %v1424
  %v1515 = vunpack.c.l.b16 %v1425
  %v1516 = vunpack.c.h.b16 %v1425
  %v1517 = vunpack.c.l.b16 %v1426
  %v1518 = vunpack.c.h.b16 %v1426
  %v1519 = vunpack.c.l.b16 %v1427
  %v1520 = vunpack.c.h.b16 %v1427
  %v1521 = vunpack.c.l.b16 %v1428
  %v1522 = vunpack.c.h.b16 %v1428
  %v1523 = vunpack.c.l.b16 %v1429
  %v1524 = vunpack.c.h.b16 %v1429
  %v1525 = vunpack.c.l.b16 %v1430
  %v1526 = vunpack.c.h.b16 %v1430
  %v1527 = vpack.c.b16 %v1467, %v1463
  %v1528 = vpack.c.b16 %v1468, %v1464
  %v1529 = vpack.c.b16 %v1469, %v1465
  %v1530 = vpack.c.b16 %v1470, %v1466
  %v1531 = vpack.c.b16 %v1475, %v1471
  %v1532 = vpack.c.b16 %v1476, %v1472
  %v1533 = vpack.c.b16 %v1477, %v1473
  %v1534 = vpack.c.b16 %v1478, %v1474
  %v1535 = vpack.c.b16 %v1483, %v1479
  %v1536 = vpack.c.b16 %v1484, %v1480
  %v1537 = vpack.c.b16 %v1485, %v1481
  %v1538 = vpack.c.b16 %v1486, %v1482
  %v1539 = vpack.c.b16 %v1491, %v1487
  %v1540 = vpack.c.b16 %v1492, %v1488
  %v1541 = vpack.c.b16 %v1493, %v1489
  %v1542 = vpack.c.b16 %v1494, %v1490
  %v1543 = vpack.c.b16 %v1499, %v1495
  %v1544 = vpack.c.b16 %v1500, %v1496
  %v1545 = vpack.c.b16 %v1501, %v1497
  %v1546 = vpack.c.b16 %v1502, %v1498
  %v1547 = vpack.c.b16 %v1507, %v1503
  %v1548 = vpack.c.b16 %v1508, %v1504
  %v1549 = vpack.c.b16 %v1509, %v1505
  %v1550 = vpack.c.b16 %v1510, %v1506
  %v1551 = vpack.c.b16 %v1515, %v1511
  %v1552 = vpack.c.b16 %v1516, %v1512
  %v1553 = vpack.c.b16 %v1517, %v1513
  %v1554 = vpack.c.b16 %v1518, %v1514
  %v1555 = vpack.c.b16 %v1523, %v1519
  %v1556 = vpack.c.b16 %v1524, %v1520
  %v1557 = vpack.c.b16 %v1525, %v1521
  %v1558 = vpack.c.b16 %v1526, %v1522
  %1591 = vmatprep.subr.bf16.mxu0 %v1528
  %1592 = vmatpush1.bf16.msra.mxu0 %v1527
  %1593 = vmatprep.subr.bf16.mxu0 %v1532
  %1594 = vmatpush1.bf16.msra.mxu0 %v1531
  %1595 = vmatprep.subr.bf16.mxu0 %v1536
  %1596 = vmatpush1.bf16.msra.mxu0 %v1535
  %1597 = vmatprep.subr.bf16.mxu0 %v1540
  %1598 = vmatpush1.bf16.msra.mxu0 %v1539
  %1599 = vmatprep.subr.bf16.mxu0 %v1544
  %1600 = vmatpush1.bf16.msra.mxu0 %v1543
  %1601 = vmatprep.subr.bf16.mxu0 %v1548
  %1602 = vmatpush1.bf16.msra.mxu0 %v1547
  %1603 = vmatprep.subr.bf16.mxu0 %v1552
  %1604 = vmatpush1.bf16.msra.mxu0 %v1551
  %1605 = vmatprep.subr.bf16.mxu0 %v1556
  %1606 = vmatpush1.bf16.msra.mxu0 %v1555
  %1607 = vmatprep.subr.bf16.mxu0 0
  %1608 = vmatpush1.bf16.msra.mxu0 0
  %1609 = vmatprep.subr.bf16.mxu0 0
  %1610 = vmatpush1.bf16.msra.mxu0 0
  %1611 = vmatprep.subr.bf16.mxu0 0
  %1612 = vmatpush1.bf16.msra.mxu0 0
  %1613 = vmatprep.subr.bf16.mxu0 0
  %1614 = vmatpush1.bf16.msra.mxu0 0
  %1615 = vmatprep.subr.bf16.mxu0 0
  %1616 = vmatpush1.bf16.msra.mxu0 0
  %1617 = vmatprep.subr.bf16.mxu0 0
  %1618 = vmatpush1.bf16.msra.mxu0 0
  %1619 = vmatprep.subr.bf16.mxu0 0
  %1620 = vmatpush1.bf16.msra.mxu0 0
  %1621 = vmatprep.subr.bf16.mxu0 0
  %1622 = vmatpush1.bf16.msra.mxu0 0
  %1623 = vmatprep.mubr.bf16.mxu0 0
  %1624 = vmatmul.mubr.bf16.gmra.mrb[0].mxu0 %v1398
  %v1625 = vpop.f32.mrb[0].mxu0
  %v1626 = vadd.f32 0.0, %v1625
  %v1627 = vpop.f32.mrb[0].mxu0
  %v1628 = vadd.f32 0.0, %v1627
  %v1629 = vpop.f32.mrb[0].mxu0
  %v1630 = vpop.f32.mrb[0].mxu0
  %1631 = vdwg.mxu0
  %1632 = vmatprep.subr.bf16.mxu0 %v1530
  %1633 = vmatpush1.bf16.msra.mxu0 %v1529
  %1634 = vmatprep.subr.bf16.mxu0 %v1534
  %1635 = vmatpush1.bf16.msra.mxu0 %v1533
  %1636 = vmatprep.subr.bf16.mxu0 %v1538
  %1637 = vmatpush1.bf16.msra.mxu0 %v1537
  %1638 = vmatprep.subr.bf16.mxu0 %v1542
  %1639 = vmatpush1.bf16.msra.mxu0 %v1541
  %1640 = vmatprep.subr.bf16.mxu0 %v1546
  %1641 = vmatpush1.bf16.msra.mxu0 %v1545
  %1642 = vmatprep.subr.bf16.mxu0 %v1550
  %1643 = vmatpush1.bf16.msra.mxu0 %v1549
  %1644 = vmatprep.subr.bf16.mxu0 %v1554
  %1645 = vmatpush1.bf16.msra.mxu0 %v1553
  %1646 = vmatprep.subr.bf16.mxu0 %v1558
  %1647 = vmatpush1.bf16.msra.mxu0 %v1557
  %1648 = vmatprep.subr.bf16.mxu0 0
  %1649 = vmatpush1.bf16.msra.mxu0 0
  %1650 = vmatprep.subr.bf16.mxu0 0
  %1651 = vmatpush1.bf16.msra.mxu0 0
  %1652 = vmatprep.subr.bf16.mxu0 0
  %1653 = vmatpush1.bf16.msra.mxu0 0
  %1654 = vmatprep.subr.bf16.mxu0 0
  %1655 = vmatpush1.bf16.msra.mxu0 0
  %1656 = vmatprep.subr.bf16.mxu0 0
  %1657 = vmatpush1.bf16.msra.mxu0 0
  %1658 = vmatprep.subr.bf16.mxu0 0
  %1659 = vmatpush1.bf16.msra.mxu0 0
  %1660 = vmatprep.subr.bf16.mxu0 0
  %1661 = vmatpush1.bf16.msra.mxu0 0
  %1662 = vmatprep.subr.bf16.mxu0 0
  %1663 = vmatpush1.bf16.msra.mxu0 0
  %1664 = vmatprep.mubr.bf16.mxu0 0
  %1665 = vmatmul.mubr.bf16.gmra.mrb[0].mxu0 %v1398
  %v1666 = vpop.f32.mrb[0].mxu0
  %v1667 = vadd.f32 0.0, %v1666
  %v1668 = vpop.f32.mrb[0].mxu0
  %v1669 = vadd.f32 0.0, %v1668
  %v1670 = vpop.f32.mrb[0].mxu0
  %v1671 = vpop.f32.mrb[0].mxu0
  %1672 = vdwg.mxu0
  %v1673 = vadd.f32 %v1394, %v1626
  %v1674 = vadd.f32 %v1395, %v1628
  %v1675 = vadd.f32 %v1396, %v1667
  %v1676 = vadd.f32 %v1397, %v1669
  %v1677 = vxor.u32 %v1673, 2147483648
  %v1678 = vxor.u32 %v1674, 2147483648
  %v1679 = vxor.u32 %v1675, 2147483648
  %v1680 = vmul.f32 %v1677, 1.442695
  %v1681 = vpow.pop %v1680
  %v1682 = vmul.f32 %v1678, 1.442695
  %v1683 = vpow.pop %v1682
  %v1684 = vmul.f32 %v1679, 1.442695
  %v1685 = vpow.pop %v1684
  %v1686 = vadd.f32 %v1681, 1.0
  %v1687 = vadd.f32 %v1683, 1.0
  %v1688 = vadd.f32 %v1685, 1.0
  %v1689 = vrcp.pop %v1686
  %v1690 = vmul.f32 1.0, %v1689
  %v1691 = vrcp.pop %v1687
  %v1692 = vmul.f32 1.0, %v1691
  %v1693 = vrcp.pop %v1688
  %v1694 = vmul.f32 1.0, %v1693
  %v1695 = vtanh.pop %v1676
  %v1696 = vmul.f32 %v1692, %v1386
  %v1697 = vmul.f32 %v1690, %v1695
  %v1698 = vadd.f32 %v1696, %v1697
  %v1699 = vtanh.pop %v1698
  %v1700 = vmul.f32 %v1694, %v1699
  %s1701 = scalar_lea.vmem [#allocation3], 24
  %1702 = vst [vmem:[%s1701] sm:$0xff] %v1700
  %s1703 = smul.u32 4, 4
  %s1704 = smul.addr %s1703, 8
  %s1705 = scalar_lea.vmem [#allocation2], %s1704
  %v1706 = vld [vmem:[%s1705] sm:$0xff]
  %v1707 = vld [vmem:[%s1705 + $0x8] sm:$0xff]
  %v1708 = vld [vmem:[%s1705 + $0x10] sm:$0xff]
  %v1709 = vld [vmem:[%s1705 + $0x18] sm:$0xff]
  %v1710 = vpack.c.bf16 %v1700, %v1700
  %v1711 = vld [vmem:[%s2] sm:$0xff]
  %v1712 = vld [vmem:[%s2 + $0x8] sm:$0xff]
  %v1713 = vld [vmem:[%s2 + $0x10] sm:$0xff]
  %v1714 = vld [vmem:[%s2 + $0x18] sm:$0xff]
  %v1715 = vld [vmem:[%s2 + $0x20] sm:$0xff]
  %v1716 = vld [vmem:[%s2 + $0x28] sm:$0xff]
  %v1717 = vld [vmem:[%s2 + $0x30] sm:$0xff]
  %v1718 = vld [vmem:[%s2 + $0x38] sm:$0xff]
  %v1719 = vld [vmem:[%s2 + $0x40] sm:$0xff]
  %v1720 = vld [vmem:[%s2 + $0x48] sm:$0xff]
  %v1721 = vld [vmem:[%s2 + $0x50] sm:$0xff]
  %v1722 = vld [vmem:[%s2 + $0x58] sm:$0xff]
  %v1723 = vld [vmem:[%s2 + $0x60] sm:$0xff]
  %v1724 = vld [vmem:[%s2 + $0x68] sm:$0xff]
  %v1725 = vld [vmem:[%s2 + $0x70] sm:$0xff]
  %v1726 = vld [vmem:[%s2 + $0x78] sm:$0xff]
  %v1727 = vld [vmem:[%s2 + $0x80] sm:$0xff]
  %v1728 = vld [vmem:[%s2 + $0x88] sm:$0xff]
  %v1729 = vld [vmem:[%s2 + $0x90] sm:$0xff]
  %v1730 = vld [vmem:[%s2 + $0x98] sm:$0xff]
  %v1731 = vld [vmem:[%s2 + $0xa0] sm:$0xff]
  %v1732 = vld [vmem:[%s2 + $0xa8] sm:$0xff]
  %v1733 = vld [vmem:[%s2 + $0xb0] sm:$0xff]
  %v1734 = vld [vmem:[%s2 + $0xb8] sm:$0xff]
  %v1735 = vld [vmem:[%s2 + $0xc0] sm:$0xff]
  %v1736 = vld [vmem:[%s2 + $0xc8] sm:$0xff]
  %v1737 = vld [vmem:[%s2 + $0xd0] sm:$0xff]
  %v1738 = vld [vmem:[%s2 + $0xd8] sm:$0xff]
  %v1739 = vld [vmem:[%s2 + $0xe0] sm:$0xff]
  %v1740 = vld [vmem:[%s2 + $0xe8] sm:$0xff]
  %v1741 = vld [vmem:[%s2 + $0xf0] sm:$0xff]
  %v1742 = vld [vmem:[%s2 + $0xf8] sm:$0xff]
  %v1775 = vunpack.c.l.b16 %v1711
  %v1776 = vunpack.c.h.b16 %v1711
  %v1777 = vunpack.c.l.b16 %v1712
  %v1778 = vunpack.c.h.b16 %v1712
  %v1779 = vunpack.c.l.b16 %v1713
  %v1780 = vunpack.c.h.b16 %v1713
  %v1781 = vunpack.c.l.b16 %v1714
  %v1782 = vunpack.c.h.b16 %v1714
  %v1783 = vunpack.c.l.b16 %v1715
  %v1784 = vunpack.c.h.b16 %v1715
  %v1785 = vunpack.c.l.b16 %v1716
  %v1786 = vunpack.c.h.b16 %v1716
  %v1787 = vunpack.c.l.b16 %v1717
  %v1788 = vunpack.c.h.b16 %v1717
  %v1789 = vunpack.c.l.b16 %v1718
  %v1790 = vunpack.c.h.b16 %v1718
  %v1791 = vunpack.c.l.b16 %v1719
  %v1792 = vunpack.c.h.b16 %v1719
  %v1793 = vunpack.c.l.b16 %v1720
  %v1794 = vunpack.c.h.b16 %v1720
  %v1795 = vunpack.c.l.b16 %v1721
  %v1796 = vunpack.c.h.b16 %v1721
  %v1797 = vunpack.c.l.b16 %v1722
  %v1798 = vunpack.c.h.b16 %v1722
  %v1799 = vunpack.c.l.b16 %v1723
  %v1800 = vunpack.c.h.b16 %v1723
  %v1801 = vunpack.c.l.b16 %v1724
  %v1802 = vunpack.c.h.b16 %v1724
  %v1803 = vunpack.c.l.b16 %v1725
  %v1804 = vunpack.c.h.b16 %v1725
  %v1805 = vunpack.c.l.b16 %v1726
  %v1806 = vunpack.c.h.b16 %v1726
  %v1807 = vunpack.c.l.b16 %v1727
  %v1808 = vunpack.c.h.b16 %v1727
  %v1809 = vunpack.c.l.b16 %v1728
  %v1810 = vunpack.c.h.b16 %v1728
  %v1811 = vunpack.c.l.b16 %v1729
  %v1812 = vunpack.c.h.b16 %v1729
  %v1813 = vunpack.c.l.b16 %v1730
  %v1814 = vunpack.c.h.b16 %v1730
  %v1815 = vunpack.c.l.b16 %v1731
  %v1816 = vunpack.c.h.b16 %v1731
  %v1817 = vunpack.c.l.b16 %v1732
  %v1818 = vunpack.c.h.b16 %v1732
  %v1819 = vunpack.c.l.b16 %v1733
  %v1820 = vunpack.c.h.b16 %v1733
  %v1821 = vunpack.c.l.b16 %v1734
  %v1822 = vunpack.c.h.b16 %v1734
  %v1823 = vunpack.c.l.b16 %v1735
  %v1824 = vunpack.c.h.b16 %v1735
  %v1825 = vunpack.c.l.b16 %v1736
  %v1826 = vunpack.c.h.b16 %v1736
  %v1827 = vunpack.c.l.b16 %v1737
  %v1828 = vunpack.c.h.b16 %v1737
  %v1829 = vunpack.c.l.b16 %v1738
  %v1830 = vunpack.c.h.b16 %v1738
  %v1831 = vunpack.c.l.b16 %v1739
  %v1832 = vunpack.c.h.b16 %v1739
  %v1833 = vunpack.c.l.b16 %v1740
  %v1834 = vunpack.c.h.b16 %v1740
  %v1835 = vunpack.c.l.b16 %v1741
  %v1836 = vunpack.c.h.b16 %v1741
  %v1837 = vunpack.c.l.b16 %v1742
  %v1838 = vunpack.c.h.b16 %v1742
  %v1839 = vpack.c.b16 %v1779, %v1775
  %v1840 = vpack.c.b16 %v1780, %v1776
  %v1841 = vpack.c.b16 %v1781, %v1777
  %v1842 = vpack.c.b16 %v1782, %v1778
  %v1843 = vpack.c.b16 %v1787, %v1783
  %v1844 = vpack.c.b16 %v1788, %v1784
  %v1845 = vpack.c.b16 %v1789, %v1785
  %v1846 = vpack.c.b16 %v1790, %v1786
  %v1847 = vpack.c.b16 %v1795, %v1791
  %v1848 = vpack.c.b16 %v1796, %v1792
  %v1849 = vpack.c.b16 %v1797, %v1793
  %v1850 = vpack.c.b16 %v1798, %v1794
  %v1851 = vpack.c.b16 %v1803, %v1799
  %v1852 = vpack.c.b16 %v1804, %v1800
  %v1853 = vpack.c.b16 %v1805, %v1801
  %v1854 = vpack.c.b16 %v1806, %v1802
  %v1855 = vpack.c.b16 %v1811, %v1807
  %v1856 = vpack.c.b16 %v1812, %v1808
  %v1857 = vpack.c.b16 %v1813, %v1809
  %v1858 = vpack.c.b16 %v1814, %v1810
  %v1859 = vpack.c.b16 %v1819, %v1815
  %v1860 = vpack.c.b16 %v1820, %v1816
  %v1861 = vpack.c.b16 %v1821, %v1817
  %v1862 = vpack.c.b16 %v1822, %v1818
  %v1863 = vpack.c.b16 %v1827, %v1823
  %v1864 = vpack.c.b16 %v1828, %v1824
  %v1865 = vpack.c.b16 %v1829, %v1825
  %v1866 = vpack.c.b16 %v1830, %v1826
  %v1867 = vpack.c.b16 %v1835, %v1831
  %v1868 = vpack.c.b16 %v1836, %v1832
  %v1869 = vpack.c.b16 %v1837, %v1833
  %v1870 = vpack.c.b16 %v1838, %v1834
  %1903 = vmatprep.subr.bf16.mxu0 %v1840
  %1904 = vmatpush1.bf16.msra.mxu0 %v1839
  %1905 = vmatprep.subr.bf16.mxu0 %v1844
  %1906 = vmatpush1.bf16.msra.mxu0 %v1843
  %1907 = vmatprep.subr.bf16.mxu0 %v1848
  %1908 = vmatpush1.bf16.msra.mxu0 %v1847
  %1909 = vmatprep.subr.bf16.mxu0 %v1852
  %1910 = vmatpush1.bf16.msra.mxu0 %v1851
  %1911 = vmatprep.subr.bf16.mxu0 %v1856
  %1912 = vmatpush1.bf16.msra.mxu0 %v1855
  %1913 = vmatprep.subr.bf16.mxu0 %v1860
  %1914 = vmatpush1.bf16.msra.mxu0 %v1859
  %1915 = vmatprep.subr.bf16.mxu0 %v1864
  %1916 = vmatpush1.bf16.msra.mxu0 %v1863
  %1917 = vmatprep.subr.bf16.mxu0 %v1868
  %1918 = vmatpush1.bf16.msra.mxu0 %v1867
  %1919 = vmatprep.subr.bf16.mxu0 0
  %1920 = vmatpush1.bf16.msra.mxu0 0
  %1921 = vmatprep.subr.bf16.mxu0 0
  %1922 = vmatpush1.bf16.msra.mxu0 0
  %1923 = vmatprep.subr.bf16.mxu0 0
  %1924 = vmatpush1.bf16.msra.mxu0 0
  %1925 = vmatprep.subr.bf16.mxu0 0
  %1926 = vmatpush1.bf16.msra.mxu0 0
  %1927 = vmatprep.subr.bf16.mxu0 0
  %1928 = vmatpush1.bf16.msra.mxu0 0
  %1929 = vmatprep.subr.bf16.mxu0 0
  %1930 = vmatpush1.bf16.msra.mxu0 0
  %1931 = vmatprep.subr.bf16.mxu0 0
  %1932 = vmatpush1.bf16.msra.mxu0 0
  %1933 = vmatprep.subr.bf16.mxu0 0
  %1934 = vmatpush1.bf16.msra.mxu0 0
  %1935 = vmatprep.mubr.bf16.mxu0 0
  %1936 = vmatmul.mubr.bf16.gmra.mrb[0].mxu0 %v1710
  %v1937 = vpop.f32.mrb[0].mxu0
  %v1938 = vadd.f32 0.0, %v1937
  %v1939 = vpop.f32.mrb[0].mxu0
  %v1940 = vadd.f32 0.0, %v1939
  %v1941 = vpop.f32.mrb[0].mxu0
  %v1942 = vpop.f32.mrb[0].mxu0
  %1943 = vdwg.mxu0
  %1944 = vmatprep.subr.bf16.mxu0 %v1842
  %1945 = vmatpush1.bf16.msra.mxu0 %v1841
  %1946 = vmatprep.subr.bf16.mxu0 %v1846
  %1947 = vmatpush1.bf16.msra.mxu0 %v1845
  %1948 = vmatprep.subr.bf16.mxu0 %v1850
  %1949 = vmatpush1.bf16.msra.mxu0 %v1849
  %1950 = vmatprep.subr.bf16.mxu0 %v1854
  %1951 = vmatpush1.bf16.msra.mxu0 %v1853
  %1952 = vmatprep.subr.bf16.mxu0 %v1858
  %1953 = vmatpush1.bf16.msra.mxu0 %v1857
  %1954 = vmatprep.subr.bf16.mxu0 %v1862
  %1955 = vmatpush1.bf16.msra.mxu0 %v1861
  %1956 = vmatprep.subr.bf16.mxu0 %v1866
  %1957 = vmatpush1.bf16.msra.mxu0 %v1865
  %1958 = vmatprep.subr.bf16.mxu0 %v1870
  %1959 = vmatpush1.bf16.msra.mxu0 %v1869
  %1960 = vmatprep.subr.bf16.mxu0 0
  %1961 = vmatpush1.bf16.msra.mxu0 0
  %1962 = vmatprep.subr.bf16.mxu0 0
  %1963 = vmatpush1.bf16.msra.mxu0 0
  %1964 = vmatprep.subr.bf16.mxu0 0
  %1965 = vmatpush1.bf16.msra.mxu0 0
  %1966 = vmatprep.subr.bf16.mxu0 0
  %1967 = vmatpush1.bf16.msra.mxu0 0
  %1968 = vmatprep.subr.bf16.mxu0 0
  %1969 = vmatpush1.bf16.msra.mxu0 0
  %1970 = vmatprep.subr.bf16.mxu0 0
  %1971 = vmatpush1.bf16.msra.mxu0 0
  %1972 = vmatprep.subr.bf16.mxu0 0
  %1973 = vmatpush1.bf16.msra.mxu0 0
  %1974 = vmatprep.subr.bf16.mxu0 0
  %1975 = vmatpush1.bf16.msra.mxu0 0
  %1976 = vmatprep.mubr.bf16.mxu0 0
  %1977 = vmatmul.mubr.bf16.gmra.mrb[0].mxu0 %v1710
  %v1978 = vpop.f32.mrb[0].mxu0
  %v1979 = vadd.f32 0.0, %v1978
  %v1980 = vpop.f32.mrb[0].mxu0
  %v1981 = vadd.f32 0.0, %v1980
  %v1982 = vpop.f32.mrb[0].mxu0
  %v1983 = vpop.f32.mrb[0].mxu0
  %1984 = vdwg.mxu0
  %v1985 = vadd.f32 %v1706, %v1938
  %v1986 = vadd.f32 %v1707, %v1940
  %v1987 = vadd.f32 %v1708, %v1979
  %v1988 = vadd.f32 %v1709, %v1981
  %v1989 = vxor.u32 %v1985, 2147483648
  %v1990 = vxor.u32 %v1986, 2147483648
  %v1991 = vxor.u32 %v1987, 2147483648
  %v1992 = vmul.f32 %v1989, 1.442695
  %v1993 = vpow.pop %v1992
  %v1994 = vmul.f32 %v1990, 1.442695
  %v1995 = vpow.pop %v1994
  %v1996 = vmul.f32 %v1991, 1.442695
  %v1997 = vpow.pop %v1996
  %v1998 = vadd.f32 %v1993, 1.0
  %v1999 = vadd.f32 %v1995, 1.0
  %v2000 = vadd.f32 %v1997, 1.0
  %v2001 = vrcp.pop %v1998
  %v2002 = vmul.f32 1.0, %v2001
  %v2003 = vrcp.pop %v1999
  %v2004 = vmul.f32 1.0, %v2003
  %v2005 = vrcp.pop %v2000
  %v2006 = vmul.f32 1.0, %v2005
  %v2007 = vtanh.pop %v1988
  %v2008 = vmul.f32 %v2004, %v1698
  %v2009 = vmul.f32 %v2002, %v2007
  %v2010 = vadd.f32 %v2008, %v2009
  %v2011 = vtanh.pop %v2010
  %v2012 = vmul.f32 %v2006, %v2011
  %s2013 = scalar_lea.vmem [#allocation3], 32
  %2014 = vst [vmem:[%s2013] sm:$0xff] %v2012
  %s2015 = smul.u32 5, 4
  %s2016 = smul.addr %s2015, 8
  %s2017 = scalar_lea.vmem [#allocation2], %s2016
  %v2018 = vld [vmem:[%s2017] sm:$0xff]
  %v2019 = vld [vmem:[%s2017 + $0x8] sm:$0xff]
  %v2020 = vld [vmem:[%s2017 + $0x10] sm:$0xff]
  %v2021 = vld [vmem:[%s2017 + $0x18] sm:$0xff]
  %v2022 = vpack.c.bf16 %v2012, %v2012
  %v2023 = vld [vmem:[%s2] sm:$0xff]
  %v2024 = vld [vmem:[%s2 + $0x8] sm:$0xff]
  %v2025 = vld [vmem:[%s2 + $0x10] sm:$0xff]
  %v2026 = vld [vmem:[%s2 + $0x18] sm:$0xff]
  %v2027 = vld [vmem:[%s2 + $0x20] sm:$0xff]
  %v2028 = vld [vmem:[%s2 + $0x28] sm:$0xff]
  %v2029 = vld [vmem:[%s2 + $0x30] sm:$0xff]
  %v2030 = vld [vmem:[%s2 + $0x38] sm:$0xff]
  %v2031 = vld [vmem:[%s2 + $0x40] sm:$0xff]
  %v2032 = vld [vmem:[%s2 + $0x48] sm:$0xff]
  %v2033 = vld [vmem:[%s2 + $0x50] sm:$0xff]
  %v2034 = vld [vmem:[%s2 + $0x58] sm:$0xff]
  %v2035 = vld [vmem:[%s2 + $0x60] sm:$0xff]
  %v2036 = vld [vmem:[%s2 + $0x68] sm:$0xff]
  %v2037 = vld [vmem:[%s2 + $0x70] sm:$0xff]
  %v2038 = vld [vmem:[%s2 + $0x78] sm:$0xff]
  %v2039 = vld [vmem:[%s2 + $0x80] sm:$0xff]
  %v2040 = vld [vmem:[%s2 + $0x88] sm:$0xff]
  %v2041 = vld [vmem:[%s2 + $0x90] sm:$0xff]
  %v2042 = vld [vmem:[%s2 + $0x98] sm:$0xff]
  %v2043 = vld [vmem:[%s2 + $0xa0] sm:$0xff]
  %v2044 = vld [vmem:[%s2 + $0xa8] sm:$0xff]
  %v2045 = vld [vmem:[%s2 + $0xb0] sm:$0xff]
  %v2046 = vld [vmem:[%s2 + $0xb8] sm:$0xff]
  %v2047 = vld [vmem:[%s2 + $0xc0] sm:$0xff]
  %v2048 = vld [vmem:[%s2 + $0xc8] sm:$0xff]
  %v2049 = vld [vmem:[%s2 + $0xd0] sm:$0xff]
  %v2050 = vld [vmem:[%s2 + $0xd8] sm:$0xff]
  %v2051 = vld [vmem:[%s2 + $0xe0] sm:$0xff]
  %v2052 = vld [vmem:[%s2 + $0xe8] sm:$0xff]
  %v2053 = vld [vmem:[%s2 + $0xf0] sm:$0xff]
  %v2054 = vld [vmem:[%s2 + $0xf8] sm:$0xff]
  %v2087 = vunpack.c.l.b16 %v2023
  %v2088 = vunpack.c.h.b16 %v2023
  %v2089 = vunpack.c.l.b16 %v2024
  %v2090 = vunpack.c.h.b16 %v2024
  %v2091 = vunpack.c.l.b16 %v2025
  %v2092 = vunpack.c.h.b16 %v2025
  %v2093 = vunpack.c.l.b16 %v2026
  %v2094 = vunpack.c.h.b16 %v2026
  %v2095 = vunpack.c.l.b16 %v2027
  %v2096 = vunpack.c.h.b16 %v2027
  %v2097 = vunpack.c.l.b16 %v2028
  %v2098 = vunpack.c.h.b16 %v2028
  %v2099 = vunpack.c.l.b16 %v2029
  %v2100 = vunpack.c.h.b16 %v2029
  %v2101 = vunpack.c.l.b16 %v2030
  %v2102 = vunpack.c.h.b16 %v2030
  %v2103 = vunpack.c.l.b16 %v2031
  %v2104 = vunpack.c.h.b16 %v2031
  %v2105 = vunpack.c.l.b16 %v2032
  %v2106 = vunpack.c.h.b16 %v2032
  %v2107 = vunpack.c.l.b16 %v2033
  %v2108 = vunpack.c.h.b16 %v2033
  %v2109 = vunpack.c.l.b16 %v2034
  %v2110 = vunpack.c.h.b16 %v2034
  %v2111 = vunpack.c.l.b16 %v2035
  %v2112 = vunpack.c.h.b16 %v2035
  %v2113 = vunpack.c.l.b16 %v2036
  %v2114 = vunpack.c.h.b16 %v2036
  %v2115 = vunpack.c.l.b16 %v2037
  %v2116 = vunpack.c.h.b16 %v2037
  %v2117 = vunpack.c.l.b16 %v2038
  %v2118 = vunpack.c.h.b16 %v2038
  %v2119 = vunpack.c.l.b16 %v2039
  %v2120 = vunpack.c.h.b16 %v2039
  %v2121 = vunpack.c.l.b16 %v2040
  %v2122 = vunpack.c.h.b16 %v2040
  %v2123 = vunpack.c.l.b16 %v2041
  %v2124 = vunpack.c.h.b16 %v2041
  %v2125 = vunpack.c.l.b16 %v2042
  %v2126 = vunpack.c.h.b16 %v2042
  %v2127 = vunpack.c.l.b16 %v2043
  %v2128 = vunpack.c.h.b16 %v2043
  %v2129 = vunpack.c.l.b16 %v2044
  %v2130 = vunpack.c.h.b16 %v2044
  %v2131 = vunpack.c.l.b16 %v2045
  %v2132 = vunpack.c.h.b16 %v2045
  %v2133 = vunpack.c.l.b16 %v2046
  %v2134 = vunpack.c.h.b16 %v2046
  %v2135 = vunpack.c.l.b16 %v2047
  %v2136 = vunpack.c.h.b16 %v2047
  %v2137 = vunpack.c.l.b16 %v2048
  %v2138 = vunpack.c.h.b16 %v2048
  %v2139 = vunpack.c.l.b16 %v2049
  %v2140 = vunpack.c.h.b16 %v2049
  %v2141 = vunpack.c.l.b16 %v2050
  %v2142 = vunpack.c.h.b16 %v2050
  %v2143 = vunpack.c.l.b16 %v2051
  %v2144 = vunpack.c.h.b16 %v2051
  %v2145 = vunpack.c.l.b16 %v2052
  %v2146 = vunpack.c.h.b16 %v2052
  %v2147 = vunpack.c.l.b16 %v2053
  %v2148 = vunpack.c.h.b16 %v2053
  %v2149 = vunpack.c.l.b16 %v2054
  %v2150 = vunpack.c.h.b16 %v2054
  %v2151 = vpack.c.b16 %v2091, %v2087
  %v2152 = vpack.c.b16 %v2092, %v2088
  %v2153 = vpack.c.b16 %v2093, %v2089
  %v2154 = vpack.c.b16 %v2094, %v2090
  %v2155 = vpack.c.b16 %v2099, %v2095
  %v2156 = vpack.c.b16 %v2100, %v2096
  %v2157 = vpack.c.b16 %v2101, %v2097
  %v2158 = vpack.c.b16 %v2102, %v2098
  %v2159 = vpack.c.b16 %v2107, %v2103
  %v2160 = vpack.c.b16 %v2108, %v2104
  %v2161 = vpack.c.b16 %v2109, %v2105
  %v2162 = vpack.c.b16 %v2110, %v2106
  %v2163 = vpack.c.b16 %v2115, %v2111
  %v2164 = vpack.c.b16 %v2116, %v2112
  %v2165 = vpack.c.b16 %v2117, %v2113
  %v2166 = vpack.c.b16 %v2118, %v2114
  %v2167 = vpack.c.b16 %v2123, %v2119
  %v2168 = vpack.c.b16 %v2124, %v2120
  %v2169 = vpack.c.b16 %v2125, %v2121
  %v2170 = vpack.c.b16 %v2126, %v2122
  %v2171 = vpack.c.b16 %v2131, %v2127
  %v2172 = vpack.c.b16 %v2132, %v2128
  %v2173 = vpack.c.b16 %v2133, %v2129
  %v2174 = vpack.c.b16 %v2134, %v2130
  %v2175 = vpack.c.b16 %v2139, %v2135
  %v2176 = vpack.c.b16 %v2140, %v2136
  %v2177 = vpack.c.b16 %v2141, %v2137
  %v2178 = vpack.c.b16 %v2142, %v2138
  %v2179 = vpack.c.b16 %v2147, %v2143
  %v2180 = vpack.c.b16 %v2148, %v2144
  %v2181 = vpack.c.b16 %v2149, %v2145
  %v2182 = vpack.c.b16 %v2150, %v2146
  %2215 = vmatprep.subr.bf16.mxu0 %v2152
  %2216 = vmatpush1.bf16.msra.mxu0 %v2151
  %2217 = vmatprep.subr.bf16.mxu0 %v2156
  %2218 = vmatpush1.bf16.msra.mxu0 %v2155
  %2219 = vmatprep.subr.bf16.mxu0 %v2160
  %2220 = vmatpush1.bf16.msra.mxu0 %v2159
  %2221 = vmatprep.subr.bf16.mxu0 %v2164
  %2222 = vmatpush1.bf16.msra.mxu0 %v2163
  %2223 = vmatprep.subr.bf16.mxu0 %v2168
  %2224 = vmatpush1.bf16.msra.mxu0 %v2167
  %2225 = vmatprep.subr.bf16.mxu0 %v2172
  %2226 = vmatpush1.bf16.msra.mxu0 %v2171
  %2227 = vmatprep.subr.bf16.mxu0 %v2176
  %2228 = vmatpush1.bf16.msra.mxu0 %v2175
  %2229 = vmatprep.subr.bf16.mxu0 %v2180
  %2230 = vmatpush1.bf16.msra.mxu0 %v2179
  %2231 = vmatprep.subr.bf16.mxu0 0
  %2232 = vmatpush1.bf16.msra.mxu0 0
  %2233 = vmatprep.subr.bf16.mxu0 0
  %2234 = vmatpush1.bf16.msra.mxu0 0
  %2235 = vmatprep.subr.bf16.mxu0 0
  %2236 = vmatpush1.bf16.msra.mxu0 0
  %2237 = vmatprep.subr.bf16.mxu0 0
  %2238 = vmatpush1.bf16.msra.mxu0 0
  %2239 = vmatprep.subr.bf16.mxu0 0
  %2240 = vmatpush1.bf16.msra.mxu0 0
  %2241 = vmatprep.subr.bf16.mxu0 0
  %2242 = vmatpush1.bf16.msra.mxu0 0
  %2243 = vmatprep.subr.bf16.mxu0 0
  %2244 = vmatpush1.bf16.msra.mxu0 0
  %2245 = vmatprep.subr.bf16.mxu0 0
  %2246 = vmatpush1.bf16.msra.mxu0 0
  %2247 = vmatprep.mubr.bf16.mxu0 0
  %2248 = vmatmul.mubr.bf16.gmra.mrb[0].mxu0 %v2022
  %v2249 = vpop.f32.mrb[0].mxu0
  %v2250 = vadd.f32 0.0, %v2249
  %v2251 = vpop.f32.mrb[0].mxu0
  %v2252 = vadd.f32 0.0, %v2251
  %v2253 = vpop.f32.mrb[0].mxu0
  %v2254 = vpop.f32.mrb[0].mxu0
  %2255 = vdwg.mxu0
  %2256 = vmatprep.subr.bf16.mxu0 %v2154
  %2257 = vmatpush1.bf16.msra.mxu0 %v2153
  %2258 = vmatprep.subr.bf16.mxu0 %v2158
  %2259 = vmatpush1.bf16.msra.mxu0 %v2157
  %2260 = vmatprep.subr.bf16.mxu0 %v2162
  %2261 = vmatpush1.bf16.msra.mxu0 %v2161
  %2262 = vmatprep.subr.bf16.mxu0 %v2166
  %2263 = vmatpush1.bf16.msra.mxu0 %v2165
  %2264 = vmatprep.subr.bf16.mxu0 %v2170
  %2265 = vmatpush1.bf16.msra.mxu0 %v2169
  %2266 = vmatprep.subr.bf16.mxu0 %v2174
  %2267 = vmatpush1.bf16.msra.mxu0 %v2173
  %2268 = vmatprep.subr.bf16.mxu0 %v2178
  %2269 = vmatpush1.bf16.msra.mxu0 %v2177
  %2270 = vmatprep.subr.bf16.mxu0 %v2182
  %2271 = vmatpush1.bf16.msra.mxu0 %v2181
  %2272 = vmatprep.subr.bf16.mxu0 0
  %2273 = vmatpush1.bf16.msra.mxu0 0
  %2274 = vmatprep.subr.bf16.mxu0 0
  %2275 = vmatpush1.bf16.msra.mxu0 0
  %2276 = vmatprep.subr.bf16.mxu0 0
  %2277 = vmatpush1.bf16.msra.mxu0 0
  %2278 = vmatprep.subr.bf16.mxu0 0
  %2279 = vmatpush1.bf16.msra.mxu0 0
  %2280 = vmatprep.subr.bf16.mxu0 0
  %2281 = vmatpush1.bf16.msra.mxu0 0
  %2282 = vmatprep.subr.bf16.mxu0 0
  %2283 = vmatpush1.bf16.msra.mxu0 0
  %2284 = vmatprep.subr.bf16.mxu0 0
  %2285 = vmatpush1.bf16.msra.mxu0 0
  %2286 = vmatprep.subr.bf16.mxu0 0
  %2287 = vmatpush1.bf16.msra.mxu0 0
  %2288 = vmatprep.mubr.bf16.mxu0 0
  %2289 = vmatmul.mubr.bf16.gmra.mrb[0].mxu0 %v2022
  %v2290 = vpop.f32.mrb[0].mxu0
  %v2291 = vadd.f32 0.0, %v2290
  %v2292 = vpop.f32.mrb[0].mxu0
  %v2293 = vadd.f32 0.0, %v2292
  %v2294 = vpop.f32.mrb[0].mxu0
  %v2295 = vpop.f32.mrb[0].mxu0
  %2296 = vdwg.mxu0
  %v2297 = vadd.f32 %v2018, %v2250
  %v2298 = vadd.f32 %v2019, %v2252
  %v2299 = vadd.f32 %v2020, %v2291
  %v2300 = vadd.f32 %v2021, %v2293
  %v2301 = vxor.u32 %v2297, 2147483648
  %v2302 = vxor.u32 %v2298, 2147483648
  %v2303 = vxor.u32 %v2299, 2147483648
  %v2304 = vmul.f32 %v2301, 1.442695
  %v2305 = vpow.pop %v2304
  %v2306 = vmul.f32 %v2302, 1.442695
  %v2307 = vpow.pop %v2306
  %v2308 = vmul.f32 %v2303, 1.442695
  %v2309 = vpow.pop %v2308
  %v2310 = vadd.f32 %v2305, 1.0
  %v2311 = vadd.f32 %v2307, 1.0
  %v2312 = vadd.f32 %v2309, 1.0
  %v2313 = vrcp.pop %v2310
  %v2314 = vmul.f32 1.0, %v2313
  %v2315 = vrcp.pop %v2311
  %v2316 = vmul.f32 1.0, %v2315
  %v2317 = vrcp.pop %v2312
  %v2318 = vmul.f32 1.0, %v2317
  %v2319 = vtanh.pop %v2300
  %v2320 = vmul.f32 %v2316, %v2010
  %v2321 = vmul.f32 %v2314, %v2319
  %v2322 = vadd.f32 %v2320, %v2321
  %v2323 = vtanh.pop %v2322
  %v2324 = vmul.f32 %v2318, %v2323
  %s2325 = scalar_lea.vmem [#allocation3], 40
  %2326 = vst [vmem:[%s2325] sm:$0xff] %v2324
  %s2327 = smul.u32 6, 4
  %s2328 = smul.addr %s2327, 8
  %s2329 = scalar_lea.vmem [#allocation2], %s2328
  %v2330 = vld [vmem:[%s2329] sm:$0xff]
  %v2331 = vld [vmem:[%s2329 + $0x8] sm:$0xff]
  %v2332 = vld [vmem:[%s2329 + $0x10] sm:$0xff]
  %v2333 = vld [vmem:[%s2329 + $0x18] sm:$0xff]
  %v2334 = vpack.c.bf16 %v2324, %v2324
  %v2335 = vld [vmem:[%s2] sm:$0xff]
  %v2336 = vld [vmem:[%s2 + $0x8] sm:$0xff]
  %v2337 = vld [vmem:[%s2 + $0x10] sm:$0xff]
  %v2338 = vld [vmem:[%s2 + $0x18] sm:$0xff]
  %v2339 = vld [vmem:[%s2 + $0x20] sm:$0xff]
  %v2340 = vld [vmem:[%s2 + $0x28] sm:$0xff]
  %v2341 = vld [vmem:[%s2 + $0x30] sm:$0xff]
  %v2342 = vld [vmem:[%s2 + $0x38] sm:$0xff]
  %v2343 = vld [vmem:[%s2 + $0x40] sm:$0xff]
  %v2344 = vld [vmem:[%s2 + $0x48] sm:$0xff]
  %v2345 = vld [vmem:[%s2 + $0x50] sm:$0xff]
  %v2346 = vld [vmem:[%s2 + $0x58] sm:$0xff]
  %v2347 = vld [vmem:[%s2 + $0x60] sm:$0xff]
  %v2348 = vld [vmem:[%s2 + $0x68] sm:$0xff]
  %v2349 = vld [vmem:[%s2 + $0x70] sm:$0xff]
  %v2350 = vld [vmem:[%s2 + $0x78] sm:$0xff]
  %v2351 = vld [vmem:[%s2 + $0x80] sm:$0xff]
  %v2352 = vld [vmem:[%s2 + $0x88] sm:$0xff]
  %v2353 = vld [vmem:[%s2 + $0x90] sm:$0xff]
  %v2354 = vld [vmem:[%s2 + $0x98] sm:$0xff]
  %v2355 = vld [vmem:[%s2 + $0xa0] sm:$0xff]
  %v2356 = vld [vmem:[%s2 + $0xa8] sm:$0xff]
  %v2357 = vld [vmem:[%s2 + $0xb0] sm:$0xff]
  %v2358 = vld [vmem:[%s2 + $0xb8] sm:$0xff]
  %v2359 = vld [vmem:[%s2 + $0xc0] sm:$0xff]
  %v2360 = vld [vmem:[%s2 + $0xc8] sm:$0xff]
  %v2361 = vld [vmem:[%s2 + $0xd0] sm:$0xff]
  %v2362 = vld [vmem:[%s2 + $0xd8] sm:$0xff]
  %v2363 = vld [vmem:[%s2 + $0xe0] sm:$0xff]
  %v2364 = vld [vmem:[%s2 + $0xe8] sm:$0xff]
  %v2365 = vld [vmem:[%s2 + $0xf0] sm:$0xff]
  %v2366 = vld [vmem:[%s2 + $0xf8] sm:$0xff]
  %v2399 = vunpack.c.l.b16 %v2335
  %v2400 = vunpack.c.h.b16 %v2335
  %v2401 = vunpack.c.l.b16 %v2336
  %v2402 = vunpack.c.h.b16 %v2336
  %v2403 = vunpack.c.l.b16 %v2337
  %v2404 = vunpack.c.h.b16 %v2337
  %v2405 = vunpack.c.l.b16 %v2338
  %v2406 = vunpack.c.h.b16 %v2338
  %v2407 = vunpack.c.l.b16 %v2339
  %v2408 = vunpack.c.h.b16 %v2339
  %v2409 = vunpack.c.l.b16 %v2340
  %v2410 = vunpack.c.h.b16 %v2340
  %v2411 = vunpack.c.l.b16 %v2341
  %v2412 = vunpack.c.h.b16 %v2341
  %v2413 = vunpack.c.l.b16 %v2342
  %v2414 = vunpack.c.h.b16 %v2342
  %v2415 = vunpack.c.l.b16 %v2343
  %v2416 = vunpack.c.h.b16 %v2343
  %v2417 = vunpack.c.l.b16 %v2344
  %v2418 = vunpack.c.h.b16 %v2344
  %v2419 = vunpack.c.l.b16 %v2345
  %v2420 = vunpack.c.h.b16 %v2345
  %v2421 = vunpack.c.l.b16 %v2346
  %v2422 = vunpack.c.h.b16 %v2346
  %v2423 = vunpack.c.l.b16 %v2347
  %v2424 = vunpack.c.h.b16 %v2347
  %v2425 = vunpack.c.l.b16 %v2348
  %v2426 = vunpack.c.h.b16 %v2348
  %v2427 = vunpack.c.l.b16 %v2349
  %v2428 = vunpack.c.h.b16 %v2349
  %v2429 = vunpack.c.l.b16 %v2350
  %v2430 = vunpack.c.h.b16 %v2350
  %v2431 = vunpack.c.l.b16 %v2351
  %v2432 = vunpack.c.h.b16 %v2351
  %v2433 = vunpack.c.l.b16 %v2352
  %v2434 = vunpack.c.h.b16 %v2352
  %v2435 = vunpack.c.l.b16 %v2353
  %v2436 = vunpack.c.h.b16 %v2353
  %v2437 = vunpack.c.l.b16 %v2354
  %v2438 = vunpack.c.h.b16 %v2354
  %v2439 = vunpack.c.l.b16 %v2355
  %v2440 = vunpack.c.h.b16 %v2355
  %v2441 = vunpack.c.l.b16 %v2356
  %v2442 = vunpack.c.h.b16 %v2356
  %v2443 = vunpack.c.l.b16 %v2357
  %v2444 = vunpack.c.h.b16 %v2357
  %v2445 = vunpack.c.l.b16 %v2358
  %v2446 = vunpack.c.h.b16 %v2358
  %v2447 = vunpack.c.l.b16 %v2359
  %v2448 = vunpack.c.h.b16 %v2359
  %v2449 = vunpack.c.l.b16 %v2360
  %v2450 = vunpack.c.h.b16 %v2360
  %v2451 = vunpack.c.l.b16 %v2361
  %v2452 = vunpack.c.h.b16 %v2361
  %v2453 = vunpack.c.l.b16 %v2362
  %v2454 = vunpack.c.h.b16 %v2362
  %v2455 = vunpack.c.l.b16 %v2363
  %v2456 = vunpack.c.h.b16 %v2363
  %v2457 = vunpack.c.l.b16 %v2364
  %v2458 = vunpack.c.h.b16 %v2364
  %v2459 = vunpack.c.l.b16 %v2365
  %v2460 = vunpack.c.h.b16 %v2365
  %v2461 = vunpack.c.l.b16 %v2366
  %v2462 = vunpack.c.h.b16 %v2366
  %v2463 = vpack.c.b16 %v2403, %v2399
  %v2464 = vpack.c.b16 %v2404, %v2400
  %v2465 = vpack.c.b16 %v2405, %v2401
  %v2466 = vpack.c.b16 %v2406, %v2402
  %v2467 = vpack.c.b16 %v2411, %v2407
  %v2468 = vpack.c.b16 %v2412, %v2408
  %v2469 = vpack.c.b16 %v2413, %v2409
  %v2470 = vpack.c.b16 %v2414, %v2410
  %v2471 = vpack.c.b16 %v2419, %v2415
  %v2472 = vpack.c.b16 %v2420, %v2416
  %v2473 = vpack.c.b16 %v2421, %v2417
  %v2474 = vpack.c.b16 %v2422, %v2418
  %v2475 = vpack.c.b16 %v2427, %v2423
  %v2476 = vpack.c.b16 %v2428, %v2424
  %v2477 = vpack.c.b16 %v2429, %v2425
  %v2478 = vpack.c.b16 %v2430, %v2426
  %v2479 = vpack.c.b16 %v2435, %v2431
  %v2480 = vpack.c.b16 %v2436, %v2432
  %v2481 = vpack.c.b16 %v2437, %v2433
  %v2482 = vpack.c.b16 %v2438, %v2434
  %v2483 = vpack.c.b16 %v2443, %v2439
  %v2484 = vpack.c.b16 %v2444, %v2440
  %v2485 = vpack.c.b16 %v2445, %v2441
  %v2486 = vpack.c.b16 %v2446, %v2442
  %v2487 = vpack.c.b16 %v2451, %v2447
  %v2488 = vpack.c.b16 %v2452, %v2448
  %v2489 = vpack.c.b16 %v2453, %v2449
  %v2490 = vpack.c.b16 %v2454, %v2450
  %v2491 = vpack.c.b16 %v2459, %v2455
  %v2492 = vpack.c.b16 %v2460, %v2456
  %v2493 = vpack.c.b16 %v2461, %v2457
  %v2494 = vpack.c.b16 %v2462, %v2458
  %2527 = vmatprep.subr.bf16.mxu0 %v2464
  %2528 = vmatpush1.bf16.msra.mxu0 %v2463
  %2529 = vmatprep.subr.bf16.mxu0 %v2468
  %2530 = vmatpush1.bf16.msra.mxu0 %v2467
  %2531 = vmatprep.subr.bf16.mxu0 %v2472
  %2532 = vmatpush1.bf16.msra.mxu0 %v2471
  %2533 = vmatprep.subr.bf16.mxu0 %v2476
  %2534 = vmatpush1.bf16.msra.mxu0 %v2475
  %2535 = vmatprep.subr.bf16.mxu0 %v2480
  %2536 = vmatpush1.bf16.msra.mxu0 %v2479
  %2537 = vmatprep.subr.bf16.mxu0 %v2484
  %2538 = vmatpush1.bf16.msra.mxu0 %v2483
  %2539 = vmatprep.subr.bf16.mxu0 %v2488
  %2540 = vmatpush1.bf16.msra.mxu0 %v2487
  %2541 = vmatprep.subr.bf16.mxu0 %v2492
  %2542 = vmatpush1.bf16.msra.mxu0 %v2491
  %2543 = vmatprep.subr.bf16.mxu0 0
  %2544 = vmatpush1.bf16.msra.mxu0 0
  %2545 = vmatprep.subr.bf16.mxu0 0
  %2546 = vmatpush1.bf16.msra.mxu0 0
  %2547 = vmatprep.subr.bf16.mxu0 0
  %2548 = vmatpush1.bf16.msra.mxu0 0
  %2549 = vmatprep.subr.bf16.mxu0 0
  %2550 = vmatpush1.bf16.msra.mxu0 0
  %2551 = vmatprep.subr.bf16.mxu0 0
  %2552 = vmatpush1.bf16.msra.mxu0 0
  %2553 = vmatprep.subr.bf16.mxu0 0
  %2554 = vmatpush1.bf16.msra.mxu0 0
  %2555 = vmatprep.subr.bf16.mxu0 0
  %2556 = vmatpush1.bf16.msra.mxu0 0
  %2557 = vmatprep.subr.bf16.mxu0 0
  %2558 = vmatpush1.bf16.msra.mxu0 0
  %2559 = vmatprep.mubr.bf16.mxu0 0
  %2560 = vmatmul.mubr.bf16.gmra.mrb[0].mxu0 %v2334
  %v2561 = vpop.f32.mrb[0].mxu0
  %v2562 = vadd.f32 0.0, %v2561
  %v2563 = vpop.f32.mrb[0].mxu0
  %v2564 = vadd.f32 0.0, %v2563
  %v2565 = vpop.f32.mrb[0].mxu0
  %v2566 = vpop.f32.mrb[0].mxu0
  %2567 = vdwg.mxu0
  %2568 = vmatprep.subr.bf16.mxu0 %v2466
  %2569 = vmatpush1.bf16.msra.mxu0 %v2465
  %2570 = vmatprep.subr.bf16.mxu0 %v2470
  %2571 = vmatpush1.bf16.msra.mxu0 %v2469
  %2572 = vmatprep.subr.bf16.mxu0 %v2474
  %2573 = vmatpush1.bf16.msra.mxu0 %v2473
  %2574 = vmatprep.subr.bf16.mxu0 %v2478
  %2575 = vmatpush1.bf16.msra.mxu0 %v2477
  %2576 = vmatprep.subr.bf16.mxu0 %v2482
  %2577 = vmatpush1.bf16.msra.mxu0 %v2481
  %2578 = vmatprep.subr.bf16.mxu0 %v2486
  %2579 = vmatpush1.bf16.msra.mxu0 %v2485
  %2580 = vmatprep.subr.bf16.mxu0 %v2490
  %2581 = vmatpush1.bf16.msra.mxu0 %v2489
  %2582 = vmatprep.subr.bf16.mxu0 %v2494
  %2583 = vmatpush1.bf16.msra.mxu0 %v2493
  %2584 = vmatprep.subr.bf16.mxu0 0
  %2585 = vmatpush1.bf16.msra.mxu0 0
  %2586 = vmatprep.subr.bf16.mxu0 0
  %2587 = vmatpush1.bf16.msra.mxu0 0
  %2588 = vmatprep.subr.bf16.mxu0 0
  %2589 = vmatpush1.bf16.msra.mxu0 0
  %2590 = vmatprep.subr.bf16.mxu0 0
  %2591 = vmatpush1.bf16.msra.mxu0 0
  %2592 = vmatprep.subr.bf16.mxu0 0
  %2593 = vmatpush1.bf16.msra.mxu0 0
  %2594 = vmatprep.subr.bf16.mxu0 0
  %2595 = vmatpush1.bf16.msra.mxu0 0
  %2596 = vmatprep.subr.bf16.mxu0 0
  %2597 = vmatpush1.bf16.msra.mxu0 0
  %2598 = vmatprep.subr.bf16.mxu0 0
  %2599 = vmatpush1.bf16.msra.mxu0 0
  %2600 = vmatprep.mubr.bf16.mxu0 0
  %2601 = vmatmul.mubr.bf16.gmra.mrb[0].mxu0 %v2334
  %v2602 = vpop.f32.mrb[0].mxu0
  %v2603 = vadd.f32 0.0, %v2602
  %v2604 = vpop.f32.mrb[0].mxu0
  %v2605 = vadd.f32 0.0, %v2604
  %v2606 = vpop.f32.mrb[0].mxu0
  %v2607 = vpop.f32.mrb[0].mxu0
  %2608 = vdwg.mxu0
  %v2609 = vadd.f32 %v2330, %v2562
  %v2610 = vadd.f32 %v2331, %v2564
  %v2611 = vadd.f32 %v2332, %v2603
  %v2612 = vadd.f32 %v2333, %v2605
  %v2613 = vxor.u32 %v2609, 2147483648
  %v2614 = vxor.u32 %v2610, 2147483648
  %v2615 = vxor.u32 %v2611, 2147483648
  %v2616 = vmul.f32 %v2613, 1.442695
  %v2617 = vpow.pop %v2616
  %v2618 = vmul.f32 %v2614, 1.442695
  %v2619 = vpow.pop %v2618
  %v2620 = vmul.f32 %v2615, 1.442695
  %v2621 = vpow.pop %v2620
  %v2622 = vadd.f32 %v2617, 1.0
  %v2623 = vadd.f32 %v2619, 1.0
  %v2624 = vadd.f32 %v2621, 1.0
  %v2625 = vrcp.pop %v2622
  %v2626 = vmul.f32 1.0, %v2625
  %v2627 = vrcp.pop %v2623
  %v2628 = vmul.f32 1.0, %v2627
  %v2629 = vrcp.pop %v2624
  %v2630 = vmul.f32 1.0, %v2629
  %v2631 = vtanh.pop %v2612
  %v2632 = vmul.f32 %v2628, %v2322
  %v2633 = vmul.f32 %v2626, %v2631
  %v2634 = vadd.f32 %v2632, %v2633
  %v2635 = vtanh.pop %v2634
  %v2636 = vmul.f32 %v2630, %v2635
  %s2637 = scalar_lea.vmem [#allocation3], 48
  %2638 = vst [vmem:[%s2637] sm:$0xff] %v2636
  %s2639 = smul.u32 7, 4
  %s2640 = smul.addr %s2639, 8
  %s2641 = scalar_lea.vmem [#allocation2], %s2640
  %v2642 = vld [vmem:[%s2641] sm:$0xff]
  %v2643 = vld [vmem:[%s2641 + $0x8] sm:$0xff]
  %v2644 = vld [vmem:[%s2641 + $0x10] sm:$0xff]
  %v2645 = vld [vmem:[%s2641 + $0x18] sm:$0xff]
  %v2646 = vpack.c.bf16 %v2636, %v2636
  %v2647 = vld [vmem:[%s2] sm:$0xff]
  %v2648 = vld [vmem:[%s2 + $0x8] sm:$0xff]
  %v2649 = vld [vmem:[%s2 + $0x10] sm:$0xff]
  %v2650 = vld [vmem:[%s2 + $0x18] sm:$0xff]
  %v2651 = vld [vmem:[%s2 + $0x20] sm:$0xff]
  %v2652 = vld [vmem:[%s2 + $0x28] sm:$0xff]
  %v2653 = vld [vmem:[%s2 + $0x30] sm:$0xff]
  %v2654 = vld [vmem:[%s2 + $0x38] sm:$0xff]
  %v2655 = vld [vmem:[%s2 + $0x40] sm:$0xff]
  %v2656 = vld [vmem:[%s2 + $0x48] sm:$0xff]
  %v2657 = vld [vmem:[%s2 + $0x50] sm:$0xff]
  %v2658 = vld [vmem:[%s2 + $0x58] sm:$0xff]
  %v2659 = vld [vmem:[%s2 + $0x60] sm:$0xff]
  %v2660 = vld [vmem:[%s2 + $0x68] sm:$0xff]
  %v2661 = vld [vmem:[%s2 + $0x70] sm:$0xff]
  %v2662 = vld [vmem:[%s2 + $0x78] sm:$0xff]
  %v2663 = vld [vmem:[%s2 + $0x80] sm:$0xff]
  %v2664 = vld [vmem:[%s2 + $0x88] sm:$0xff]
  %v2665 = vld [vmem:[%s2 + $0x90] sm:$0xff]
  %v2666 = vld [vmem:[%s2 + $0x98] sm:$0xff]
  %v2667 = vld [vmem:[%s2 + $0xa0] sm:$0xff]
  %v2668 = vld [vmem:[%s2 + $0xa8] sm:$0xff]
  %v2669 = vld [vmem:[%s2 + $0xb0] sm:$0xff]
  %v2670 = vld [vmem:[%s2 + $0xb8] sm:$0xff]
  %v2671 = vld [vmem:[%s2 + $0xc0] sm:$0xff]
  %v2672 = vld [vmem:[%s2 + $0xc8] sm:$0xff]
  %v2673 = vld [vmem:[%s2 + $0xd0] sm:$0xff]
  %v2674 = vld [vmem:[%s2 + $0xd8] sm:$0xff]
  %v2675 = vld [vmem:[%s2 + $0xe0] sm:$0xff]
  %v2676 = vld [vmem:[%s2 + $0xe8] sm:$0xff]
  %v2677 = vld [vmem:[%s2 + $0xf0] sm:$0xff]
  %v2678 = vld [vmem:[%s2 + $0xf8] sm:$0xff]
  %v2711 = vunpack.c.l.b16 %v2647
  %v2712 = vunpack.c.h.b16 %v2647
  %v2713 = vunpack.c.l.b16 %v2648
  %v2714 = vunpack.c.h.b16 %v2648
  %v2715 = vunpack.c.l.b16 %v2649
  %v2716 = vunpack.c.h.b16 %v2649
  %v2717 = vunpack.c.l.b16 %v2650
  %v2718 = vunpack.c.h.b16 %v2650
  %v2719 = vunpack.c.l.b16 %v2651
  %v2720 = vunpack.c.h.b16 %v2651
  %v2721 = vunpack.c.l.b16 %v2652
  %v2722 = vunpack.c.h.b16 %v2652
  %v2723 = vunpack.c.l.b16 %v2653
  %v2724 = vunpack.c.h.b16 %v2653
  %v2725 = vunpack.c.l.b16 %v2654
  %v2726 = vunpack.c.h.b16 %v2654
  %v2727 = vunpack.c.l.b16 %v2655
  %v2728 = vunpack.c.h.b16 %v2655
  %v2729 = vunpack.c.l.b16 %v2656
  %v2730 = vunpack.c.h.b16 %v2656
  %v2731 = vunpack.c.l.b16 %v2657
  %v2732 = vunpack.c.h.b16 %v2657
  %v2733 = vunpack.c.l.b16 %v2658
  %v2734 = vunpack.c.h.b16 %v2658
  %v2735 = vunpack.c.l.b16 %v2659
  %v2736 = vunpack.c.h.b16 %v2659
  %v2737 = vunpack.c.l.b16 %v2660
  %v2738 = vunpack.c.h.b16 %v2660
  %v2739 = vunpack.c.l.b16 %v2661
  %v2740 = vunpack.c.h.b16 %v2661
  %v2741 = vunpack.c.l.b16 %v2662
  %v2742 = vunpack.c.h.b16 %v2662
  %v2743 = vunpack.c.l.b16 %v2663
  %v2744 = vunpack.c.h.b16 %v2663
  %v2745 = vunpack.c.l.b16 %v2664
  %v2746 = vunpack.c.h.b16 %v2664
  %v2747 = vunpack.c.l.b16 %v2665
  %v2748 = vunpack.c.h.b16 %v2665
  %v2749 = vunpack.c.l.b16 %v2666
  %v2750 = vunpack.c.h.b16 %v2666
  %v2751 = vunpack.c.l.b16 %v2667
  %v2752 = vunpack.c.h.b16 %v2667
  %v2753 = vunpack.c.l.b16 %v2668
  %v2754 = vunpack.c.h.b16 %v2668
  %v2755 = vunpack.c.l.b16 %v2669
  %v2756 = vunpack.c.h.b16 %v2669
  %v2757 = vunpack.c.l.b16 %v2670
  %v2758 = vunpack.c.h.b16 %v2670
  %v2759 = vunpack.c.l.b16 %v2671
  %v2760 = vunpack.c.h.b16 %v2671
  %v2761 = vunpack.c.l.b16 %v2672
  %v2762 = vunpack.c.h.b16 %v2672
  %v2763 = vunpack.c.l.b16 %v2673
  %v2764 = vunpack.c.h.b16 %v2673
  %v2765 = vunpack.c.l.b16 %v2674
  %v2766 = vunpack.c.h.b16 %v2674
  %v2767 = vunpack.c.l.b16 %v2675
  %v2768 = vunpack.c.h.b16 %v2675
  %v2769 = vunpack.c.l.b16 %v2676
  %v2770 = vunpack.c.h.b16 %v2676
  %v2771 = vunpack.c.l.b16 %v2677
  %v2772 = vunpack.c.h.b16 %v2677
  %v2773 = vunpack.c.l.b16 %v2678
  %v2774 = vunpack.c.h.b16 %v2678
  %v2775 = vpack.c.b16 %v2715, %v2711
  %v2776 = vpack.c.b16 %v2716, %v2712
  %v2777 = vpack.c.b16 %v2717, %v2713
  %v2778 = vpack.c.b16 %v2718, %v2714
  %v2779 = vpack.c.b16 %v2723, %v2719
  %v2780 = vpack.c.b16 %v2724, %v2720
  %v2781 = vpack.c.b16 %v2725, %v2721
  %v2782 = vpack.c.b16 %v2726, %v2722
  %v2783 = vpack.c.b16 %v2731, %v2727
  %v2784 = vpack.c.b16 %v2732, %v2728
  %v2785 = vpack.c.b16 %v2733, %v2729
  %v2786 = vpack.c.b16 %v2734, %v2730
  %v2787 = vpack.c.b16 %v2739, %v2735
  %v2788 = vpack.c.b16 %v2740, %v2736
  %v2789 = vpack.c.b16 %v2741, %v2737
  %v2790 = vpack.c.b16 %v2742, %v2738
  %v2791 = vpack.c.b16 %v2747, %v2743
  %v2792 = vpack.c.b16 %v2748, %v2744
  %v2793 = vpack.c.b16 %v2749, %v2745
  %v2794 = vpack.c.b16 %v2750, %v2746
  %v2795 = vpack.c.b16 %v2755, %v2751
  %v2796 = vpack.c.b16 %v2756, %v2752
  %v2797 = vpack.c.b16 %v2757, %v2753
  %v2798 = vpack.c.b16 %v2758, %v2754
  %v2799 = vpack.c.b16 %v2763, %v2759
  %v2800 = vpack.c.b16 %v2764, %v2760
  %v2801 = vpack.c.b16 %v2765, %v2761
  %v2802 = vpack.c.b16 %v2766, %v2762
  %v2803 = vpack.c.b16 %v2771, %v2767
  %v2804 = vpack.c.b16 %v2772, %v2768
  %v2805 = vpack.c.b16 %v2773, %v2769
  %v2806 = vpack.c.b16 %v2774, %v2770
  %2839 = vmatprep.subr.bf16.mxu0 %v2776
  %2840 = vmatpush1.bf16.msra.mxu0 %v2775
  %2841 = vmatprep.subr.bf16.mxu0 %v2780
  %2842 = vmatpush1.bf16.msra.mxu0 %v2779
  %2843 = vmatprep.subr.bf16.mxu0 %v2784
  %2844 = vmatpush1.bf16.msra.mxu0 %v2783
  %2845 = vmatprep.subr.bf16.mxu0 %v2788
  %2846 = vmatpush1.bf16.msra.mxu0 %v2787
  %2847 = vmatprep.subr.bf16.mxu0 %v2792
  %2848 = vmatpush1.bf16.msra.mxu0 %v2791
  %2849 = vmatprep.subr.bf16.mxu0 %v2796
  %2850 = vmatpush1.bf16.msra.mxu0 %v2795
  %2851 = vmatprep.subr.bf16.mxu0 %v2800
  %2852 = vmatpush1.bf16.msra.mxu0 %v2799
  %2853 = vmatprep.subr.bf16.mxu0 %v2804
  %2854 = vmatpush1.bf16.msra.mxu0 %v2803
  %2855 = vmatprep.subr.bf16.mxu0 0
  %2856 = vmatpush1.bf16.msra.mxu0 0
  %2857 = vmatprep.subr.bf16.mxu0 0
  %2858 = vmatpush1.bf16.msra.mxu0 0
  %2859 = vmatprep.subr.bf16.mxu0 0
  %2860 = vmatpush1.bf16.msra.mxu0 0
  %2861 = vmatprep.subr.bf16.mxu0 0
  %2862 = vmatpush1.bf16.msra.mxu0 0
  %2863 = vmatprep.subr.bf16.mxu0 0
  %2864 = vmatpush1.bf16.msra.mxu0 0
  %2865 = vmatprep.subr.bf16.mxu0 0
  %2866 = vmatpush1.bf16.msra.mxu0 0
  %2867 = vmatprep.subr.bf16.mxu0 0
  %2868 = vmatpush1.bf16.msra.mxu0 0
  %2869 = vmatprep.subr.bf16.mxu0 0
  %2870 = vmatpush1.bf16.msra.mxu0 0
  %2871 = vmatprep.mubr.bf16.mxu0 0
  %2872 = vmatmul.mubr.bf16.gmra.mrb[0].mxu0 %v2646
  %v2873 = vpop.f32.mrb[0].mxu0
  %v2874 = vadd.f32 0.0, %v2873
  %v2875 = vpop.f32.mrb[0].mxu0
  %v2876 = vadd.f32 0.0, %v2875
  %v2877 = vpop.f32.mrb[0].mxu0
  %v2878 = vpop.f32.mrb[0].mxu0
  %2879 = vdwg.mxu0
  %2880 = vmatprep.subr.bf16.mxu0 %v2778
  %2881 = vmatpush1.bf16.msra.mxu0 %v2777
  %2882 = vmatprep.subr.bf16.mxu0 %v2782
  %2883 = vmatpush1.bf16.msra.mxu0 %v2781
  %2884 = vmatprep.subr.bf16.mxu0 %v2786
  %2885 = vmatpush1.bf16.msra.mxu0 %v2785
  %2886 = vmatprep.subr.bf16.mxu0 %v2790
  %2887 = vmatpush1.bf16.msra.mxu0 %v2789
  %2888 = vmatprep.subr.bf16.mxu0 %v2794
  %2889 = vmatpush1.bf16.msra.mxu0 %v2793
  %2890 = vmatprep.subr.bf16.mxu0 %v2798
  %2891 = vmatpush1.bf16.msra.mxu0 %v2797
  %2892 = vmatprep.subr.bf16.mxu0 %v2802
  %2893 = vmatpush1.bf16.msra.mxu0 %v2801
  %2894 = vmatprep.subr.bf16.mxu0 %v2806
  %2895 = vmatpush1.bf16.msra.mxu0 %v2805
  %2896 = vmatprep.subr.bf16.mxu0 0
  %2897 = vmatpush1.bf16.msra.mxu0 0
  %2898 = vmatprep.subr.bf16.mxu0 0
  %2899 = vmatpush1.bf16.msra.mxu0 0
  %2900 = vmatprep.subr.bf16.mxu0 0
  %2901 = vmatpush1.bf16.msra.mxu0 0
  %2902 = vmatprep.subr.bf16.mxu0 0
  %2903 = vmatpush1.bf16.msra.mxu0 0
  %2904 = vmatprep.subr.bf16.mxu0 0
  %2905 = vmatpush1.bf16.msra.mxu0 0
  %2906 = vmatprep.subr.bf16.mxu0 0
  %2907 = vmatpush1.bf16.msra.mxu0 0
  %2908 = vmatprep.subr.bf16.mxu0 0
  %2909 = vmatpush1.bf16.msra.mxu0 0
  %2910 = vmatprep.subr.bf16.mxu0 0
  %2911 = vmatpush1.bf16.msra.mxu0 0
  %2912 = vmatprep.mubr.bf16.mxu0 0
  %2913 = vmatmul.mubr.bf16.gmra.mrb[0].mxu0 %v2646
  %v2914 = vpop.f32.mrb[0].mxu0
  %v2915 = vadd.f32 0.0, %v2914
  %v2916 = vpop.f32.mrb[0].mxu0
  %v2917 = vadd.f32 0.0, %v2916
  %v2918 = vpop.f32.mrb[0].mxu0
  %v2919 = vpop.f32.mrb[0].mxu0
  %2920 = vdwg.mxu0
  %v2921 = vadd.f32 %v2642, %v2874
  %v2922 = vadd.f32 %v2643, %v2876
  %v2923 = vadd.f32 %v2644, %v2915
  %v2924 = vadd.f32 %v2645, %v2917
  %v2925 = vxor.u32 %v2921, 2147483648
  %v2926 = vxor.u32 %v2922, 2147483648
  %v2927 = vxor.u32 %v2923, 2147483648
  %v2928 = vmul.f32 %v2925, 1.442695
  %v2929 = vpow.pop %v2928
  %v2930 = vmul.f32 %v2926, 1.442695
  %v2931 = vpow.pop %v2930
  %v2932 = vmul.f32 %v2927, 1.442695
  %v2933 = vpow.pop %v2932
  %v2934 = vadd.f32 %v2929, 1.0
  %v2935 = vadd.f32 %v2931, 1.0
  %v2936 = vadd.f32 %v2933, 1.0
  %v2937 = vrcp.pop %v2934
  %v2938 = vmul.f32 1.0, %v2937
  %v2939 = vrcp.pop %v2935
  %v2940 = vmul.f32 1.0, %v2939
  %v2941 = vrcp.pop %v2936
  %v2942 = vmul.f32 1.0, %v2941
  %v2943 = vtanh.pop %v2924
  %v2944 = vmul.f32 %v2940, %v2634
  %v2945 = vmul.f32 %v2938, %v2943
  %v2946 = vadd.f32 %v2944, %v2945
  %v2947 = vtanh.pop %v2946
  %v2948 = vmul.f32 %v2942, %v2947
  %s2949 = scalar_lea.vmem [#allocation3], 56
  %2950 = vst [vmem:[%s2949] sm:$0xff] %v2948
  %v2951 = vld [vmem:[#allocation3] sm:$0xff]
  %v2952 = vld [vmem:[#allocation3 + $0x8] sm:$0xff]
  %v2953 = vld [vmem:[#allocation3 + $0x10] sm:$0xff]
  %v2954 = vld [vmem:[#allocation3 + $0x18] sm:$0xff]
  %v2955 = vld [vmem:[#allocation3 + $0x20] sm:$0xff]
  %v2956 = vld [vmem:[#allocation3 + $0x28] sm:$0xff]
  %v2957 = vld [vmem:[#allocation3 + $0x30] sm:$0xff]
  %v2958 = vld [vmem:[#allocation3 + $0x38] sm:$0xff]
  %v2959 = vpack.c.bf16 %v2952, %v2951
  %v2960 = vpack.c.bf16 %v2954, %v2953
  %v2961 = vpack.c.bf16 %v2956, %v2955
  %v2962 = vpack.c.bf16 %v2958, %v2957
  %v2963 = vld [vmem:[%s4] sm:$0xff]
  %v2964 = vld [vmem:[%s4 + $0x8] sm:$0xff]
  %v2965 = vld [vmem:[%s4 + $0x10] sm:$0xff]
  %v2966 = vld [vmem:[%s4 + $0x18] sm:$0xff]
  %v2967 = vld [vmem:[%s4 + $0x20] sm:$0xff]
  %v2968 = vld [vmem:[%s4 + $0x28] sm:$0xff]
  %v2969 = vld [vmem:[%s4 + $0x30] sm:$0xff]
  %v2970 = vld [vmem:[%s4 + $0x38] sm:$0xff]
  %v2971 = vld [vmem:[%s4 + $0x40] sm:$0xff]
  %v2972 = vld [vmem:[%s4 + $0x48] sm:$0xff]
  %v2973 = vld [vmem:[%s4 + $0x50] sm:$0xff]
  %v2974 = vld [vmem:[%s4 + $0x58] sm:$0xff]
  %v2975 = vld [vmem:[%s4 + $0x60] sm:$0xff]
  %v2976 = vld [vmem:[%s4 + $0x68] sm:$0xff]
  %v2977 = vld [vmem:[%s4 + $0x70] sm:$0xff]
  %v2978 = vld [vmem:[%s4 + $0x78] sm:$0xff]
  %v2979 = vld [vmem:[%s4 + $0x80] sm:$0xff]
  %v2980 = vld [vmem:[%s4 + $0x88] sm:$0xff]
  %v2981 = vld [vmem:[%s4 + $0x90] sm:$0xff]
  %v2982 = vld [vmem:[%s4 + $0x98] sm:$0xff]
  %v2983 = vld [vmem:[%s4 + $0xa0] sm:$0xff]
  %v2984 = vld [vmem:[%s4 + $0xa8] sm:$0xff]
  %v2985 = vld [vmem:[%s4 + $0xb0] sm:$0xff]
  %v2986 = vld [vmem:[%s4 + $0xb8] sm:$0xff]
  %v2987 = vld [vmem:[%s4 + $0xc0] sm:$0xff]
  %v2988 = vld [vmem:[%s4 + $0xc8] sm:$0xff]
  %v2989 = vld [vmem:[%s4 + $0xd0] sm:$0xff]
  %v2990 = vld [vmem:[%s4 + $0xd8] sm:$0xff]
  %v2991 = vld [vmem:[%s4 + $0xe0] sm:$0xff]
  %v2992 = vld [vmem:[%s4 + $0xe8] sm:$0xff]
  %v2993 = vld [vmem:[%s4 + $0xf0] sm:$0xff]
  %v2994 = vld [vmem:[%s4 + $0xf8] sm:$0xff]
  %v2995 = vld [vmem:[%s6] sm:$0xf]
  %v2997 = vlaneseq
  %v2998 = vshrl.u32 %v2997, 7
  %v2999 = vsub.s32 0, %v2998
  %v3000 = vrot.slane %v2995, %v2999
  %v3001 = vlaneseq
  %v3002 = vshrl.u32 %v3001, 7
  %v3003 = vsub.s32 1, %v3002
  %v3004 = vrot.slane %v2995, %v3003
  %v3005 = vlaneseq
  %v3006 = vshrl.u32 %v3005, 7
  %v3007 = vsub.s32 2, %v3006
  %v3008 = vrot.slane %v2995, %v3007
  %v3009 = vlaneseq
  %v3010 = vshrl.u32 %v3009, 7
  %v3011 = vsub.s32 3, %v3010
  %v3012 = vrot.slane %v2995, %v3011
  %v3049 = vunpack.c.l.b16 %v2963
  %v3050 = vunpack.c.h.b16 %v2963
  %v3051 = vunpack.c.l.b16 %v2964
  %v3052 = vunpack.c.h.b16 %v2964
  %v3053 = vunpack.c.l.b16 %v2965
  %v3054 = vunpack.c.h.b16 %v2965
  %v3055 = vunpack.c.l.b16 %v2966
  %v3056 = vunpack.c.h.b16 %v2966
  %v3057 = vunpack.c.l.b16 %v2967
  %v3058 = vunpack.c.h.b16 %v2967
  %v3059 = vunpack.c.l.b16 %v2968
  %v3060 = vunpack.c.h.b16 %v2968
  %v3061 = vunpack.c.l.b16 %v2969
  %v3062 = vunpack.c.h.b16 %v2969
  %v3063 = vunpack.c.l.b16 %v2970
  %v3064 = vunpack.c.h.b16 %v2970
  %v3065 = vunpack.c.l.b16 %v2971
  %v3066 = vunpack.c.h.b16 %v2971
  %v3067 = vunpack.c.l.b16 %v2972
  %v3068 = vunpack.c.h.b16 %v2972
  %v3069 = vunpack.c.l.b16 %v2973
  %v3070 = vunpack.c.h.b16 %v2973
  %v3071 = vunpack.c.l.b16 %v2974
  %v3072 = vunpack.c.h.b16 %v2974
  %v3073 = vunpack.c.l.b16 %v2975
  %v3074 = vunpack.c.h.b16 %v2975
  %v3075 = vunpack.c.l.b16 %v2976
  %v3076 = vunpack.c.h.b16 %v2976
  %v3077 = vunpack.c.l.b16 %v2977
  %v3078 = vunpack.c.h.b16 %v2977
  %v3079 = vunpack.c.l.b16 %v2978
  %v3080 = vunpack.c.h.b16 %v2978
  %v3081 = vunpack.c.l.b16 %v2979
  %v3082 = vunpack.c.h.b16 %v2979
  %v3083 = vunpack.c.l.b16 %v2980
  %v3084 = vunpack.c.h.b16 %v2980
  %v3085 = vunpack.c.l.b16 %v2981
  %v3086 = vunpack.c.h.b16 %v2981
  %v3087 = vunpack.c.l.b16 %v2982
  %v3088 = vunpack.c.h.b16 %v2982
  %v3089 = vunpack.c.l.b16 %v2983
  %v3090 = vunpack.c.h.b16 %v2983
  %v3091 = vunpack.c.l.b16 %v2984
  %v3092 = vunpack.c.h.b16 %v2984
  %v3093 = vunpack.c.l.b16 %v2985
  %v3094 = vunpack.c.h.b16 %v2985
  %v3095 = vunpack.c.l.b16 %v2986
  %v3096 = vunpack.c.h.b16 %v2986
  %v3097 = vunpack.c.l.b16 %v2987
  %v3098 = vunpack.c.h.b16 %v2987
  %v3099 = vunpack.c.l.b16 %v2988
  %v3100 = vunpack.c.h.b16 %v2988
  %v3101 = vunpack.c.l.b16 %v2989
  %v3102 = vunpack.c.h.b16 %v2989
  %v3103 = vunpack.c.l.b16 %v2990
  %v3104 = vunpack.c.h.b16 %v2990
  %v3105 = vunpack.c.l.b16 %v2991
  %v3106 = vunpack.c.h.b16 %v2991
  %v3107 = vunpack.c.l.b16 %v2992
  %v3108 = vunpack.c.h.b16 %v2992
  %v3109 = vunpack.c.l.b16 %v2993
  %v3110 = vunpack.c.h.b16 %v2993
  %v3111 = vunpack.c.l.b16 %v2994
  %v3112 = vunpack.c.h.b16 %v2994
  %v3113 = vpack.c.b16 %v3053, %v3049
  %v3114 = vpack.c.b16 %v3054, %v3050
  %v3115 = vpack.c.b16 %v3055, %v3051
  %v3116 = vpack.c.b16 %v3056, %v3052
  %v3117 = vpack.c.b16 %v3061, %v3057
  %v3118 = vpack.c.b16 %v3062, %v3058
  %v3119 = vpack.c.b16 %v3063, %v3059
  %v3120 = vpack.c.b16 %v3064, %v3060
  %v3121 = vpack.c.b16 %v3069, %v3065
  %v3122 = vpack.c.b16 %v3070, %v3066
  %v3123 = vpack.c.b16 %v3071, %v3067
  %v3124 = vpack.c.b16 %v3072, %v3068
  %v3125 = vpack.c.b16 %v3077, %v3073
  %v3126 = vpack.c.b16 %v3078, %v3074
  %v3127 = vpack.c.b16 %v3079, %v3075
  %v3128 = vpack.c.b16 %v3080, %v3076
  %v3129 = vpack.c.b16 %v3085, %v3081
  %v3130 = vpack.c.b16 %v3086, %v3082
  %v3131 = vpack.c.b16 %v3087, %v3083
  %v3132 = vpack.c.b16 %v3088, %v3084
  %v3133 = vpack.c.b16 %v3093, %v3089
  %v3134 = vpack.c.b16 %v3094, %v3090
  %v3135 = vpack.c.b16 %v3095, %v3091
  %v3136 = vpack.c.b16 %v3096, %v3092
  %v3137 = vpack.c.b16 %v3101, %v3097
  %v3138 = vpack.c.b16 %v3102, %v3098
  %v3139 = vpack.c.b16 %v3103, %v3099
  %v3140 = vpack.c.b16 %v3104, %v3100
  %v3141 = vpack.c.b16 %v3109, %v3105
  %v3142 = vpack.c.b16 %v3110, %v3106
  %v3143 = vpack.c.b16 %v3111, %v3107
  %v3144 = vpack.c.b16 %v3112, %v3108
  %3177 = vmatprep.subr.bf16.mxu0 %v3114
  %3178 = vmatpush1.bf16.msra.mxu0 %v3113
  %3179 = vmatprep.subr.bf16.mxu0 %v3118
  %3180 = vmatpush1.bf16.msra.mxu0 %v3117
  %3181 = vmatprep.subr.bf16.mxu0 %v3122
  %3182 = vmatpush1.bf16.msra.mxu0 %v3121
  %3183 = vmatprep.subr.bf16.mxu0 %v3126
  %3184 = vmatpush1.bf16.msra.mxu0 %v3125
  %3185 = vmatprep.subr.bf16.mxu0 %v3130
  %3186 = vmatpush1.bf16.msra.mxu0 %v3129
  %3187 = vmatprep.subr.bf16.mxu0 %v3134
  %3188 = vmatpush1.bf16.msra.mxu0 %v3133
  %3189 = vmatprep.subr.bf16.mxu0 %v3138
  %3190 = vmatpush1.bf16.msra.mxu0 %v3137
  %3191 = vmatprep.subr.bf16.mxu0 %v3142
  %3192 = vmatpush1.bf16.msra.mxu0 %v3141
  %3193 = vmatprep.subr.bf16.mxu0 0
  %3194 = vmatpush1.bf16.msra.mxu0 0
  %3195 = vmatprep.subr.bf16.mxu0 0
  %3196 = vmatpush1.bf16.msra.mxu0 0
  %3197 = vmatprep.subr.bf16.mxu0 0
  %3198 = vmatpush1.bf16.msra.mxu0 0
  %3199 = vmatprep.subr.bf16.mxu0 0
  %3200 = vmatpush1.bf16.msra.mxu0 0
  %3201 = vmatprep.subr.bf16.mxu0 0
  %3202 = vmatpush1.bf16.msra.mxu0 0
  %3203 = vmatprep.subr.bf16.mxu0 0
  %3204 = vmatpush1.bf16.msra.mxu0 0
  %3205 = vmatprep.subr.bf16.mxu0 0
  %3206 = vmatpush1.bf16.msra.mxu0 0
  %3207 = vmatprep.subr.bf16.mxu0 0
  %3208 = vmatpush1.bf16.msra.mxu0 0
  %3209 = vmatprep.mubr.bf16.mxu0 0
  %3210 = vmatmul.mubr.bf16.gmra.mrb[0].mxu0 %v2959
  %v3211 = vpop.f32.mrb[0].mxu0
  %v3212 = vadd.f32 %v3000, %v3211
  %v3213 = vpop.f32.mrb[0].mxu0
  %v3214 = vadd.f32 %v3004, %v3213
  %v3215 = vpop.f32.mrb[0].mxu0
  %v3216 = vadd.f32 %v3000, %v3215
  %v3217 = vpop.f32.mrb[0].mxu0
  %v3218 = vadd.f32 %v3004, %v3217
  %3219 = vmatprep.mubr.bf16.mxu0 0
  %3220 = vmatmul.mubr.bf16.gmra.mrb[0].mxu0 %v2960
  %v3221 = vpop.f32.mrb[0].mxu0
  %v3222 = vadd.f32 %v3000, %v3221
  %v3223 = vpop.f32.mrb[0].mxu0
  %v3224 = vadd.f32 %v3004, %v3223
  %v3225 = vpop.f32.mrb[0].mxu0
  %v3226 = vadd.f32 %v3000, %v3225
  %v3227 = vpop.f32.mrb[0].mxu0
  %v3228 = vadd.f32 %v3004, %v3227
  %3229 = vmatprep.mubr.bf16.mxu0 0
  %3230 = vmatmul.mubr.bf16.gmra.mrb[0].mxu0 %v2961
  %v3231 = vpop.f32.mrb[0].mxu0
  %v3232 = vadd.f32 %v3000, %v3231
  %v3233 = vpop.f32.mrb[0].mxu0
  %v3234 = vadd.f32 %v3004, %v3233
  %v3235 = vpop.f32.mrb[0].mxu0
  %v3236 = vadd.f32 %v3000, %v3235
  %v3237 = vpop.f32.mrb[0].mxu0
  %v3238 = vadd.f32 %v3004, %v3237
  %3239 = vmatprep.mubr.bf16.mxu0 0
  %3240 = vmatmul.mubr.bf16.gmra.mrb[0].mxu0 %v2962
  %v3241 = vpop.f32.mrb[0].mxu0
  %v3242 = vadd.f32 %v3000, %v3241
  %v3243 = vpop.f32.mrb[0].mxu0
  %v3244 = vadd.f32 %v3004, %v3243
  %v3245 = vpop.f32.mrb[0].mxu0
  %v3246 = vadd.f32 %v3000, %v3245
  %v3247 = vpop.f32.mrb[0].mxu0
  %v3248 = vadd.f32 %v3004, %v3247
  %3249 = vdwg.mxu0
  %3250 = vmatprep.subr.bf16.mxu0 %v3116
  %3251 = vmatpush1.bf16.msra.mxu0 %v3115
  %3252 = vmatprep.subr.bf16.mxu0 %v3120
  %3253 = vmatpush1.bf16.msra.mxu0 %v3119
  %3254 = vmatprep.subr.bf16.mxu0 %v3124
  %3255 = vmatpush1.bf16.msra.mxu0 %v3123
  %3256 = vmatprep.subr.bf16.mxu0 %v3128
  %3257 = vmatpush1.bf16.msra.mxu0 %v3127
  %3258 = vmatprep.subr.bf16.mxu0 %v3132
  %3259 = vmatpush1.bf16.msra.mxu0 %v3131
  %3260 = vmatprep.subr.bf16.mxu0 %v3136
  %3261 = vmatpush1.bf16.msra.mxu0 %v3135
  %3262 = vmatprep.subr.bf16.mxu0 %v3140
  %3263 = vmatpush1.bf16.msra.mxu0 %v3139
  %3264 = vmatprep.subr.bf16.mxu0 %v3144
  %3265 = vmatpush1.bf16.msra.mxu0 %v3143
  %3266 = vmatprep.subr.bf16.mxu0 0
  %3267 = vmatpush1.bf16.msra.mxu0 0
  %3268 = vmatprep.subr.bf16.mxu0 0
  %3269 = vmatpush1.bf16.msra.mxu0 0
  %3270 = vmatprep.subr.bf16.mxu0 0
  %3271 = vmatpush1.bf16.msra.mxu0 0
  %3272 = vmatprep.subr.bf16.mxu0 0
  %3273 = vmatpush1.bf16.msra.mxu0 0
  %3274 = vmatprep.subr.bf16.mxu0 0
  %3275 = vmatpush1.bf16.msra.mxu0 0
  %3276 = vmatprep.subr.bf16.mxu0 0
  %3277 = vmatpush1.bf16.msra.mxu0 0
  %3278 = vmatprep.subr.bf16.mxu0 0
  %3279 = vmatpush1.bf16.msra.mxu0 0
  %3280 = vmatprep.subr.bf16.mxu0 0
  %3281 = vmatpush1.bf16.msra.mxu0 0
  %3282 = vmatprep.mubr.bf16.mxu0 0
  %3283 = vmatmul.mubr.bf16.gmra.mrb[0].mxu0 %v2959
  %v3284 = vpop.f32.mrb[0].mxu0
  %v3285 = vadd.f32 %v3008, %v3284
  %v3286 = vpop.f32.mrb[0].mxu0
  %v3287 = vadd.f32 %v3012, %v3286
  %v3288 = vpop.f32.mrb[0].mxu0
  %v3289 = vadd.f32 %v3008, %v3288
  %v3290 = vpop.f32.mrb[0].mxu0
  %v3291 = vadd.f32 %v3012, %v3290
  %3292 = vmatprep.mubr.bf16.mxu0 0
  %3293 = vmatmul.mubr.bf16.gmra.mrb[0].mxu0 %v2960
  %v3294 = vpop.f32.mrb[0].mxu0
  %v3295 = vadd.f32 %v3008, %v3294
  %v3296 = vpop.f32.mrb[0].mxu0
  %v3297 = vadd.f32 %v3012, %v3296
  %v3298 = vpop.f32.mrb[0].mxu0
  %v3299 = vadd.f32 %v3008, %v3298
  %v3300 = vpop.f32.mrb[0].mxu0
  %v3301 = vadd.f32 %v3012, %v3300
  %3302 = vmatprep.mubr.bf16.mxu0 0
  %3303 = vmatmul.mubr.bf16.gmra.mrb[0].mxu0 %v2961
  %v3304 = vpop.f32.mrb[0].mxu0
  %v3305 = vadd.f32 %v3008, %v3304
  %v3306 = vpop.f32.mrb[0].mxu0
  %v3307 = vadd.f32 %v3012, %v3306
  %v3308 = vpop.f32.mrb[0].mxu0
  %v3309 = vadd.f32 %v3008, %v3308
  %v3310 = vpop.f32.mrb[0].mxu0
  %v3311 = vadd.f32 %v3012, %v3310
  %3312 = vmatprep.mubr.bf16.mxu0 0
  %3313 = vmatmul.mubr.bf16.gmra.mrb[0].mxu0 %v2962
  %v3314 = vpop.f32.mrb[0].mxu0
  %v3315 = vadd.f32 %v3008, %v3314
  %v3316 = vpop.f32.mrb[0].mxu0
  %v3317 = vadd.f32 %v3012, %v3316
  %v3318 = vpop.f32.mrb[0].mxu0
  %v3319 = vadd.f32 %v3008, %v3318
  %v3320 = vpop.f32.mrb[0].mxu0
  %v3321 = vadd.f32 %v3012, %v3320
  %3322 = vdwg.mxu0
  %3323 = vst [vmem:[#allocation2] sm:$0xff] %v3212
  %3324 = vst [vmem:[#allocation2 + $0x8] sm:$0xff] %v3214
  %3325 = vst [vmem:[#allocation2 + $0x10] sm:$0xff] %v3285
  %3326 = vst [vmem:[#allocation2 + $0x18] sm:$0xff] %v3287
  %3327 = vst [vmem:[#allocation2 + $0x20] sm:$0xff] %v3216
  %3328 = vst [vmem:[#allocation2 + $0x28] sm:$0xff] %v3218
  %3329 = vst [vmem:[#allocation2 + $0x30] sm:$0xff] %v3289
  %3330 = vst [vmem:[#allocation2 + $0x38] sm:$0xff] %v3291
  %3331 = vst [vmem:[#allocation2 + $0x40] sm:$0xff] %v3222
  %3332 = vst [vmem:[#allocation2 + $0x48] sm:$0xff] %v3224
  %3333 = vst [vmem:[#allocation2 + $0x50] sm:$0xff] %v3295
  %3334 = vst [vmem:[#allocation2 + $0x58] sm:$0xff] %v3297
  %3335 = vst [vmem:[#allocation2 + $0x60] sm:$0xff] %v3226
  %3336 = vst [vmem:[#allocation2 + $0x68] sm:$0xff] %v3228
  %3337 = vst [vmem:[#allocation2 + $0x70] sm:$0xff] %v3299
  %3338 = vst [vmem:[#allocation2 + $0x78] sm:$0xff] %v3301
  %3339 = vst [vmem:[#allocation2 + $0x80] sm:$0xff] %v3232
  %3340 = vst [vmem:[#allocation2 + $0x88] sm:$0xff] %v3234
  %3341 = vst [vmem:[#allocation2 + $0x90] sm:$0xff] %v3305
  %3342 = vst [vmem:[#allocation2 + $0x98] sm:$0xff] %v3307
  %3343 = vst [vmem:[#allocation2 + $0xa0] sm:$0xff] %v3236
  %3344 = vst [vmem:[#allocation2 + $0xa8] sm:$0xff] %v3238
  %3345 = vst [vmem:[#allocation2 + $0xb0] sm:$0xff] %v3309
  %3346 = vst [vmem:[#allocation2 + $0xb8] sm:$0xff] %v3311
  %3347 = vst [vmem:[#allocation2 + $0xc0] sm:$0xff] %v3242
  %3348 = vst [vmem:[#allocation2 + $0xc8] sm:$0xff] %v3244
  %3349 = vst [vmem:[#allocation2 + $0xd0] sm:$0xff] %v3315
  %3350 = vst [vmem:[#allocation2 + $0xd8] sm:$0xff] %v3317
  %3351 = vst [vmem:[#allocation2 + $0xe0] sm:$0xff] %v3246
  %3352 = vst [vmem:[#allocation2 + $0xe8] sm:$0xff] %v3248
  %3353 = vst [vmem:[#allocation2 + $0xf0] sm:$0xff] %v3319
  %3354 = vst [vmem:[#allocation2 + $0xf8] sm:$0xff] %v3321
  %v3355 = vld [vmem:[%s459] sm:$0xff]
  %v3356 = vld [vmem:[%s459 + $0x8] sm:$0xff]
  %v3357 = vld [vmem:[%s459 + $0x10] sm:$0xff]
  %v3358 = vld [vmem:[%s459 + $0x18] sm:$0xff]
  %v3359 = vld [vmem:[%s5] sm:$0xff]
  %v3360 = vld [vmem:[%s5 + $0x8] sm:$0xff]
  %v3361 = vld [vmem:[%s5 + $0x10] sm:$0xff]
  %v3362 = vld [vmem:[%s5 + $0x18] sm:$0xff]
  %v3363 = vld [vmem:[%s5 + $0x20] sm:$0xff]
  %v3364 = vld [vmem:[%s5 + $0x28] sm:$0xff]
  %v3365 = vld [vmem:[%s5 + $0x30] sm:$0xff]
  %v3366 = vld [vmem:[%s5 + $0x38] sm:$0xff]
  %v3367 = vld [vmem:[%s5 + $0x40] sm:$0xff]
  %v3368 = vld [vmem:[%s5 + $0x48] sm:$0xff]
  %v3369 = vld [vmem:[%s5 + $0x50] sm:$0xff]
  %v3370 = vld [vmem:[%s5 + $0x58] sm:$0xff]
  %v3371 = vld [vmem:[%s5 + $0x60] sm:$0xff]
  %v3372 = vld [vmem:[%s5 + $0x68] sm:$0xff]
  %v3373 = vld [vmem:[%s5 + $0x70] sm:$0xff]
  %v3374 = vld [vmem:[%s5 + $0x78] sm:$0xff]
  %v3375 = vld [vmem:[%s5 + $0x80] sm:$0xff]
  %v3376 = vld [vmem:[%s5 + $0x88] sm:$0xff]
  %v3377 = vld [vmem:[%s5 + $0x90] sm:$0xff]
  %v3378 = vld [vmem:[%s5 + $0x98] sm:$0xff]
  %v3379 = vld [vmem:[%s5 + $0xa0] sm:$0xff]
  %v3380 = vld [vmem:[%s5 + $0xa8] sm:$0xff]
  %v3381 = vld [vmem:[%s5 + $0xb0] sm:$0xff]
  %v3382 = vld [vmem:[%s5 + $0xb8] sm:$0xff]
  %v3383 = vld [vmem:[%s5 + $0xc0] sm:$0xff]
  %v3384 = vld [vmem:[%s5 + $0xc8] sm:$0xff]
  %v3385 = vld [vmem:[%s5 + $0xd0] sm:$0xff]
  %v3386 = vld [vmem:[%s5 + $0xd8] sm:$0xff]
  %v3387 = vld [vmem:[%s5 + $0xe0] sm:$0xff]
  %v3388 = vld [vmem:[%s5 + $0xe8] sm:$0xff]
  %v3389 = vld [vmem:[%s5 + $0xf0] sm:$0xff]
  %v3390 = vld [vmem:[%s5 + $0xf8] sm:$0xff]
  %v3423 = vunpack.c.l.b16 %v3359
  %v3424 = vunpack.c.h.b16 %v3359
  %v3425 = vunpack.c.l.b16 %v3360
  %v3426 = vunpack.c.h.b16 %v3360
  %v3427 = vunpack.c.l.b16 %v3361
  %v3428 = vunpack.c.h.b16 %v3361
  %v3429 = vunpack.c.l.b16 %v3362
  %v3430 = vunpack.c.h.b16 %v3362
  %v3431 = vunpack.c.l.b16 %v3363
  %v3432 = vunpack.c.h.b16 %v3363
  %v3433 = vunpack.c.l.b16 %v3364
  %v3434 = vunpack.c.h.b16 %v3364
  %v3435 = vunpack.c.l.b16 %v3365
  %v3436 = vunpack.c.h.b16 %v3365
  %v3437 = vunpack.c.l.b16 %v3366
  %v3438 = vunpack.c.h.b16 %v3366
  %v3439 = vunpack.c.l.b16 %v3367
  %v3440 = vunpack.c.h.b16 %v3367
  %v3441 = vunpack.c.l.b16 %v3368
  %v3442 = vunpack.c.h.b16 %v3368
  %v3443 = vunpack.c.l.b16 %v3369
  %v3444 = vunpack.c.h.b16 %v3369
  %v3445 = vunpack.c.l.b16 %v3370
  %v3446 = vunpack.c.h.b16 %v3370
  %v3447 = vunpack.c.l.b16 %v3371
  %v3448 = vunpack.c.h.b16 %v3371
  %v3449 = vunpack.c.l.b16 %v3372
  %v3450 = vunpack.c.h.b16 %v3372
  %v3451 = vunpack.c.l.b16 %v3373
  %v3452 = vunpack.c.h.b16 %v3373
  %v3453 = vunpack.c.l.b16 %v3374
  %v3454 = vunpack.c.h.b16 %v3374
  %v3455 = vunpack.c.l.b16 %v3375
  %v3456 = vunpack.c.h.b16 %v3375
  %v3457 = vunpack.c.l.b16 %v3376
  %v3458 = vunpack.c.h.b16 %v3376
  %v3459 = vunpack.c.l.b16 %v3377
  %v3460 = vunpack.c.h.b16 %v3377
  %v3461 = vunpack.c.l.b16 %v3378
  %v3462 = vunpack.c.h.b16 %v3378
  %v3463 = vunpack.c.l.b16 %v3379
  %v3464 = vunpack.c.h.b16 %v3379
  %v3465 = vunpack.c.l.b16 %v3380
  %v3466 = vunpack.c.h.b16 %v3380
  %v3467 = vunpack.c.l.b16 %v3381
  %v3468 = vunpack.c.h.b16 %v3381
  %v3469 = vunpack.c.l.b16 %v3382
  %v3470 = vunpack.c.h.b16 %v3382
  %v3471 = vunpack.c.l.b16 %v3383
  %v3472 = vunpack.c.h.b16 %v3383
  %v3473 = vunpack.c.l.b16 %v3384
  %v3474 = vunpack.c.h.b16 %v3384
  %v3475 = vunpack.c.l.b16 %v3385
  %v3476 = vunpack.c.h.b16 %v3385
  %v3477 = vunpack.c.l.b16 %v3386
  %v3478 = vunpack.c.h.b16 %v3386
  %v3479 = vunpack.c.l.b16 %v3387
  %v3480 = vunpack.c.h.b16 %v3387
  %v3481 = vunpack.c.l.b16 %v3388
  %v3482 = vunpack.c.h.b16 %v3388
  %v3483 = vunpack.c.l.b16 %v3389
  %v3484 = vunpack.c.h.b16 %v3389
  %v3485 = vunpack.c.l.b16 %v3390
  %v3486 = vunpack.c.h.b16 %v3390
  %v3487 = vpack.c.b16 %v3427, %v3423
  %v3488 = vpack.c.b16 %v3428, %v3424
  %v3489 = vpack.c.b16 %v3429, %v3425
  %v3490 = vpack.c.b16 %v3430, %v3426
  %v3491 = vpack.c.b16 %v3435, %v3431
  %v3492 = vpack.c.b16 %v3436, %v3432
  %v3493 = vpack.c.b16 %v3437, %v3433
  %v3494 = vpack.c.b16 %v3438, %v3434
  %v3495 = vpack.c.b16 %v3443, %v3439
  %v3496 = vpack.c.b16 %v3444, %v3440
  %v3497 = vpack.c.b16 %v3445, %v3441
  %v3498 = vpack.c.b16 %v3446, %v3442
  %v3499 = vpack.c.b16 %v3451, %v3447
  %v3500 = vpack.c.b16 %v3452, %v3448
  %v3501 = vpack.c.b16 %v3453, %v3449
  %v3502 = vpack.c.b16 %v3454, %v3450
  %v3503 = vpack.c.b16 %v3459, %v3455
  %v3504 = vpack.c.b16 %v3460, %v3456
  %v3505 = vpack.c.b16 %v3461, %v3457
  %v3506 = vpack.c.b16 %v3462, %v3458
  %v3507 = vpack.c.b16 %v3467, %v3463
  %v3508 = vpack.c.b16 %v3468, %v3464
  %v3509 = vpack.c.b16 %v3469, %v3465
  %v3510 = vpack.c.b16 %v3470, %v3466
  %v3511 = vpack.c.b16 %v3475, %v3471
  %v3512 = vpack.c.b16 %v3476, %v3472
  %v3513 = vpack.c.b16 %v3477, %v3473
  %v3514 = vpack.c.b16 %v3478, %v3474
  %v3515 = vpack.c.b16 %v3483, %v3479
  %v3516 = vpack.c.b16 %v3484, %v3480
  %v3517 = vpack.c.b16 %v3485, %v3481
  %v3518 = vpack.c.b16 %v3486, %v3482
  %3551 = vmatprep.subr.bf16.mxu0 %v3488
  %3552 = vmatpush1.bf16.msra.mxu0 %v3487
  %3553 = vmatprep.subr.bf16.mxu0 %v3492
  %3554 = vmatpush1.bf16.msra.mxu0 %v3491
  %3555 = vmatprep.subr.bf16.mxu0 %v3496
  %3556 = vmatpush1.bf16.msra.mxu0 %v3495
  %3557 = vmatprep.subr.bf16.mxu0 %v3500
  %3558 = vmatpush1.bf16.msra.mxu0 %v3499
  %3559 = vmatprep.subr.bf16.mxu0 %v3504
  %3560 = vmatpush1.bf16.msra.mxu0 %v3503
  %3561 = vmatprep.subr.bf16.mxu0 %v3508
  %3562 = vmatpush1.bf16.msra.mxu0 %v3507
  %3563 = vmatprep.subr.bf16.mxu0 %v3512
  %3564 = vmatpush1.bf16.msra.mxu0 %v3511
  %3565 = vmatprep.subr.bf16.mxu0 %v3516
  %3566 = vmatpush1.bf16.msra.mxu0 %v3515
  %3567 = vmatprep.subr.bf16.mxu0 0
  %3568 = vmatpush1.bf16.msra.mxu0 0
  %3569 = vmatprep.subr.bf16.mxu0 0
  %3570 = vmatpush1.bf16.msra.mxu0 0
  %3571 = vmatprep.subr.bf16.mxu0 0
  %3572 = vmatpush1.bf16.msra.mxu0 0
  %3573 = vmatprep.subr.bf16.mxu0 0
  %3574 = vmatpush1.bf16.msra.mxu0 0
  %3575 = vmatprep.subr.bf16.mxu0 0
  %3576 = vmatpush1.bf16.msra.mxu0 0
  %3577 = vmatprep.subr.bf16.mxu0 0
  %3578 = vmatpush1.bf16.msra.mxu0 0
  %3579 = vmatprep.subr.bf16.mxu0 0
  %3580 = vmatpush1.bf16.msra.mxu0 0
  %3581 = vmatprep.subr.bf16.mxu0 0
  %3582 = vmatpush1.bf16.msra.mxu0 0
  %3583 = vmatprep.mubr.bf16.mxu0 0
  %3584 = vmatmul.mubr.bf16.gmra.mrb[0].mxu0 0
  %v3585 = vpop.f32.mrb[0].mxu0
  %v3586 = vadd.f32 0.0, %v3585
  %v3587 = vpop.f32.mrb[0].mxu0
  %v3588 = vadd.f32 0.0, %v3587
  %v3589 = vpop.f32.mrb[0].mxu0
  %v3590 = vpop.f32.mrb[0].mxu0
  %3591 = vdwg.mxu0
  %3592 = vmatprep.subr.bf16.mxu0 %v3490
  %3593 = vmatpush1.bf16.msra.mxu0 %v3489
  %3594 = vmatprep.subr.bf16.mxu0 %v3494
  %3595 = vmatpush1.bf16.msra.mxu0 %v3493
  %3596 = vmatprep.subr.bf16.mxu0 %v3498
  %3597 = vmatpush1.bf16.msra.mxu0 %v3497
  %3598 = vmatprep.subr.bf16.mxu0 %v3502
  %3599 = vmatpush1.bf16.msra.mxu0 %v3501
  %3600 = vmatprep.subr.bf16.mxu0 %v3506
  %3601 = vmatpush1.bf16.msra.mxu0 %v3505
  %3602 = vmatprep.subr.bf16.mxu0 %v3510
  %3603 = vmatpush1.bf16.msra.mxu0 %v3509
  %3604 = vmatprep.subr.bf16.mxu0 %v3514
  %3605 = vmatpush1.bf16.msra.mxu0 %v3513
  %3606 = vmatprep.subr.bf16.mxu0 %v3518
  %3607 = vmatpush1.bf16.msra.mxu0 %v3517
  %3608 = vmatprep.subr.bf16.mxu0 0
  %3609 = vmatpush1.bf16.msra.mxu0 0
  %3610 = vmatprep.subr.bf16.mxu0 0
  %3611 = vmatpush1.bf16.msra.mxu0 0
  %3612 = vmatprep.subr.bf16.mxu0 0
  %3613 = vmatpush1.bf16.msra.mxu0 0
  %3614 = vmatprep.subr.bf16.mxu0 0
  %3615 = vmatpush1.bf16.msra.mxu0 0
  %3616 = vmatprep.subr.bf16.mxu0 0
  %3617 = vmatpush1.bf16.msra.mxu0 0
  %3618 = vmatprep.subr.bf16.mxu0 0
  %3619 = vmatpush1.bf16.msra.mxu0 0
  %3620 = vmatprep.subr.bf16.mxu0 0
  %3621 = vmatpush1.bf16.msra.mxu0 0
  %3622 = vmatprep.subr.bf16.mxu0 0
  %3623 = vmatpush1.bf16.msra.mxu0 0
  %3624 = vmatprep.mubr.bf16.mxu0 0
  %3625 = vmatmul.mubr.bf16.gmra.mrb[0].mxu0 0
  %v3626 = vpop.f32.mrb[0].mxu0
  %v3627 = vadd.f32 0.0, %v3626
  %v3628 = vpop.f32.mrb[0].mxu0
  %v3629 = vadd.f32 0.0, %v3628
  %v3630 = vpop.f32.mrb[0].mxu0
  %v3631 = vpop.f32.mrb[0].mxu0
  %3632 = vdwg.mxu0
  %v3633 = vadd.f32 %v3355, %v3586
  %v3634 = vadd.f32 %v3356, %v3588
  %v3635 = vadd.f32 %v3357, %v3627
  %v3636 = vadd.f32 %v3358, %v3629
  %v3637 = vxor.u32 %v3633, 2147483648
  %v3638 = vxor.u32 %v3634, 2147483648
  %v3639 = vxor.u32 %v3635, 2147483648
  %v3640 = vmul.f32 %v3637, 1.442695
  %v3641 = vpow.pop %v3640
  %v3642 = vmul.f32 %v3638, 1.442695
  %v3643 = vpow.pop %v3642
  %v3644 = vmul.f32 %v3639, 1.442695
  %v3645 = vpow.pop %v3644
  %v3646 = vadd.f32 %v3641, 1.0
  %v3647 = vadd.f32 %v3643, 1.0
  %v3648 = vadd.f32 %v3645, 1.0
  %v3649 = vrcp.pop %v3646
  %v3650 = vmul.f32 1.0, %v3649
  %v3651 = vrcp.pop %v3647
  %v3652 = vmul.f32 1.0, %v3651
  %v3653 = vrcp.pop %v3648
  %v3654 = vmul.f32 1.0, %v3653
  %v3655 = vtanh.pop %v3636
  %v3656 = vmul.f32 %v3652, 0.0
  %v3657 = vmul.f32 %v3650, %v3655
  %v3658 = vadd.f32 %v3656, %v3657
  %v3659 = vtanh.pop %v3658
  %v3660 = vmul.f32 %v3654, %v3659
  %v3661 = vld [vmem:[%s769] sm:$0xff]
  %v3662 = vld [vmem:[%s769 + $0x8] sm:$0xff]
  %v3663 = vld [vmem:[%s769 + $0x10] sm:$0xff]
  %v3664 = vld [vmem:[%s769 + $0x18] sm:$0xff]
  %v3665 = vpack.c.bf16 %v3660, %v3660
  %3666 = vmatprep.subr.bf16.mxu0 %v3488
  %3667 = vmatpush1.bf16.msra.mxu0 %v3487
  %3668 = vmatprep.subr.bf16.mxu0 %v3492
  %3669 = vmatpush1.bf16.msra.mxu0 %v3491
  %3670 = vmatprep.subr.bf16.mxu0 %v3496
  %3671 = vmatpush1.bf16.msra.mxu0 %v3495
  %3672 = vmatprep.subr.bf16.mxu0 %v3500
  %3673 = vmatpush1.bf16.msra.mxu0 %v3499
  %3674 = vmatprep.subr.bf16.mxu0 %v3504
  %3675 = vmatpush1.bf16.msra.mxu0 %v3503
  %3676 = vmatprep.subr.bf16.mxu0 %v3508
  %3677 = vmatpush1.bf16.msra.mxu0 %v3507
  %3678 = vmatprep.subr.bf16.mxu0 %v3512
  %3679 = vmatpush1.bf16.msra.mxu0 %v3511
  %3680 = vmatprep.subr.bf16.mxu0 %v3516
  %3681 = vmatpush1.bf16.msra.mxu0 %v3515
  %3682 = vmatprep.subr.bf16.mxu0 0
  %3683 = vmatpush1.bf16.msra.mxu0 0
  %3684 = vmatprep.subr.bf16.mxu0 0
  %3685 = vmatpush1.bf16.msra.mxu0 0
  %3686 = vmatprep.subr.bf16.mxu0 0
  %3687 = vmatpush1.bf16.msra.mxu0 0
  %3688 = vmatprep.subr.bf16.mxu0 0
  %3689 = vmatpush1.bf16.msra.mxu0 0
  %3690 = vmatprep.subr.bf16.mxu0 0
  %3691 = vmatpush1.bf16.msra.mxu0 0
  %3692 = vmatprep.subr.bf16.mxu0 0
  %3693 = vmatpush1.bf16.msra.mxu0 0
  %3694 = vmatprep.subr.bf16.mxu0 0
  %3695 = vmatpush1.bf16.msra.mxu0 0
  %3696 = vmatprep.subr.bf16.mxu0 0
  %3697 = vmatpush1.bf16.msra.mxu0 0
  %3698 = vmatprep.mubr.bf16.mxu0 0
  %3699 = vmatmul.mubr.bf16.gmra.mrb[0].mxu0 %v3665
  %v3700 = vpop.f32.mrb[0].mxu0
  %v3701 = vadd.f32 0.0, %v3700
  %v3702 = vpop.f32.mrb[0].mxu0
  %v3703 = vadd.f32 0.0, %v3702
  %v3704 = vpop.f32.mrb[0].mxu0
  %v3705 = vpop.f32.mrb[0].mxu0
  %3706 = vdwg.mxu0
  %3707 = vmatprep.subr.bf16.mxu0 %v3490
  %3708 = vmatpush1.bf16.msra.mxu0 %v3489
  %3709 = vmatprep.subr.bf16.mxu0 %v3494
  %3710 = vmatpush1.bf16.msra.mxu0 %v3493
  %3711 = vmatprep.subr.bf16.mxu0 %v3498
  %3712 = vmatpush1.bf16.msra.mxu0 %v3497
  %3713 = vmatprep.subr.bf16.mxu0 %v3502
  %3714 = vmatpush1.bf16.msra.mxu0 %v3501
  %3715 = vmatprep.subr.bf16.mxu0 %v3506
  %3716 = vmatpush1.bf16.msra.mxu0 %v3505
  %3717 = vmatprep.subr.bf16.mxu0 %v3510
  %3718 = vmatpush1.bf16.msra.mxu0 %v3509
  %3719 = vmatprep.subr.bf16.mxu0 %v3514
  %3720 = vmatpush1.bf16.msra.mxu0 %v3513
  %3721 = vmatprep.subr.bf16.mxu0 %v3518
  %3722 = vmatpush1.bf16.msra.mxu0 %v3517
  %3723 = vmatprep.subr.bf16.mxu0 0
  %3724 = vmatpush1.bf16.msra.mxu0 0
  %3725 = vmatprep.subr.bf16.mxu0 0
  %3726 = vmatpush1.bf16.msra.mxu0 0
  %3727 = vmatprep.subr.bf16.mxu0 0
  %3728 = vmatpush1.bf16.msra.mxu0 0
  %3729 = vmatprep.subr.bf16.mxu0 0
  %3730 = vmatpush1.bf16.msra.mxu0 0
  %3731 = vmatprep.subr.bf16.mxu0 0
  %3732 = vmatpush1.bf16.msra.mxu0 0
  %3733 = vmatprep.subr.bf16.mxu0 0
  %3734 = vmatpush1.bf16.msra.mxu0 0
  %3735 = vmatprep.subr.bf16.mxu0 0
  %3736 = vmatpush1.bf16.msra.mxu0 0
  %3737 = vmatprep.subr.bf16.mxu0 0
  %3738 = vmatpush1.bf16.msra.mxu0 0
  %3739 = vmatprep.mubr.bf16.mxu0 0
  %3740 = vmatmul.mubr.bf16.gmra.mrb[0].mxu0 %v3665
  %v3741 = vpop.f32.mrb[0].mxu0
  %v3742 = vadd.f32 0.0, %v3741
  %v3743 = vpop.f32.mrb[0].mxu0
  %v3744 = vadd.f32 0.0, %v3743
  %v3745 = vpop.f32.mrb[0].mxu0
  %v3746 = vpop.f32.mrb[0].mxu0
  %3747 = vdwg.mxu0
  %v3748 = vadd.f32 %v3661, %v3701
  %v3749 = vadd.f32 %v3662, %v3703
  %v3750 = vadd.f32 %v3663, %v3742
  %v3751 = vadd.f32 %v3664, %v3744
  %v3752 = vxor.u32 %v3748, 2147483648
  %v3753 = vxor.u32 %v3749, 2147483648
  %v3754 = vxor.u32 %v3750, 2147483648
  %v3755 = vmul.f32 %v3752, 1.442695
  %v3756 = vpow.pop %v3755
  %v3757 = vmul.f32 %v3753, 1.442695
  %v3758 = vpow.pop %v3757
  %v3759 = vmul.f32 %v3754, 1.442695
  %v3760 = vpow.pop %v3759
  %v3761 = vadd.f32 %v3756, 1.0
  %v3762 = vadd.f32 %v3758, 1.0
  %v3763 = vadd.f32 %v3760, 1.0
  %v3764 = vrcp.pop %v3761
  %v3765 = vmul.f32 1.0, %v3764
  %v3766 = vrcp.pop %v3762
  %v3767 = vmul.f32 1.0, %v3766
  %v3768 = vrcp.pop %v3763
  %v3769 = vmul.f32 1.0, %v3768
  %v3770 = vtanh.pop %v3751
  %v3771 = vmul.f32 %v3767, %v3658
  %v3772 = vmul.f32 %v3765, %v3770
  %v3773 = vadd.f32 %v3771, %v3772
  %v3774 = vtanh.pop %v3773
  %v3775 = vmul.f32 %v3769, %v3774
  %v3776 = vld [vmem:[%s1081] sm:$0xff]
  %v3777 = vld [vmem:[%s1081 + $0x8] sm:$0xff]
  %v3778 = vld [vmem:[%s1081 + $0x10] sm:$0xff]
  %v3779 = vld [vmem:[%s1081 + $0x18] sm:$0xff]
  %v3780 = vpack.c.bf16 %v3775, %v3775
  %3781 = vmatprep.subr.bf16.mxu0 %v3488
  %3782 = vmatpush1.bf16.msra.mxu0 %v3487
  %3783 = vmatprep.subr.bf16.mxu0 %v3492
  %3784 = vmatpush1.bf16.msra.mxu0 %v3491
  %3785 = vmatprep.subr.bf16.mxu0 %v3496
  %3786 = vmatpush1.bf16.msra.mxu0 %v3495
  %3787 = vmatprep.subr.bf16.mxu0 %v3500
  %3788 = vmatpush1.bf16.msra.mxu0 %v3499
  %3789 = vmatprep.subr.bf16.mxu0 %v3504
  %3790 = vmatpush1.bf16.msra.mxu0 %v3503
  %3791 = vmatprep.subr.bf16.mxu0 %v3508
  %3792 = vmatpush1.bf16.msra.mxu0 %v3507
  %3793 = vmatprep.subr.bf16.mxu0 %v3512
  %3794 = vmatpush1.bf16.msra.mxu0 %v3511
  %3795 = vmatprep.subr.bf16.mxu0 %v3516
  %3796 = vmatpush1.bf16.msra.mxu0 %v3515
  %3797 = vmatprep.subr.bf16.mxu0 0
  %3798 = vmatpush1.bf16.msra.mxu0 0
  %3799 = vmatprep.subr.bf16.mxu0 0
  %3800 = vmatpush1.bf16.msra.mxu0 0
  %3801 = vmatprep.subr.bf16.mxu0 0
  %3802 = vmatpush1.bf16.msra.mxu0 0
  %3803 = vmatprep.subr.bf16.mxu0 0
  %3804 = vmatpush1.bf16.msra.mxu0 0
  %3805 = vmatprep.subr.bf16.mxu0 0
  %3806 = vmatpush1.bf16.msra.mxu0 0
  %3807 = vmatprep.subr.bf16.mxu0 0
  %3808 = vmatpush1.bf16.msra.mxu0 0
  %3809 = vmatprep.subr.bf16.mxu0 0
  %3810 = vmatpush1.bf16.msra.mxu0 0
  %3811 = vmatprep.subr.bf16.mxu0 0
  %3812 = vmatpush1.bf16.msra.mxu0 0
  %3813 = vmatprep.mubr.bf16.mxu0 0
  %3814 = vmatmul.mubr.bf16.gmra.mrb[0].mxu0 %v3780
  %v3815 = vpop.f32.mrb[0].mxu0
  %v3816 = vadd.f32 0.0, %v3815
  %v3817 = vpop.f32.mrb[0].mxu0
  %v3818 = vadd.f32 0.0, %v3817
  %v3819 = vpop.f32.mrb[0].mxu0
  %v3820 = vpop.f32.mrb[0].mxu0
  %3821 = vdwg.mxu0
  %3822 = vmatprep.subr.bf16.mxu0 %v3490
  %3823 = vmatpush1.bf16.msra.mxu0 %v3489
  %3824 = vmatprep.subr.bf16.mxu0 %v3494
  %3825 = vmatpush1.bf16.msra.mxu0 %v3493
  %3826 = vmatprep.subr.bf16.mxu0 %v3498
  %3827 = vmatpush1.bf16.msra.mxu0 %v3497
  %3828 = vmatprep.subr.bf16.mxu0 %v3502
  %3829 = vmatpush1.bf16.msra.mxu0 %v3501
  %3830 = vmatprep.subr.bf16.mxu0 %v3506
  %3831 = vmatpush1.bf16.msra.mxu0 %v3505
  %3832 = vmatprep.subr.bf16.mxu0 %v3510
  %3833 = vmatpush1.bf16.msra.mxu0 %v3509
  %3834 = vmatprep.subr.bf16.mxu0 %v3514
  %3835 = vmatpush1.bf16.msra.mxu0 %v3513
  %3836 = vmatprep.subr.bf16.mxu0 %v3518
  %3837 = vmatpush1.bf16.msra.mxu0 %v3517
  %3838 = vmatprep.subr.bf16.mxu0 0
  %3839 = vmatpush1.bf16.msra.mxu0 0
  %3840 = vmatprep.subr.bf16.mxu0 0
  %3841 = vmatpush1.bf16.msra.mxu0 0
  %3842 = vmatprep.subr.bf16.mxu0 0
  %3843 = vmatpush1.bf16.msra.mxu0 0
  %3844 = vmatprep.subr.bf16.mxu0 0
  %3845 = vmatpush1.bf16.msra.mxu0 0
  %3846 = vmatprep.subr.bf16.mxu0 0
  %3847 = vmatpush1.bf16.msra.mxu0 0
  %3848 = vmatprep.subr.bf16.mxu0 0
  %3849 = vmatpush1.bf16.msra.mxu0 0
  %3850 = vmatprep.subr.bf16.mxu0 0
  %3851 = vmatpush1.bf16.msra.mxu0 0
  %3852 = vmatprep.subr.bf16.mxu0 0
  %3853 = vmatpush1.bf16.msra.mxu0 0
  %3854 = vmatprep.mubr.bf16.mxu0 0
  %3855 = vmatmul.mubr.bf16.gmra.mrb[0].mxu0 %v3780
  %v3856 = vpop.f32.mrb[0].mxu0
  %v3857 = vadd.f32 0.0, %v3856
  %v3858 = vpop.f32.mrb[0].mxu0
  %v3859 = vadd.f32 0.0, %v3858
  %v3860 = vpop.f32.mrb[0].mxu0
  %v3861 = vpop.f32.mrb[0].mxu0
  %3862 = vdwg.mxu0
  %v3863 = vadd.f32 %v3776, %v3816
  %v3864 = vadd.f32 %v3777, %v3818
  %v3865 = vadd.f32 %v3778, %v3857
  %v3866 = vadd.f32 %v3779, %v3859
  %v3867 = vxor.u32 %v3863, 2147483648
  %v3868 = vxor.u32 %v3864, 2147483648
  %v3869 = vxor.u32 %v3865, 2147483648
  %v3870 = vmul.f32 %v3867, 1.442695
  %v3871 = vpow.pop %v3870
  %v3872 = vmul.f32 %v3868, 1.442695
  %v3873 = vpow.pop %v3872
  %v3874 = vmul.f32 %v3869, 1.442695
  %v3875 = vpow.pop %v3874
  %v3876 = vadd.f32 %v3871, 1.0
  %v3877 = vadd.f32 %v3873, 1.0
  %v3878 = vadd.f32 %v3875, 1.0
  %v3879 = vrcp.pop %v3876
  %v3880 = vmul.f32 1.0, %v3879
  %v3881 = vrcp.pop %v3877
  %v3882 = vmul.f32 1.0, %v3881
  %v3883 = vrcp.pop %v3878
  %v3884 = vmul.f32 1.0, %v3883
  %v3885 = vtanh.pop %v3866
  %v3886 = vmul.f32 %v3882, %v3773
  %v3887 = vmul.f32 %v3880, %v3885
  %v3888 = vadd.f32 %v3886, %v3887
  %v3889 = vtanh.pop %v3888
  %v3890 = vmul.f32 %v3884, %v3889
  %v3891 = vld [vmem:[%s1393] sm:$0xff]
  %v3892 = vld [vmem:[%s1393 + $0x8] sm:$0xff]
  %v3893 = vld [vmem:[%s1393 + $0x10] sm:$0xff]
  %v3894 = vld [vmem:[%s1393 + $0x18] sm:$0xff]
  %v3895 = vpack.c.bf16 %v3890, %v3890
  %3896 = vmatprep.subr.bf16.mxu0 %v3488
  %3897 = vmatpush1.bf16.msra.mxu0 %v3487
  %3898 = vmatprep.subr.bf16.mxu0 %v3492
  %3899 = vmatpush1.bf16.msra.mxu0 %v3491
  %3900 = vmatprep.subr.bf16.mxu0 %v3496
  %3901 = vmatpush1.bf16.msra.mxu0 %v3495
  %3902 = vmatprep.subr.bf16.mxu0 %v3500
  %3903 = vmatpush1.bf16.msra.mxu0 %v3499
  %3904 = vmatprep.subr.bf16.mxu0 %v3504
  %3905 = vmatpush1.bf16.msra.mxu0 %v3503
  %3906 = vmatprep.subr.bf16.mxu0 %v3508
  %3907 = vmatpush1.bf16.msra.mxu0 %v3507
  %3908 = vmatprep.subr.bf16.mxu0 %v3512
  %3909 = vmatpush1.bf16.msra.mxu0 %v3511
  %3910 = vmatprep.subr.bf16.mxu0 %v3516
  %3911 = vmatpush1.bf16.msra.mxu0 %v3515
  %3912 = vmatprep.subr.bf16.mxu0 0
  %3913 = vmatpush1.bf16.msra.mxu0 0
  %3914 = vmatprep.subr.bf16.mxu0 0
  %3915 = vmatpush1.bf16.msra.mxu0 0
  %3916 = vmatprep.subr.bf16.mxu0 0
  %3917 = vmatpush1.bf16.msra.mxu0 0
  %3918 = vmatprep.subr.bf16.mxu0 0
  %3919 = vmatpush1.bf16.msra.mxu0 0
  %3920 = vmatprep.subr.bf16.mxu0 0
  %3921 = vmatpush1.bf16.msra.mxu0 0
  %3922 = vmatprep.subr.bf16.mxu0 0
  %3923 = vmatpush1.bf16.msra.mxu0 0
  %3924 = vmatprep.subr.bf16.mxu0 0
  %3925 = vmatpush1.bf16.msra.mxu0 0
  %3926 = vmatprep.subr.bf16.mxu0 0
  %3927 = vmatpush1.bf16.msra.mxu0 0
  %3928 = vmatprep.mubr.bf16.mxu0 0
  %3929 = vmatmul.mubr.bf16.gmra.mrb[0].mxu0 %v3895
  %v3930 = vpop.f32.mrb[0].mxu0
  %v3931 = vadd.f32 0.0, %v3930
  %v3932 = vpop.f32.mrb[0].mxu0
  %v3933 = vadd.f32 0.0, %v3932
  %v3934 = vpop.f32.mrb[0].mxu0
  %v3935 = vpop.f32.mrb[0].mxu0
  %3936 = vdwg.mxu0
  %3937 = vmatprep.subr.bf16.mxu0 %v3490
  %3938 = vmatpush1.bf16.msra.mxu0 %v3489
  %3939 = vmatprep.subr.bf16.mxu0 %v3494
  %3940 = vmatpush1.bf16.msra.mxu0 %v3493
  %3941 = vmatprep.subr.bf16.mxu0 %v3498
  %3942 = vmatpush1.bf16.msra.mxu0 %v3497
  %3943 = vmatprep.subr.bf16.mxu0 %v3502
  %3944 = vmatpush1.bf16.msra.mxu0 %v3501
  %3945 = vmatprep.subr.bf16.mxu0 %v3506
  %3946 = vmatpush1.bf16.msra.mxu0 %v3505
  %3947 = vmatprep.subr.bf16.mxu0 %v3510
  %3948 = vmatpush1.bf16.msra.mxu0 %v3509
  %3949 = vmatprep.subr.bf16.mxu0 %v3514
  %3950 = vmatpush1.bf16.msra.mxu0 %v3513
  %3951 = vmatprep.subr.bf16.mxu0 %v3518
  %3952 = vmatpush1.bf16.msra.mxu0 %v3517
  %3953 = vmatprep.subr.bf16.mxu0 0
  %3954 = vmatpush1.bf16.msra.mxu0 0
  %3955 = vmatprep.subr.bf16.mxu0 0
  %3956 = vmatpush1.bf16.msra.mxu0 0
  %3957 = vmatprep.subr.bf16.mxu0 0
  %3958 = vmatpush1.bf16.msra.mxu0 0
  %3959 = vmatprep.subr.bf16.mxu0 0
  %3960 = vmatpush1.bf16.msra.mxu0 0
  %3961 = vmatprep.subr.bf16.mxu0 0
  %3962 = vmatpush1.bf16.msra.mxu0 0
  %3963 = vmatprep.subr.bf16.mxu0 0
  %3964 = vmatpush1.bf16.msra.mxu0 0
  %3965 = vmatprep.subr.bf16.mxu0 0
  %3966 = vmatpush1.bf16.msra.mxu0 0
  %3967 = vmatprep.subr.bf16.mxu0 0
  %3968 = vmatpush1.bf16.msra.mxu0 0
  %3969 = vmatprep.mubr.bf16.mxu0 0
  %3970 = vmatmul.mubr.bf16.gmra.mrb[0].mxu0 %v3895
  %v3971 = vpop.f32.mrb[0].mxu0
  %v3972 = vadd.f32 0.0, %v3971
  %v3973 = vpop.f32.mrb[0].mxu0
  %v3974 = vadd.f32 0.0, %v3973
  %v3975 = vpop.f32.mrb[0].mxu0
  %v3976 = vpop.f32.mrb[0].mxu0
  %3977 = vdwg.mxu0
  %v3978 = vadd.f32 %v3891, %v3931
  %v3979 = vadd.f32 %v3892, %v3933
  %v3980 = vadd.f32 %v3893, %v3972
  %v3981 = vadd.f32 %v3894, %v3974
  %v3982 = vxor.u32 %v3978, 2147483648
  %v3983 = vxor.u32 %v3979, 2147483648
  %v3984 = vxor.u32 %v3980, 2147483648
  %v3985 = vmul.f32 %v3982, 1.442695
  %v3986 = vpow.pop %v3985
  %v3987 = vmul.f32 %v3983, 1.442695
  %v3988 = vpow.pop %v3987
  %v3989 = vmul.f32 %v3984, 1.442695
  %v3990 = vpow.pop %v3989
  %v3991 = vadd.f32 %v3986, 1.0
  %v3992 = vadd.f32 %v3988, 1.0
  %v3993 = vadd.f32 %v3990, 1.0
  %v3994 = vrcp.pop %v3991
  %v3995 = vmul.f32 1.0, %v3994
  %v3996 = vrcp.pop %v3992
  %v3997 = vmul.f32 1.0, %v3996
  %v3998 = vrcp.pop %v3993
  %v3999 = vmul.f32 1.0, %v3998
  %v4000 = vtanh.pop %v3981
  %v4001 = vmul.f32 %v3997, %v3888
  %v4002 = vmul.f32 %v3995, %v4000
  %v4003 = vadd.f32 %v4001, %v4002
  %v4004 = vtanh.pop %v4003
  %v4005 = vmul.f32 %v3999, %v4004
  %v4006 = vld [vmem:[%s1705] sm:$0xff]
  %v4007 = vld [vmem:[%s1705 + $0x8] sm:$0xff]
  %v4008 = vld [vmem:[%s1705 + $0x10] sm:$0xff]
  %v4009 = vld [vmem:[%s1705 + $0x18] sm:$0xff]
  %v4010 = vpack.c.bf16 %v4005, %v4005
  %4011 = vmatprep.subr.bf16.mxu0 %v3488
  %4012 = vmatpush1.bf16.msra.mxu0 %v3487
  %4013 = vmatprep.subr.bf16.mxu0 %v3492
  %4014 = vmatpush1.bf16.msra.mxu0 %v3491
  %4015 = vmatprep.subr.bf16.mxu0 %v3496
  %4016 = vmatpush1.bf16.msra.mxu0 %v3495
  %4017 = vmatprep.subr.bf16.mxu0 %v3500
  %4018 = vmatpush1.bf16.msra.mxu0 %v3499
  %4019 = vmatprep.subr.bf16.mxu0 %v3504
  %4020 = vmatpush1.bf16.msra.mxu0 %v3503
  %4021 = vmatprep.subr.bf16.mxu0 %v3508
  %4022 = vmatpush1.bf16.msra.mxu0 %v3507
  %4023 = vmatprep.subr.bf16.mxu0 %v3512
  %4024 = vmatpush1.bf16.msra.mxu0 %v3511
  %4025 = vmatprep.subr.bf16.mxu0 %v3516
  %4026 = vmatpush1.bf16.msra.mxu0 %v3515
  %4027 = vmatprep.subr.bf16.mxu0 0
  %4028 = vmatpush1.bf16.msra.mxu0 0
  %4029 = vmatprep.subr.bf16.mxu0 0
  %4030 = vmatpush1.bf16.msra.mxu0 0
  %4031 = vmatprep.subr.bf16.mxu0 0
  %4032 = vmatpush1.bf16.msra.mxu0 0
  %4033 = vmatprep.subr.bf16.mxu0 0
  %4034 = vmatpush1.bf16.msra.mxu0 0
  %4035 = vmatprep.subr.bf16.mxu0 0
  %4036 = vmatpush1.bf16.msra.mxu0 0
  %4037 = vmatprep.subr.bf16.mxu0 0
  %4038 = vmatpush1.bf16.msra.mxu0 0
  %4039 = vmatprep.subr.bf16.mxu0 0
  %4040 = vmatpush1.bf16.msra.mxu0 0
  %4041 = vmatprep.subr.bf16.mxu0 0
  %4042 = vmatpush1.bf16.msra.mxu0 0
  %4043 = vmatprep.mubr.bf16.mxu0 0
  %4044 = vmatmul.mubr.bf16.gmra.mrb[0].mxu0 %v4010
  %v4045 = vpop.f32.mrb[0].mxu0
  %v4046 = vadd.f32 0.0, %v4045
  %v4047 = vpop.f32.mrb[0].mxu0
  %v4048 = vadd.f32 0.0, %v4047
  %v4049 = vpop.f32.mrb[0].mxu0
  %v4050 = vpop.f32.mrb[0].mxu0
  %4051 = vdwg.mxu0
  %4052 = vmatprep.subr.bf16.mxu0 %v3490
  %4053 = vmatpush1.bf16.msra.mxu0 %v3489
  %4054 = vmatprep.subr.bf16.mxu0 %v3494
  %4055 = vmatpush1.bf16.msra.mxu0 %v3493
  %4056 = vmatprep.subr.bf16.mxu0 %v3498
  %4057 = vmatpush1.bf16.msra.mxu0 %v3497
  %4058 = vmatprep.subr.bf16.mxu0 %v3502
  %4059 = vmatpush1.bf16.msra.mxu0 %v3501
  %4060 = vmatprep.subr.bf16.mxu0 %v3506
  %4061 = vmatpush1.bf16.msra.mxu0 %v3505
  %4062 = vmatprep.subr.bf16.mxu0 %v3510
  %4063 = vmatpush1.bf16.msra.mxu0 %v3509
  %4064 = vmatprep.subr.bf16.mxu0 %v3514
  %4065 = vmatpush1.bf16.msra.mxu0 %v3513
  %4066 = vmatprep.subr.bf16.mxu0 %v3518
  %4067 = vmatpush1.bf16.msra.mxu0 %v3517
  %4068 = vmatprep.subr.bf16.mxu0 0
  %4069 = vmatpush1.bf16.msra.mxu0 0
  %4070 = vmatprep.subr.bf16.mxu0 0
  %4071 = vmatpush1.bf16.msra.mxu0 0
  %4072 = vmatprep.subr.bf16.mxu0 0
  %4073 = vmatpush1.bf16.msra.mxu0 0
  %4074 = vmatprep.subr.bf16.mxu0 0
  %4075 = vmatpush1.bf16.msra.mxu0 0
  %4076 = vmatprep.subr.bf16.mxu0 0
  %4077 = vmatpush1.bf16.msra.mxu0 0
  %4078 = vmatprep.subr.bf16.mxu0 0
  %4079 = vmatpush1.bf16.msra.mxu0 0
  %4080 = vmatprep.subr.bf16.mxu0 0
  %4081 = vmatpush1.bf16.msra.mxu0 0
  %4082 = vmatprep.subr.bf16.mxu0 0
  %4083 = vmatpush1.bf16.msra.mxu0 0
  %4084 = vmatprep.mubr.bf16.mxu0 0
  %4085 = vmatmul.mubr.bf16.gmra.mrb[0].mxu0 %v4010
  %v4086 = vpop.f32.mrb[0].mxu0
  %v4087 = vadd.f32 0.0, %v4086
  %v4088 = vpop.f32.mrb[0].mxu0
  %v4089 = vadd.f32 0.0, %v4088
  %v4090 = vpop.f32.mrb[0].mxu0
  %v4091 = vpop.f32.mrb[0].mxu0
  %4092 = vdwg.mxu0
  %v4093 = vadd.f32 %v4006, %v4046
  %v4094 = vadd.f32 %v4007, %v4048
  %v4095 = vadd.f32 %v4008, %v4087
  %v4096 = vadd.f32 %v4009, %v4089
  %v4097 = vxor.u32 %v4093, 2147483648
  %v4098 = vxor.u32 %v4094, 2147483648
  %v4099 = vxor.u32 %v4095, 2147483648
  %v4100 = vmul.f32 %v4097, 1.442695
  %v4101 = vpow.pop %v4100
  %v4102 = vmul.f32 %v4098, 1.442695
  %v4103 = vpow.pop %v4102
  %v4104 = vmul.f32 %v4099, 1.442695
  %v4105 = vpow.pop %v4104
  %v4106 = vadd.f32 %v4101, 1.0
  %v4107 = vadd.f32 %v4103, 1.0
  %v4108 = vadd.f32 %v4105, 1.0
  %v4109 = vrcp.pop %v4106
  %v4110 = vmul.f32 1.0, %v4109
  %v4111 = vrcp.pop %v4107
  %v4112 = vmul.f32 1.0, %v4111
  %v4113 = vrcp.pop %v4108
  %v4114 = vmul.f32 1.0, %v4113
  %v4115 = vtanh.pop %v4096
  %v4116 = vmul.f32 %v4112, %v4003
  %v4117 = vmul.f32 %v4110, %v4115
  %v4118 = vadd.f32 %v4116, %v4117
  %v4119 = vtanh.pop %v4118
  %v4120 = vmul.f32 %v4114, %v4119
  %v4121 = vld [vmem:[%s2017] sm:$0xff]
  %v4122 = vld [vmem:[%s2017 + $0x8] sm:$0xff]
  %v4123 = vld [vmem:[%s2017 + $0x10] sm:$0xff]
  %v4124 = vld [vmem:[%s2017 + $0x18] sm:$0xff]
  %v4125 = vpack.c.bf16 %v4120, %v4120
  %4126 = vmatprep.subr.bf16.mxu0 %v3488
  %4127 = vmatpush1.bf16.msra.mxu0 %v3487
  %4128 = vmatprep.subr.bf16.mxu0 %v3492
  %4129 = vmatpush1.bf16.msra.mxu0 %v3491
  %4130 = vmatprep.subr.bf16.mxu0 %v3496
  %4131 = vmatpush1.bf16.msra.mxu0 %v3495
  %4132 = vmatprep.subr.bf16.mxu0 %v3500
  %4133 = vmatpush1.bf16.msra.mxu0 %v3499
  %4134 = vmatprep.subr.bf16.mxu0 %v3504
  %4135 = vmatpush1.bf16.msra.mxu0 %v3503
  %4136 = vmatprep.subr.bf16.mxu0 %v3508
  %4137 = vmatpush1.bf16.msra.mxu0 %v3507
  %4138 = vmatprep.subr.bf16.mxu0 %v3512
  %4139 = vmatpush1.bf16.msra.mxu0 %v3511
  %4140 = vmatprep.subr.bf16.mxu0 %v3516
  %4141 = vmatpush1.bf16.msra.mxu0 %v3515
  %4142 = vmatprep.subr.bf16.mxu0 0
  %4143 = vmatpush1.bf16.msra.mxu0 0
  %4144 = vmatprep.subr.bf16.mxu0 0
  %4145 = vmatpush1.bf16.msra.mxu0 0
  %4146 = vmatprep.subr.bf16.mxu0 0
  %4147 = vmatpush1.bf16.msra.mxu0 0
  %4148 = vmatprep.subr.bf16.mxu0 0
  %4149 = vmatpush1.bf16.msra.mxu0 0
  %4150 = vmatprep.subr.bf16.mxu0 0
  %4151 = vmatpush1.bf16.msra.mxu0 0
  %4152 = vmatprep.subr.bf16.mxu0 0
  %4153 = vmatpush1.bf16.msra.mxu0 0
  %4154 = vmatprep.subr.bf16.mxu0 0
  %4155 = vmatpush1.bf16.msra.mxu0 0
  %4156 = vmatprep.subr.bf16.mxu0 0
  %4157 = vmatpush1.bf16.msra.mxu0 0
  %4158 = vmatprep.mubr.bf16.mxu0 0
  %4159 = vmatmul.mubr.bf16.gmra.mrb[0].mxu0 %v4125
  %v4160 = vpop.f32.mrb[0].mxu0
  %v4161 = vadd.f32 0.0, %v4160
  %v4162 = vpop.f32.mrb[0].mxu0
  %v4163 = vadd.f32 0.0, %v4162
  %v4164 = vpop.f32.mrb[0].mxu0
  %v4165 = vpop.f32.mrb[0].mxu0
  %4166 = vdwg.mxu0
  %4167 = vmatprep.subr.bf16.mxu0 %v3490
  %4168 = vmatpush1.bf16.msra.mxu0 %v3489
  %4169 = vmatprep.subr.bf16.mxu0 %v3494
  %4170 = vmatpush1.bf16.msra.mxu0 %v3493
  %4171 = vmatprep.subr.bf16.mxu0 %v3498
  %4172 = vmatpush1.bf16.msra.mxu0 %v3497
  %4173 = vmatprep.subr.bf16.mxu0 %v3502
  %4174 = vmatpush1.bf16.msra.mxu0 %v3501
  %4175 = vmatprep.subr.bf16.mxu0 %v3506
  %4176 = vmatpush1.bf16.msra.mxu0 %v3505
  %4177 = vmatprep.subr.bf16.mxu0 %v3510
  %4178 = vmatpush1.bf16.msra.mxu0 %v3509
  %4179 = vmatprep.subr.bf16.mxu0 %v3514
  %4180 = vmatpush1.bf16.msra.mxu0 %v3513
  %4181 = vmatprep.subr.bf16.mxu0 %v3518
  %4182 = vmatpush1.bf16.msra.mxu0 %v3517
  %4183 = vmatprep.subr.bf16.mxu0 0
  %4184 = vmatpush1.bf16.msra.mxu0 0
  %4185 = vmatprep.subr.bf16.mxu0 0
  %4186 = vmatpush1.bf16.msra.mxu0 0
  %4187 = vmatprep.subr.bf16.mxu0 0
  %4188 = vmatpush1.bf16.msra.mxu0 0
  %4189 = vmatprep.subr.bf16.mxu0 0
  %4190 = vmatpush1.bf16.msra.mxu0 0
  %4191 = vmatprep.subr.bf16.mxu0 0
  %4192 = vmatpush1.bf16.msra.mxu0 0
  %4193 = vmatprep.subr.bf16.mxu0 0
  %4194 = vmatpush1.bf16.msra.mxu0 0
  %4195 = vmatprep.subr.bf16.mxu0 0
  %4196 = vmatpush1.bf16.msra.mxu0 0
  %4197 = vmatprep.subr.bf16.mxu0 0
  %4198 = vmatpush1.bf16.msra.mxu0 0
  %4199 = vmatprep.mubr.bf16.mxu0 0
  %4200 = vmatmul.mubr.bf16.gmra.mrb[0].mxu0 %v4125
  %v4201 = vpop.f32.mrb[0].mxu0
  %v4202 = vadd.f32 0.0, %v4201
  %v4203 = vpop.f32.mrb[0].mxu0
  %v4204 = vadd.f32 0.0, %v4203
  %v4205 = vpop.f32.mrb[0].mxu0
  %v4206 = vpop.f32.mrb[0].mxu0
  %4207 = vdwg.mxu0
  %v4208 = vadd.f32 %v4121, %v4161
  %v4209 = vadd.f32 %v4122, %v4163
  %v4210 = vadd.f32 %v4123, %v4202
  %v4211 = vadd.f32 %v4124, %v4204
  %v4212 = vxor.u32 %v4208, 2147483648
  %v4213 = vxor.u32 %v4209, 2147483648
  %v4214 = vxor.u32 %v4210, 2147483648
  %v4215 = vmul.f32 %v4212, 1.442695
  %v4216 = vpow.pop %v4215
  %v4217 = vmul.f32 %v4213, 1.442695
  %v4218 = vpow.pop %v4217
  %v4219 = vmul.f32 %v4214, 1.442695
  %v4220 = vpow.pop %v4219
  %v4221 = vadd.f32 %v4216, 1.0
  %v4222 = vadd.f32 %v4218, 1.0
  %v4223 = vadd.f32 %v4220, 1.0
  %v4224 = vrcp.pop %v4221
  %v4225 = vmul.f32 1.0, %v4224
  %v4226 = vrcp.pop %v4222
  %v4227 = vmul.f32 1.0, %v4226
  %v4228 = vrcp.pop %v4223
  %v4229 = vmul.f32 1.0, %v4228
  %v4230 = vtanh.pop %v4211
  %v4231 = vmul.f32 %v4227, %v4118
  %v4232 = vmul.f32 %v4225, %v4230
  %v4233 = vadd.f32 %v4231, %v4232
  %v4234 = vtanh.pop %v4233
  %v4235 = vmul.f32 %v4229, %v4234
  %v4236 = vld [vmem:[%s2329] sm:$0xff]
  %v4237 = vld [vmem:[%s2329 + $0x8] sm:$0xff]
  %v4238 = vld [vmem:[%s2329 + $0x10] sm:$0xff]
  %v4239 = vld [vmem:[%s2329 + $0x18] sm:$0xff]
  %v4240 = vpack.c.bf16 %v4235, %v4235
  %4241 = vmatprep.subr.bf16.mxu0 %v3488
  %4242 = vmatpush1.bf16.msra.mxu0 %v3487
  %4243 = vmatprep.subr.bf16.mxu0 %v3492
  %4244 = vmatpush1.bf16.msra.mxu0 %v3491
  %4245 = vmatprep.subr.bf16.mxu0 %v3496
  %4246 = vmatpush1.bf16.msra.mxu0 %v3495
  %4247 = vmatprep.subr.bf16.mxu0 %v3500
  %4248 = vmatpush1.bf16.msra.mxu0 %v3499
  %4249 = vmatprep.subr.bf16.mxu0 %v3504
  %4250 = vmatpush1.bf16.msra.mxu0 %v3503
  %4251 = vmatprep.subr.bf16.mxu0 %v3508
  %4252 = vmatpush1.bf16.msra.mxu0 %v3507
  %4253 = vmatprep.subr.bf16.mxu0 %v3512
  %4254 = vmatpush1.bf16.msra.mxu0 %v3511
  %4255 = vmatprep.subr.bf16.mxu0 %v3516
  %4256 = vmatpush1.bf16.msra.mxu0 %v3515
  %4257 = vmatprep.subr.bf16.mxu0 0
  %4258 = vmatpush1.bf16.msra.mxu0 0
  %4259 = vmatprep.subr.bf16.mxu0 0
  %4260 = vmatpush1.bf16.msra.mxu0 0
  %4261 = vmatprep.subr.bf16.mxu0 0
  %4262 = vmatpush1.bf16.msra.mxu0 0
  %4263 = vmatprep.subr.bf16.mxu0 0
  %4264 = vmatpush1.bf16.msra.mxu0 0
  %4265 = vmatprep.subr.bf16.mxu0 0
  %4266 = vmatpush1.bf16.msra.mxu0 0
  %4267 = vmatprep.subr.bf16.mxu0 0
  %4268 = vmatpush1.bf16.msra.mxu0 0
  %4269 = vmatprep.subr.bf16.mxu0 0
  %4270 = vmatpush1.bf16.msra.mxu0 0
  %4271 = vmatprep.subr.bf16.mxu0 0
  %4272 = vmatpush1.bf16.msra.mxu0 0
  %4273 = vmatprep.mubr.bf16.mxu0 0
  %4274 = vmatmul.mubr.bf16.gmra.mrb[0].mxu0 %v4240
  %v4275 = vpop.f32.mrb[0].mxu0
  %v4276 = vadd.f32 0.0, %v4275
  %v4277 = vpop.f32.mrb[0].mxu0
  %v4278 = vadd.f32 0.0, %v4277
  %v4279 = vpop.f32.mrb[0].mxu0
  %v4280 = vpop.f32.mrb[0].mxu0
  %4281 = vdwg.mxu0
  %4282 = vmatprep.subr.bf16.mxu0 %v3490
  %4283 = vmatpush1.bf16.msra.mxu0 %v3489
  %4284 = vmatprep.subr.bf16.mxu0 %v3494
  %4285 = vmatpush1.bf16.msra.mxu0 %v3493
  %4286 = vmatprep.subr.bf16.mxu0 %v3498
  %4287 = vmatpush1.bf16.msra.mxu0 %v3497
  %4288 = vmatprep.subr.bf16.mxu0 %v3502
  %4289 = vmatpush1.bf16.msra.mxu0 %v3501
  %4290 = vmatprep.subr.bf16.mxu0 %v3506
  %4291 = vmatpush1.bf16.msra.mxu0 %v3505
  %4292 = vmatprep.subr.bf16.mxu0 %v3510
  %4293 = vmatpush1.bf16.msra.mxu0 %v3509
  %4294 = vmatprep.subr.bf16.mxu0 %v3514
  %4295 = vmatpush1.bf16.msra.mxu0 %v3513
  %4296 = vmatprep.subr.bf16.mxu0 %v3518
  %4297 = vmatpush1.bf16.msra.mxu0 %v3517
  %4298 = vmatprep.subr.bf16.mxu0 0
  %4299 = vmatpush1.bf16.msra.mxu0 0
  %4300 = vmatprep.subr.bf16.mxu0 0
  %4301 = vmatpush1.bf16.msra.mxu0 0
  %4302 = vmatprep.subr.bf16.mxu0 0
  %4303 = vmatpush1.bf16.msra.mxu0 0
  %4304 = vmatprep.subr.bf16.mxu0 0
  %4305 = vmatpush1.bf16.msra.mxu0 0
  %4306 = vmatprep.subr.bf16.mxu0 0
  %4307 = vmatpush1.bf16.msra.mxu0 0
  %4308 = vmatprep.subr.bf16.mxu0 0
  %4309 = vmatpush1.bf16.msra.mxu0 0
  %4310 = vmatprep.subr.bf16.mxu0 0
  %4311 = vmatpush1.bf16.msra.mxu0 0
  %4312 = vmatprep.subr.bf16.mxu0 0
  %4313 = vmatpush1.bf16.msra.mxu0 0
  %4314 = vmatprep.mubr.bf16.mxu0 0
  %4315 = vmatmul.mubr.bf16.gmra.mrb[0].mxu0 %v4240
  %v4316 = vpop.f32.mrb[0].mxu0
  %v4317 = vadd.f32 0.0, %v4316
  %v4318 = vpop.f32.mrb[0].mxu0
  %v4319 = vadd.f32 0.0, %v4318
  %v4320 = vpop.f32.mrb[0].mxu0
  %v4321 = vpop.f32.mrb[0].mxu0
  %4322 = vdwg.mxu0
  %v4323 = vadd.f32 %v4236, %v4276
  %v4324 = vadd.f32 %v4237, %v4278
  %v4325 = vadd.f32 %v4238, %v4317
  %v4326 = vadd.f32 %v4239, %v4319
  %v4327 = vxor.u32 %v4323, 2147483648
  %v4328 = vxor.u32 %v4324, 2147483648
  %v4329 = vxor.u32 %v4325, 2147483648
  %v4330 = vmul.f32 %v4327, 1.442695
  %v4331 = vpow.pop %v4330
  %v4332 = vmul.f32 %v4328, 1.442695
  %v4333 = vpow.pop %v4332
  %v4334 = vmul.f32 %v4329, 1.442695
  %v4335 = vpow.pop %v4334
  %v4336 = vadd.f32 %v4331, 1.0
  %v4337 = vadd.f32 %v4333, 1.0
  %v4338 = vadd.f32 %v4335, 1.0
  %v4339 = vrcp.pop %v4336
  %v4340 = vmul.f32 1.0, %v4339
  %v4341 = vrcp.pop %v4337
  %v4342 = vmul.f32 1.0, %v4341
  %v4343 = vrcp.pop %v4338
  %v4344 = vmul.f32 1.0, %v4343
  %v4345 = vtanh.pop %v4326
  %v4346 = vmul.f32 %v4342, %v4233
  %v4347 = vmul.f32 %v4340, %v4345
  %v4348 = vadd.f32 %v4346, %v4347
  %v4349 = vtanh.pop %v4348
  %v4350 = vmul.f32 %v4344, %v4349
  %v4351 = vld [vmem:[%s2641] sm:$0xff]
  %v4352 = vld [vmem:[%s2641 + $0x8] sm:$0xff]
  %v4353 = vld [vmem:[%s2641 + $0x10] sm:$0xff]
  %v4354 = vld [vmem:[%s2641 + $0x18] sm:$0xff]
  %v4355 = vpack.c.bf16 %v4350, %v4350
  %4356 = vmatprep.subr.bf16.mxu0 %v3488
  %4357 = vmatpush1.bf16.msra.mxu0 %v3487
  %4358 = vmatprep.subr.bf16.mxu0 %v3492
  %4359 = vmatpush1.bf16.msra.mxu0 %v3491
  %4360 = vmatprep.subr.bf16.mxu0 %v3496
  %4361 = vmatpush1.bf16.msra.mxu0 %v3495
  %4362 = vmatprep.subr.bf16.mxu0 %v3500
  %4363 = vmatpush1.bf16.msra.mxu0 %v3499
  %4364 = vmatprep.subr.bf16.mxu0 %v3504
  %4365 = vmatpush1.bf16.msra.mxu0 %v3503
  %4366 = vmatprep.subr.bf16.mxu0 %v3508
  %4367 = vmatpush1.bf16.msra.mxu0 %v3507
  %4368 = vmatprep.subr.bf16.mxu0 %v3512
  %4369 = vmatpush1.bf16.msra.mxu0 %v3511
  %4370 = vmatprep.subr.bf16.mxu0 %v3516
  %4371 = vmatpush1.bf16.msra.mxu0 %v3515
  %4372 = vmatprep.subr.bf16.mxu0 0
  %4373 = vmatpush1.bf16.msra.mxu0 0
  %4374 = vmatprep.subr.bf16.mxu0 0
  %4375 = vmatpush1.bf16.msra.mxu0 0
  %4376 = vmatprep.subr.bf16.mxu0 0
  %4377 = vmatpush1.bf16.msra.mxu0 0
  %4378 = vmatprep.subr.bf16.mxu0 0
  %4379 = vmatpush1.bf16.msra.mxu0 0
  %4380 = vmatprep.subr.bf16.mxu0 0
  %4381 = vmatpush1.bf16.msra.mxu0 0
  %4382 = vmatprep.subr.bf16.mxu0 0
  %4383 = vmatpush1.bf16.msra.mxu0 0
  %4384 = vmatprep.subr.bf16.mxu0 0
  %4385 = vmatpush1.bf16.msra.mxu0 0
  %4386 = vmatprep.subr.bf16.mxu0 0
  %4387 = vmatpush1.bf16.msra.mxu0 0
  %4388 = vmatprep.mubr.bf16.mxu0 0
  %4389 = vmatmul.mubr.bf16.gmra.mrb[0].mxu0 %v4355
  %v4390 = vpop.f32.mrb[0].mxu0
  %v4391 = vadd.f32 0.0, %v4390
  %v4392 = vpop.f32.mrb[0].mxu0
  %v4393 = vadd.f32 0.0, %v4392
  %v4394 = vpop.f32.mrb[0].mxu0
  %v4395 = vpop.f32.mrb[0].mxu0
  %4396 = vdwg.mxu0
  %4397 = vmatprep.subr.bf16.mxu0 %v3490
  %4398 = vmatpush1.bf16.msra.mxu0 %v3489
  %4399 = vmatprep.subr.bf16.mxu0 %v3494
  %4400 = vmatpush1.bf16.msra.mxu0 %v3493
  %4401 = vmatprep.subr.bf16.mxu0 %v3498
  %4402 = vmatpush1.bf16.msra.mxu0 %v3497
  %4403 = vmatprep.subr.bf16.mxu0 %v3502
  %4404 = vmatpush1.bf16.msra.mxu0 %v3501
  %4405 = vmatprep.subr.bf16.mxu0 %v3506
  %4406 = vmatpush1.bf16.msra.mxu0 %v3505
  %4407 = vmatprep.subr.bf16.mxu0 %v3510
  %4408 = vmatpush1.bf16.msra.mxu0 %v3509
  %4409 = vmatprep.subr.bf16.mxu0 %v3514
  %4410 = vmatpush1.bf16.msra.mxu0 %v3513
  %4411 = vmatprep.subr.bf16.mxu0 %v3518
  %4412 = vmatpush1.bf16.msra.mxu0 %v3517
  %4413 = vmatprep.subr.bf16.mxu0 0
  %4414 = vmatpush1.bf16.msra.mxu0 0
  %4415 = vmatprep.subr.bf16.mxu0 0
  %4416 = vmatpush1.bf16.msra.mxu0 0
  %4417 = vmatprep.subr.bf16.mxu0 0
  %4418 = vmatpush1.bf16.msra.mxu0 0
  %4419 = vmatprep.subr.bf16.mxu0 0
  %4420 = vmatpush1.bf16.msra.mxu0 0
  %4421 = vmatprep.subr.bf16.mxu0 0
  %4422 = vmatpush1.bf16.msra.mxu0 0
  %4423 = vmatprep.subr.bf16.mxu0 0
  %4424 = vmatpush1.bf16.msra.mxu0 0
  %4425 = vmatprep.subr.bf16.mxu0 0
  %4426 = vmatpush1.bf16.msra.mxu0 0
  %4427 = vmatprep.subr.bf16.mxu0 0
  %4428 = vmatpush1.bf16.msra.mxu0 0
  %4429 = vmatprep.mubr.bf16.mxu0 0
  %4430 = vmatmul.mubr.bf16.gmra.mrb[0].mxu0 %v4355
  %v4431 = vpop.f32.mrb[0].mxu0
  %v4432 = vadd.f32 0.0, %v4431
  %v4433 = vpop.f32.mrb[0].mxu0
  %v4434 = vadd.f32 0.0, %v4433
  %v4435 = vpop.f32.mrb[0].mxu0
  %v4436 = vpop.f32.mrb[0].mxu0
  %4437 = vdwg.mxu0
  %v4438 = vadd.f32 %v4351, %v4391
  %v4439 = vadd.f32 %v4352, %v4393
  %v4440 = vadd.f32 %v4353, %v4432
  %v4441 = vadd.f32 %v4354, %v4434
  %v4442 = vxor.u32 %v4438, 2147483648
  %v4443 = vxor.u32 %v4439, 2147483648
  %v4444 = vxor.u32 %v4440, 2147483648
  %v4445 = vmul.f32 %v4442, 1.442695
  %v4446 = vpow.pop %v4445
  %v4447 = vmul.f32 %v4443, 1.442695
  %v4448 = vpow.pop %v4447
  %v4449 = vmul.f32 %v4444, 1.442695
  %v4450 = vpow.pop %v4449
  %v4451 = vadd.f32 %v4446, 1.0
  %v4452 = vadd.f32 %v4448, 1.0
  %v4453 = vadd.f32 %v4450, 1.0
  %v4454 = vrcp.pop %v4451
  %v4455 = vmul.f32 1.0, %v4454
  %v4456 = vrcp.pop %v4452
  %v4457 = vmul.f32 1.0, %v4456
  %v4458 = vrcp.pop %v4453
  %v4459 = vmul.f32 1.0, %v4458
  %v4460 = vtanh.pop %v4441
  %v4461 = vmul.f32 %v4457, %v4348
  %v4462 = vmul.f32 %v4455, %v4460
  %v4463 = vadd.f32 %v4461, %v4462
  %v4464 = vtanh.pop %v4463
  %v4465 = vmul.f32 %v4459, %v4464
  %v4466 = vpack.c.bf16 %v4465, %v4465
  %v4467 = vld [vmem:[%s7] sm:$0xf]
  %v4468 = vld [vmem:[%s7 + $0x4] sm:$0xf]
  %v4469 = vld [vmem:[%s7 + $0x8] sm:$0xf]
  %v4470 = vld [vmem:[%s7 + $0xc] sm:$0xf]
  %v4471 = vld [vmem:[%s7 + $0x10] sm:$0xf]
  %v4472 = vld [vmem:[%s7 + $0x14] sm:$0xf]
  %v4473 = vld [vmem:[%s7 + $0x18] sm:$0xf]
  %v4474 = vld [vmem:[%s7 + $0x1c] sm:$0xf]
  %v4475 = vld [vmem:[%s7 + $0x20] sm:$0xf]
  %v4476 = vld [vmem:[%s7 + $0x24] sm:$0xf]
  %v4477 = vld [vmem:[%s7 + $0x28] sm:$0xf]
  %v4478 = vld [vmem:[%s7 + $0x2c] sm:$0xf]
  %v4479 = vld [vmem:[%s7 + $0x30] sm:$0xf]
  %v4480 = vld [vmem:[%s7 + $0x34] sm:$0xf]
  %v4481 = vld [vmem:[%s7 + $0x38] sm:$0xf]
  %v4482 = vld [vmem:[%s7 + $0x3c] sm:$0xf]
  %v4483 = vld [vmem:[%s8] sm:$0x1]
  %v4485 = vlaneseq
  %v4486 = vshrl.u32 %v4485, 7
  %v4487 = vsub.s32 0, %v4486
  %v4488 = vrot.slane %v4483, %v4487
  %v4506 = vunpack.c.l.b16 %v4467
  %v4507 = vunpack.c.l.b16 %v4468
  %v4508 = vunpack.c.l.b16 %v4469
  %v4509 = vunpack.c.l.b16 %v4470
  %v4510 = vunpack.c.l.b16 %v4471
  %v4511 = vunpack.c.l.b16 %v4472
  %v4512 = vunpack.c.l.b16 %v4473
  %v4513 = vunpack.c.l.b16 %v4474
  %v4514 = vunpack.c.l.b16 %v4475
  %v4515 = vunpack.c.l.b16 %v4476
  %v4516 = vunpack.c.l.b16 %v4477
  %v4517 = vunpack.c.l.b16 %v4478
  %v4518 = vunpack.c.l.b16 %v4479
  %v4519 = vunpack.c.l.b16 %v4480
  %v4520 = vunpack.c.l.b16 %v4481
  %v4521 = vunpack.c.l.b16 %v4482
  %v4522 = vpack.c.b16 %v4507, %v4506
  %v4523 = vpack.c.b16 %v4509, %v4508
  %v4524 = vpack.c.b16 %v4511, %v4510
  %v4525 = vpack.c.b16 %v4513, %v4512
  %v4526 = vpack.c.b16 %v4515, %v4514
  %v4527 = vpack.c.b16 %v4517, %v4516
  %v4528 = vpack.c.b16 %v4519, %v4518
  %v4529 = vpack.c.b16 %v4521, %v4520
  %4538 = vmatprep.subr.bf16.mxu0 0
  %4539 = vmatpush1.bf16.msra.mxu0 %v4522
  %4540 = vmatprep.subr.bf16.mxu0 0
  %4541 = vmatpush1.bf16.msra.mxu0 %v4523
  %4542 = vmatprep.subr.bf16.mxu0 0
  %4543 = vmatpush1.bf16.msra.mxu0 %v4524
  %4544 = vmatprep.subr.bf16.mxu0 0
  %4545 = vmatpush1.bf16.msra.mxu0 %v4525
  %4546 = vmatprep.subr.bf16.mxu0 0
  %4547 = vmatpush1.bf16.msra.mxu0 %v4526
  %4548 = vmatprep.subr.bf16.mxu0 0
  %4549 = vmatpush1.bf16.msra.mxu0 %v4527
  %4550 = vmatprep.subr.bf16.mxu0 0
  %4551 = vmatpush1.bf16.msra.mxu0 %v4528
  %4552 = vmatprep.subr.bf16.mxu0 0
  %4553 = vmatpush1.bf16.msra.mxu0 %v4529
  %4554 = vmatprep.subr.bf16.mxu0 0
  %4555 = vmatpush1.bf16.msra.mxu0 0
  %4556 = vmatprep.subr.bf16.mxu0 0
  %4557 = vmatpush1.bf16.msra.mxu0 0
  %4558 = vmatprep.subr.bf16.mxu0 0
  %4559 = vmatpush1.bf16.msra.mxu0 0
  %4560 = vmatprep.subr.bf16.mxu0 0
  %4561 = vmatpush1.bf16.msra.mxu0 0
  %4562 = vmatprep.subr.bf16.mxu0 0
  %4563 = vmatpush1.bf16.msra.mxu0 0
  %4564 = vmatprep.subr.bf16.mxu0 0
  %4565 = vmatpush1.bf16.msra.mxu0 0
  %4566 = vmatprep.subr.bf16.mxu0 0
  %4567 = vmatpush1.bf16.msra.mxu0 0
  %4568 = vmatprep.subr.bf16.mxu0 0
  %4569 = vmatpush1.bf16.msra.mxu0 0
  %4570 = vmatprep.mubr.bf16.mxu0 0
  %4571 = vmatmul.mubr.bf16.gmra.mrb[0].mxu0 %v4466
  %v4572 = vpop.f32.mrb[0].mxu0
  %v4573 = vadd.f32 %v4488, %v4572
  %v4574 = vpop.f32.mrb[0].mxu0
  %v4575 = vpop.f32.mrb[0].mxu0
  %v4576 = vpop.f32.mrb[0].mxu0
  %4577 = vdwg.mxu0
  %4578 = vst [vmem:[%s9] sm:$0xff] %v4573
  // Predicated region
  $region38: #{lstm_head_forward.1} parent=0 // pred_check
    _
  $region39: #{lstm_head_forward.1} parent=0 // pred_check_branch
    %4580 = sbr.rel (0) target = $region41
  $region40: #{lstm_head_forward.1} parent=0 // pred_region
    _
  $region41: #{lstm_head_forward.1} parent=0 // pred_fallthru
    _
  // Predicated region
  $region42: #{lstm_head_forward.1} parent=0 // pred_check
    _
  $region43: #{lstm_head_forward.1} parent=0 // pred_check_branch
    %4582 = sbr.rel (0) target = $region45
  $region44: #{lstm_head_forward.1} parent=0 // pred_region
    _
  $region45: #{lstm_head_forward.1} parent=0 // pred_fallthru
    _

</llo_original>
